<compile_context>
chip_gen: v6e
topology: v6e:2x2x1
jax: 0.10.0
libtpu: 0.0.40
codegen_flags: <defaults>
</compile_context>

<pallas_src>
import math

import jax
import jax.numpy as jnp
from jax import lax
from jax.experimental import pallas as pl
from jax.experimental.pallas import tpu as pltpu

NUM_GROUPS = 12
GN_EPS = 1e-6


# ----------------------------- JAX glue: positional encodings ----------------------
def positional_encoding_2d(orig_ch, H, W):
    """PositionalEncoding2D: returns (H, W, orig_ch) in float32."""
    channels = int(math.ceil(orig_ch / 2))
    inv_freq = 1.0 / (10000.0 ** (jnp.arange(0, channels, 2, dtype=jnp.float32) / channels))
    pos_x = jnp.arange(H, dtype=jnp.float32)
    pos_y = jnp.arange(W, dtype=jnp.float32)
    sin_inp_x = pos_x[:, None] * inv_freq[None, :]
    sin_inp_y = pos_y[:, None] * inv_freq[None, :]
    emb_x = jnp.concatenate([jnp.sin(sin_inp_x), jnp.cos(sin_inp_x)], axis=-1)  # (H, channels)
    emb_y = jnp.concatenate([jnp.sin(sin_inp_y), jnp.cos(sin_inp_y)], axis=-1)  # (W, channels)
    emb = jnp.zeros((H, W, channels * 2), dtype=jnp.float32)
    emb = emb.at[:, :, :channels].set(jnp.broadcast_to(emb_x[:, None, :], (H, W, channels)))
    emb = emb.at[:, :, channels:2 * channels].set(
        jnp.broadcast_to(emb_y[None, :, :], (H, W, channels)))
    return emb[:, :, :orig_ch]


def _batch_per_step(B):
    """v7x has 2 TensorCores: keep one batch element per grid step there so the
    'parallel' grid axis splits across them.  Single-TC chips (v5e/v6e): take the whole
    batch in one invocation (saves a grid step, exposes ILP across batch chains)."""
    try:
        kind = jax.devices()[0].device_kind.lower()
    except Exception:
        return B
    return 1 if "v7" in kind else B


# ----------------------------- fused forward ---------------------------------------
def multi_head_cross_attention_forward(Y, S, p):
    """Y: (B, Cy, Yh, Yw), S: (B, Cs, 2*Yh, 2*Yw) -> (B, Cs, 2*Yh, 2*Yw)."""
    B, Cy, Yh, Yw = Y.shape
    _, Cs, Sh, Sw = S.shape
    assert Cs % NUM_GROUPS == 0, "GroupNorm assumes contiguous groups of Cs/12 channels"
    N = Yh * Yw
    gsize = Cs // NUM_GROUPS
    scale = 1.0 / math.sqrt(Cs)
    inv_count = 1.0 / float(gsize * N)

    # --- positional encodings + maxpool (tiny; fused by XLA under jit) ---------------
    Spe = jnp.transpose(positional_encoding_2d(Cs, Sh, Sw), (2, 0, 1))[None]
    Ype = jnp.transpose(positional_encoding_2d(Cy, Yh, Yw), (2, 0, 1))[None]
    S_pe = S + Spe
    Y_pe = Y + Ype
    # TODO(synk): MaxPool2d(2) kept in JAX glue; folding the 2x2 strided max into the
    # kernel needs strided lane slicing that is not worth it at these sizes.
    Sp = S_pe.reshape(B, Cs, Yh, 2, Yw, 2).max(axis=(3, 5))            # (B, Cs, Yh, Yw)

    # channels-first flat layouts (free reshapes of NCHW memory)
    yp = Y_pe.reshape(B, Cy, N)
    sp = Sp.reshape(B, Cs, N)

    # --- constant packing: 2 slabs instead of 10 tiny inputs (constant-folded) -------
    ws = p['ws_conv'].T                                                # (Cs, Cs)
    wy = p['wy_conv'].T                                                # (Cs, Cy)
    wz = p['wz_conv'].T                                                # (Cs, Cs)
    wv = p['wv'].T                                                     # (Cs, Cs)
    # fused Q/K projection; softmax 1/sqrt(Cs) folded into the Q half
    wqk = jnp.concatenate([p['wq'].T * scale, p['wk'].T], axis=0)      # (2Cs, Cs)
    # ConvTranspose weight (Cin, Cout, 2, 2) -> 4 stacked (Cout, Cin) blocks, q = 2*di+dj
    wt4 = jnp.transpose(p['wt'], (2, 3, 1, 0)).reshape(4 * Cs, Cs)     # (4Cs, Cs)
    # GroupNorm "group gram": gg[c1, c2] = 1 iff same contiguous group of size gsize
    ch = jnp.arange(Cs)
    gg = (ch[:, None] // gsize == ch[None, :] // gsize).astype(jnp.float32)

    # slab A: everything with Cs columns, row-stacked (offsets are Cs-aligned)
    slab_a = jnp.concatenate([ws, wv, wz, gg, wqk, wt4], axis=0)       # (10Cs, Cs)
    # slab B: wy + biases/GN affine packed as lanes
    vecs = jnp.stack([p['bs_conv'], p['gs_gamma'], p['gs_beta'],
                      p['by_conv'], p['gy_gamma'], p['gy_beta'],
                      p['bz_conv'], p['gz_gamma'], p['gz_beta'],
                      p['bt']], axis=1)                                # (Cs, 10)
    slab_b = jnp.concatenate([wy, vecs], axis=1)                       # (Cs, Cy + 10)

    BB = _batch_per_step(B)                                            # batch per grid step

    def kernel(yp_ref, sp_ref, sa_ref, sb_ref, o_ref):
        # weights, sliced once from the packed slabs (row offsets are multiples of Cs)
        ws_m = sa_ref[0 * Cs:1 * Cs, :]
        wv_m = sa_ref[1 * Cs:2 * Cs, :]
        wz_m = sa_ref[2 * Cs:3 * Cs, :]
        gg_m = sa_ref[3 * Cs:4 * Cs, :]
        wqk_m = sa_ref[4 * Cs:6 * Cs, :]
        sb = sb_ref[...]
        wy_m = sb[:, 0:Cy]
        col = lambda j: sb[:, Cy + j:Cy + j + 1]
        bs, gs_g, gs_b = col(0), col(1), col(2)
        by, gy_g, gy_b = col(3), col(4), col(5)
        bz, gz_g, gz_b = col(6), col(7), col(8)
        bt = col(9)

        def gn_relu(y, gamma, beta):
            """Single-pass GroupNorm(12, eps=1e-6) + ReLU on a channels-first (Cs, N)
            tile: pool [sum, sum of squares] with ONE group-gram matmul."""
            s1 = jnp.sum(y, axis=1, keepdims=True)                     # (Cs, 1)
            s2 = jnp.sum(y * y, axis=1, keepdims=True)                 # (Cs, 1)
            pooled = jnp.dot(gg_m, jnp.concatenate([s1, s2], axis=1),
                             preferred_element_type=jnp.float32) * inv_count   # (Cs, 2)
            mean = pooled[:, 0:1]
            var = pooled[:, 1:2] - mean * mean
            inv = lax.rsqrt(var + GN_EPS)
            return jnp.maximum((y - mean) * (inv * gamma) + beta, 0.0)

        # unrolled over the batch elements of this grid step: independent chains -> ILP
        for b in range(BB):
            # S branch: 1x1 conv + GN + ReLU on maxpooled S_pe            -> (Cs, N)
            s1 = gn_relu(jnp.dot(ws_m, sp_ref[b],
                                 preferred_element_type=jnp.float32) + bs, gs_g, gs_b)
            # Y branch: 1x1 conv + GN + ReLU                              -> (Cs, N)
            y1 = gn_relu(jnp.dot(wy_m, yp_ref[b],
                                 preferred_element_type=jnp.float32) + by, gy_g, gy_b)

            # cross attention (channels-first); 1/sqrt(Cs) already folded into Q weights
            qk = jnp.dot(wqk_m, y1, preferred_element_type=jnp.float32)       # (2Cs, N)
            q, k = qk[:Cs, :], qk[Cs:, :]
            v = jnp.dot(wv_m, s1, preferred_element_type=jnp.float32)         # (Cs, N)
            logits = lax.dot_general(q, k, (((0,), (0,)), ((), ())),
                                     preferred_element_type=jnp.float32)      # (N, N)[n,m]
            # torch nn.Softmax(dim=1) on (B, N, N)  ==  softmax over axis 0 here
            e = jnp.exp(logits - jnp.max(logits, axis=0, keepdims=True))
            a = e / jnp.sum(e, axis=0, keepdims=True)                         # exact divide
            x = lax.dot_general(v, a, (((1,), (1,)), ((), ())),
                                preferred_element_type=jnp.float32)           # (Cs, N)

            # output head: 1x1 conv + GN + ReLU
            z = gn_relu(jnp.dot(wz_m, x,
                                preferred_element_type=jnp.float32) + bz, gz_g, gz_b)

            # ConvTranspose2d(2, 2, stride=2): 4 per-offset matmuls, lane-concatenated
            # into a lane-dense (Cs, 4N) block; the (di,dj) de-interleave and the final
            # Z * S_pe multiply happen in the wrapper (tiny reshape/transpose).
            outs = [jnp.dot(sa_ref[(6 + qd) * Cs:(7 + qd) * Cs, :], z,
                            preferred_element_type=jnp.float32) for qd in range(4)]
            o_ref[b] = jnp.concatenate(outs, axis=1) + bt

    out_flat = pl.pallas_call(
        kernel,
        out_shape=jax.ShapeDtypeStruct((B, Cs, 4 * N), jnp.float32),
        grid=(B // BB,),
        in_specs=[
            pl.BlockSpec((BB, Cy, N), lambda g: (g, 0, 0)),        # Y + Ype, channels-first
            pl.BlockSpec((BB, Cs, N), lambda g: (g, 0, 0)),        # maxpool(S + Spe)
            pl.BlockSpec((10 * Cs, Cs), lambda g: (0, 0)),         # weight slab A
            pl.BlockSpec((Cs, Cy + 10), lambda g: (0, 0)),         # wy + biases/GN affine
        ],
        out_specs=pl.BlockSpec((BB, Cs, 4 * N), lambda g: (g, 0, 0)),
        compiler_params=pltpu.CompilerParams(
            dimension_semantics=("parallel",),       # on v7x (BB=1) the 2 TCs split the batch
            vmem_limit_bytes=32 * 1024 * 1024),      # footprint << limit on v5e/v6e/v7x
    )(yp, sp, slab_a, slab_b)

    # de-interleave the (di, dj) deconv offsets back to NCHW and apply the final Z * S_pe
    out = out_flat.reshape(B, Cs, 2, 2, Yh, Yw).transpose(0, 1, 4, 2, 5, 3)
    return out.reshape(B, Cs, Sh, Sw) * S_pe


# ----------------------------- params + pure-JAX reference -------------------------
def init_params(key, Cy, Cs):
    ks = jax.random.split(key, 11)
    u = lambda k, shape, s: jax.random.uniform(k, shape, jnp.float32, -s, s)
    return {
        # Sconv: Conv2d(Cs,Cs,1) weights stored as (Cin, Cout)
        'ws_conv': u(ks[0], (Cs, Cs), 1.0 / math.sqrt(Cs)),
        'bs_conv': u(ks[1], (Cs,), 1.0 / math.sqrt(Cs)),
        'gs_gamma': jnp.ones((Cs,), jnp.float32), 'gs_beta': jnp.zeros((Cs,), jnp.float32),
        # Yconv: Conv2d(Cy,Cs,1)
        'wy_conv': u(ks[2], (Cy, Cs), 1.0 / math.sqrt(Cy)),
        'by_conv': u(ks[3], (Cs,), 1.0 / math.sqrt(Cy)),
        'gy_gamma': jnp.ones((Cs,), jnp.float32), 'gy_beta': jnp.zeros((Cs,), jnp.float32),
        # MultiHeadDense weights (d, d); forward is x @ W (no transpose)
        'wq': u(ks[4], (Cs, Cs), 1.0 / math.sqrt(Cs)),
        'wk': u(ks[5], (Cs, Cs), 1.0 / math.sqrt(Cs)),
        'wv': u(ks[6], (Cs, Cs), 1.0 / math.sqrt(Cs)),
        # conv head: Conv2d(Cs,Cs,1) + GN + ReLU + ConvTranspose2d(Cs,Cs,2,2)
        'wz_conv': u(ks[7], (Cs, Cs), 1.0 / math.sqrt(Cs)),
        'bz_conv': u(ks[8], (Cs,), 1.0 / math.sqrt(Cs)),
        'gz_gamma': jnp.ones((Cs,), jnp.float32), 'gz_beta': jnp.zeros((Cs,), jnp.float32),
        'wt': u(ks[9], (Cs, Cs, 2, 2), 1.0 / math.sqrt(Cs * 4)),   # (Cin, Cout, kH, kW)
        'bt': u(ks[10], (Cs,), 1.0 / math.sqrt(Cs * 4)),
    }


def _ref_gn(x, gamma, beta):
    B, C, H, W = x.shape
    xg = x.reshape(B, NUM_GROUPS, C // NUM_GROUPS, H, W)
    mean = xg.mean(axis=(2, 3, 4), keepdims=True)
    var = xg.var(axis=(2, 3, 4), keepdims=True)
    xn = ((xg - mean) / jnp.sqrt(var + GN_EPS)).reshape(B, C, H, W)
    return xn * gamma[None, :, None, None] + beta[None, :, None, None]


def ref_forward(Y, S, p):
    B, Cy, Yh, Yw = Y.shape
    _, Cs, Sh, Sw = S.shape
    N = Yh * Yw
    S_pe = S + jnp.transpose(positional_encoding_2d(Cs, Sh, Sw), (2, 0, 1))[None]
    Y_pe = Y + jnp.transpose(positional_encoding_2d(Cy, Yh, Yw), (2, 0, 1))[None]

    Sp = S_pe.reshape(B, Cs, Sh // 2, 2, Sw // 2, 2).max(axis=(3, 5))
    s1 = jnp.einsum('bchw,co->bohw', Sp, p['ws_conv']) + p['bs_conv'][None, :, None, None]
    s1 = jnp.maximum(_ref_gn(s1, p['gs_gamma'], p['gs_beta']), 0.0)
    S1 = s1.reshape(B, Cs, N).transpose(0, 2, 1)

    y1 = jnp.einsum('bchw,co->bohw', Y_pe, p['wy_conv']) + p['by_conv'][None, :, None, None]
    y1 = jnp.maximum(_ref_gn(y1, p['gy_gamma'], p['gy_beta']), 0.0)
    Y1 = y1.reshape(B, Cs, N).transpose(0, 2, 1)

    Q = jnp.einsum('bnc,cd->bnd', Y1, p['wq'])
    K = jnp.einsum('bnc,cd->bnd', Y1, p['wk'])
    V = jnp.einsum('bnc,cd->bnd', S1, p['wv'])
    A = jax.nn.softmax(jnp.einsum('bnc,bmc->bnm', Q, K) / math.sqrt(Cs), axis=1)
    x = jnp.einsum('bnm,bmc->bnc', A, V).transpose(0, 2, 1).reshape(B, Cs, Yh, Yw)

    z = jnp.einsum('bchw,co->bohw', x, p['wz_conv']) + p['bz_conv'][None, :, None, None]
    z = jnp.maximum(_ref_gn(z, p['gz_gamma'], p['gz_beta']), 0.0)
    t = jnp.einsum('bcij,coxy->boixjy', z, p['wt']).reshape(B, Cs, Sh, Sw)
    t = t + p['bt'][None, :, None, None]
    return t * S_pe


# ----------------------------- main -------------------------------------------------
if __name__ == "__main__":
    key = jax.random.PRNGKey(0)
    k_y, k_s, k_p = jax.random.split(key, 3)

    B, Cy, Cs, Yh, Yw = 2, 16, 24, 8, 8          # Cs must be divisible by 12 (GroupNorm)
    Sh, Sw = 2 * Yh, 2 * Yw                      # S is 2x the spatial size of Y

    Y = jax.random.normal(k_y, (B, Cy, Yh, Yw), jnp.float32)
    S = jax.random.normal(k_s, (B, Cs, Sh, Sw), jnp.float32)
    params = init_params(k_p, Cy, Cs)

    fwd = jax.jit(multi_head_cross_attention_forward)
    out = jax.block_until_ready(fwd(Y, S, params))
    ref = jax.block_until_ready(ref_forward(Y, S, params))

    assert out.shape == (B, Cs, Sh, Sw)
    max_err = float(jnp.max(jnp.abs(out - ref)))
    assert jnp.allclose(out, ref, rtol=2e-3, atol=2e-3), max_err
    print("KERNEL_OK")
</pallas_src>

<mosaic_0001>
module attributes {stable_mosaic.version = 11 : i64} {
  func.func @kernel(%arg0: i32, %arg1: memref<2x16x64xf32, #tpu.memory_space<vmem>>, %arg2: memref<2x24x64xf32, #tpu.memory_space<vmem>>, %arg3: memref<240x24xf32, #tpu.memory_space<vmem>>, %arg4: memref<24x26xf32, #tpu.memory_space<vmem>>, %arg5: memref<2x24x256xf32, #tpu.memory_space<vmem>>) attributes {dimension_semantics = [#tpu.dimension_semantics<parallel>], iteration_bounds = array<i64: 1>, scalar_prefetch = 0 : i64, scratch_operands = 0 : i64, tpu.core_type = #tpu.core_type<tc>, window_params = [{transform_indices = @transform_0, window_bounds = array<i64: 2, 16, 64>}, {transform_indices = @transform_1, window_bounds = array<i64: 2, 24, 64>}, {pipeline_mode = #tpu.pipeline_mode<synchronous>, transform_indices = @transform_2, window_bounds = array<i64: 240, 24>}, {pipeline_mode = #tpu.pipeline_mode<synchronous>, transform_indices = @transform_3, window_bounds = array<i64: 24, 26>}, {transform_indices = @transform_4, window_bounds = array<i64: 2, 24, 256>}]} {
    %c0 = arith.constant 0 : index
    %c0_0 = arith.constant 0 : index
    %0 = vector.load %arg3[%c0, %c0_0] : memref<240x24xf32, #tpu.memory_space<vmem>>, vector<24x24xf32>
    %c24 = arith.constant 24 : index
    %c0_1 = arith.constant 0 : index
    %1 = vector.load %arg3[%c24, %c0_1] : memref<240x24xf32, #tpu.memory_space<vmem>>, vector<24x24xf32>
    %c48 = arith.constant 48 : index
    %c0_2 = arith.constant 0 : index
    %2 = vector.load %arg3[%c48, %c0_2] : memref<240x24xf32, #tpu.memory_space<vmem>>, vector<24x24xf32>
    %c72 = arith.constant 72 : index
    %c0_3 = arith.constant 0 : index
    %3 = vector.load %arg3[%c72, %c0_3] : memref<240x24xf32, #tpu.memory_space<vmem>>, vector<24x24xf32>
    %c96 = arith.constant 96 : index
    %c0_4 = arith.constant 0 : index
    %4 = vector.load %arg3[%c96, %c0_4] : memref<240x24xf32, #tpu.memory_space<vmem>>, vector<48x24xf32>
    %c0_5 = arith.constant 0 : index
    %c0_6 = arith.constant 0 : index
    %5 = vector.load %arg4[%c0_5, %c0_6] : memref<24x26xf32, #tpu.memory_space<vmem>>, vector<24x26xf32>
    %6 = vector.extract_strided_slice %5 {offsets = [0, 0], sizes = [24, 16], strides = [1, 1]} : vector<24x26xf32> to vector<24x16xf32>
    %7 = vector.extract_strided_slice %5 {offsets = [0, 16], sizes = [24, 1], strides = [1, 1]} : vector<24x26xf32> to vector<24x1xf32>
    %8 = vector.extract_strided_slice %5 {offsets = [0, 17], sizes = [24, 1], strides = [1, 1]} : vector<24x26xf32> to vector<24x1xf32>
    %9 = vector.extract_strided_slice %5 {offsets = [0, 18], sizes = [24, 1], strides = [1, 1]} : vector<24x26xf32> to vector<24x1xf32>
    %10 = vector.extract_strided_slice %5 {offsets = [0, 19], sizes = [24, 1], strides = [1, 1]} : vector<24x26xf32> to vector<24x1xf32>
    %11 = vector.extract_strided_slice %5 {offsets = [0, 20], sizes = [24, 1], strides = [1, 1]} : vector<24x26xf32> to vector<24x1xf32>
    %12 = vector.extract_strided_slice %5 {offsets = [0, 21], sizes = [24, 1], strides = [1, 1]} : vector<24x26xf32> to vector<24x1xf32>
    %13 = vector.extract_strided_slice %5 {offsets = [0, 22], sizes = [24, 1], strides = [1, 1]} : vector<24x26xf32> to vector<24x1xf32>
    %14 = vector.extract_strided_slice %5 {offsets = [0, 23], sizes = [24, 1], strides = [1, 1]} : vector<24x26xf32> to vector<24x1xf32>
    %15 = vector.extract_strided_slice %5 {offsets = [0, 24], sizes = [24, 1], strides = [1, 1]} : vector<24x26xf32> to vector<24x1xf32>
    %16 = vector.extract_strided_slice %5 {offsets = [0, 25], sizes = [24, 1], strides = [1, 1]} : vector<24x26xf32> to vector<24x1xf32>
    %c0_7 = arith.constant 0 : index
    %c0_8 = arith.constant 0 : index
    %c0_9 = arith.constant 0 : index
    %17 = vector.load %arg2[%c0_7, %c0_8, %c0_9] : memref<2x24x64xf32, #tpu.memory_space<vmem>>, vector<1x24x64xf32>
    %18 = vector.shape_cast %17 : vector<1x24x64xf32> to vector<24x64xf32>
    %cst = arith.constant dense<0.000000e+00> : vector<24x64xf32>
    %19 = tpu.matmul %0, %18, %cst {dimension_numbers = #tpu.dot_dimension_numbers<[1], [0], [0], [1], [0, 0, 1, 1], [], []>} : vector<24x24xf32>, vector<24x64xf32>, vector<24x64xf32> -> vector<24x64xf32>
    %20 = vector.broadcast %7 : vector<24x1xf32> to vector<24x64xf32>
    %21 = arith.addf %19, %20 : vector<24x64xf32>
    %cst_10 = arith.constant dense<0.000000e+00> : vector<24xf32>
    %22 = vector.multi_reduction <add>, %21, %cst_10 [1] : vector<24x64xf32> to vector<24xf32>
    %23 = vector.shape_cast %22 : vector<24xf32> to vector<24x1xf32>
    %24 = arith.mulf %21, %21 : vector<24x64xf32>
    %cst_11 = arith.constant dense<0.000000e+00> : vector<24xf32>
    %25 = vector.multi_reduction <add>, %24, %cst_11 [1] : vector<24x64xf32> to vector<24xf32>
    %26 = vector.shape_cast %25 : vector<24xf32> to vector<24x1xf32>
    %27 = tpu.concatenate %23, %26 in 1 : vector<24x1xf32>, vector<24x1xf32> -> vector<24x2xf32>
    %cst_12 = arith.constant dense<0.000000e+00> : vector<24x2xf32>
    %28 = tpu.matmul %3, %27, %cst_12 {dimension_numbers = #tpu.dot_dimension_numbers<[1], [0], [0], [1], [0, 0, 1, 1], [], []>} : vector<24x24xf32>, vector<24x2xf32>, vector<24x2xf32> -> vector<24x2xf32>
    %cst_13 = arith.constant 7.812500e-03 : f32
    %29 = vector.broadcast %cst_13 : f32 to vector<24x2xf32>
    %30 = arith.mulf %28, %29 : vector<24x2xf32>
    %31 = vector.extract_strided_slice %30 {offsets = [0, 0], sizes = [24, 1], strides = [1, 1]} : vector<24x2xf32> to vector<24x1xf32>
    %32 = vector.extract_strided_slice %30 {offsets = [0, 1], sizes = [24, 1], strides = [1, 1]} : vector<24x2xf32> to vector<24x1xf32>
    %33 = arith.mulf %31, %31 : vector<24x1xf32>
    %34 = arith.subf %32, %33 : vector<24x1xf32>
    %cst_14 = arith.constant 9.99999997E-7 : f32
    %35 = vector.broadcast %cst_14 : f32 to vector<24x1xf32>
    %36 = arith.addf %34, %35 : vector<24x1xf32>
    %37 = math.rsqrt %36 : vector<24x1xf32>
    %38 = vector.broadcast %31 : vector<24x1xf32> to vector<24x64xf32>
    %39 = arith.subf %21, %38 : vector<24x64xf32>
    %40 = arith.mulf %37, %8 : vector<24x1xf32>
    %41 = vector.broadcast %40 : vector<24x1xf32> to vector<24x64xf32>
    %42 = arith.mulf %39, %41 : vector<24x64xf32>
    %43 = vector.broadcast %9 : vector<24x1xf32> to vector<24x64xf32>
    %44 = arith.addf %42, %43 : vector<24x64xf32>
    %cst_15 = arith.constant 0.000000e+00 : f32
    %45 = vector.broadcast %cst_15 : f32 to vector<24x64xf32>
    %46 = arith.maximumf %44, %45 : vector<24x64xf32>
    %c0_16 = arith.constant 0 : index
    %c0_17 = arith.constant 0 : index
    %c0_18 = arith.constant 0 : index
    %47 = vector.load %arg1[%c0_16, %c0_17, %c0_18] : memref<2x16x64xf32, #tpu.memory_space<vmem>>, vector<1x16x64xf32>
    %48 = vector.shape_cast %47 : vector<1x16x64xf32> to vector<16x64xf32>
    %cst_19 = arith.constant dense<0.000000e+00> : vector<24x64xf32>
    %49 = tpu.matmul %6, %48, %cst_19 {dimension_numbers = #tpu.dot_dimension_numbers<[1], [0], [0], [1], [0, 0, 1, 1], [], []>} : vector<24x16xf32>, vector<16x64xf32>, vector<24x64xf32> -> vector<24x64xf32>
    %50 = vector.broadcast %10 : vector<24x1xf32> to vector<24x64xf32>
    %51 = arith.addf %49, %50 : vector<24x64xf32>
    %cst_20 = arith.constant dense<0.000000e+00> : vector<24xf32>
    %52 = vector.multi_reduction <add>, %51, %cst_20 [1] : vector<24x64xf32> to vector<24xf32>
    %53 = vector.shape_cast %52 : vector<24xf32> to vector<24x1xf32>
    %54 = arith.mulf %51, %51 : vector<24x64xf32>
    %cst_21 = arith.constant dense<0.000000e+00> : vector<24xf32>
    %55 = vector.multi_reduction <add>, %54, %cst_21 [1] : vector<24x64xf32> to vector<24xf32>
    %56 = vector.shape_cast %55 : vector<24xf32> to vector<24x1xf32>
    %57 = tpu.concatenate %53, %56 in 1 : vector<24x1xf32>, vector<24x1xf32> -> vector<24x2xf32>
    %cst_22 = arith.constant dense<0.000000e+00> : vector<24x2xf32>
    %58 = tpu.matmul %3, %57, %cst_22 {dimension_numbers = #tpu.dot_dimension_numbers<[1], [0], [0], [1], [0, 0, 1, 1], [], []>} : vector<24x24xf32>, vector<24x2xf32>, vector<24x2xf32> -> vector<24x2xf32>
    %cst_23 = arith.constant 7.812500e-03 : f32
    %59 = vector.broadcast %cst_23 : f32 to vector<24x2xf32>
    %60 = arith.mulf %58, %59 : vector<24x2xf32>
    %61 = vector.extract_strided_slice %60 {offsets = [0, 0], sizes = [24, 1], strides = [1, 1]} : vector<24x2xf32> to vector<24x1xf32>
    %62 = vector.extract_strided_slice %60 {offsets = [0, 1], sizes = [24, 1], strides = [1, 1]} : vector<24x2xf32> to vector<24x1xf32>
    %63 = arith.mulf %61, %61 : vector<24x1xf32>
    %64 = arith.subf %62, %63 : vector<24x1xf32>
    %cst_24 = arith.constant 9.99999997E-7 : f32
    %65 = vector.broadcast %cst_24 : f32 to vector<24x1xf32>
    %66 = arith.addf %64, %65 : vector<24x1xf32>
    %67 = math.rsqrt %66 : vector<24x1xf32>
    %68 = vector.broadcast %61 : vector<24x1xf32> to vector<24x64xf32>
    %69 = arith.subf %51, %68 : vector<24x64xf32>
    %70 = arith.mulf %67, %11 : vector<24x1xf32>
    %71 = vector.broadcast %70 : vector<24x1xf32> to vector<24x64xf32>
    %72 = arith.mulf %69, %71 : vector<24x64xf32>
    %73 = vector.broadcast %12 : vector<24x1xf32> to vector<24x64xf32>
    %74 = arith.addf %72, %73 : vector<24x64xf32>
    %cst_25 = arith.constant 0.000000e+00 : f32
    %75 = vector.broadcast %cst_25 : f32 to vector<24x64xf32>
    %76 = arith.maximumf %74, %75 : vector<24x64xf32>
    %cst_26 = arith.constant dense<0.000000e+00> : vector<48x64xf32>
    %77 = tpu.matmul %4, %76, %cst_26 {dimension_numbers = #tpu.dot_dimension_numbers<[1], [0], [0], [1], [0, 0, 1, 1], [], []>} : vector<48x24xf32>, vector<24x64xf32>, vector<48x64xf32> -> vector<48x64xf32>
    %78 = vector.extract_strided_slice %77 {offsets = [0, 0], sizes = [24, 64], strides = [1, 1]} : vector<48x64xf32> to vector<24x64xf32>
    %79 = vector.extract_strided_slice %77 {offsets = [24, 0], sizes = [24, 64], strides = [1, 1]} : vector<48x64xf32> to vector<24x64xf32>
    %cst_27 = arith.constant dense<0.000000e+00> : vector<24x64xf32>
    %80 = tpu.matmul %1, %46, %cst_27 {dimension_numbers = #tpu.dot_dimension_numbers<[1], [0], [0], [1], [0, 0, 1, 1], [], []>} : vector<24x24xf32>, vector<24x64xf32>, vector<24x64xf32> -> vector<24x64xf32>
    %cst_28 = arith.constant dense<0.000000e+00> : vector<64x64xf32>
    %81 = tpu.matmul %78, %79, %cst_28 {dimension_numbers = #tpu.dot_dimension_numbers<[0], [0], [1], [1], [0, 1, 1, 1], [], []>} : vector<24x64xf32>, vector<24x64xf32>, vector<64x64xf32> -> vector<64x64xf32>
    %cst_29 = arith.constant dense<0xFF800000> : vector<64xf32>
    %82 = vector.multi_reduction <maximumf>, %81, %cst_29 [0] : vector<64x64xf32> to vector<64xf32>
    %83 = vector.shape_cast %82 : vector<64xf32> to vector<1x64xf32>
    %84 = vector.broadcast %83 : vector<1x64xf32> to vector<64x64xf32>
    %85 = arith.subf %81, %84 : vector<64x64xf32>
    %86 = math.exp %85 : vector<64x64xf32>
    %cst_30 = arith.constant dense<0.000000e+00> : vector<64xf32>
    %87 = vector.multi_reduction <add>, %86, %cst_30 [0] : vector<64x64xf32> to vector<64xf32>
    %88 = vector.shape_cast %87 : vector<64xf32> to vector<1x64xf32>
    %89 = vector.broadcast %88 : vector<1x64xf32> to vector<64x64xf32>
    %90 = arith.divf %86, %89 : vector<64x64xf32>
    %cst_31 = arith.constant dense<0.000000e+00> : vector<24x64xf32>
    %91 = tpu.matmul %80, %90, %cst_31 {dimension_numbers = #tpu.dot_dimension_numbers<[1], [1], [0], [0], [0, 0, 1, 0], [], []>} : vector<24x64xf32>, vector<64x64xf32>, vector<24x64xf32> -> vector<24x64xf32>
    %cst_32 = arith.constant dense<0.000000e+00> : vector<24x64xf32>
    %92 = tpu.matmul %2, %91, %cst_32 {dimension_numbers = #tpu.dot_dimension_numbers<[1], [0], [0], [1], [0, 0, 1, 1], [], []>} : vector<24x24xf32>, vector<24x64xf32>, vector<24x64xf32> -> vector<24x64xf32>
    %93 = vector.broadcast %13 : vector<24x1xf32> to vector<24x64xf32>
    %94 = arith.addf %92, %93 : vector<24x64xf32>
    %cst_33 = arith.constant dense<0.000000e+00> : vector<24xf32>
    %95 = vector.multi_reduction <add>, %94, %cst_33 [1] : vector<24x64xf32> to vector<24xf32>
    %96 = vector.shape_cast %95 : vector<24xf32> to vector<24x1xf32>
    %97 = arith.mulf %94, %94 : vector<24x64xf32>
    %cst_34 = arith.constant dense<0.000000e+00> : vector<24xf32>
    %98 = vector.multi_reduction <add>, %97, %cst_34 [1] : vector<24x64xf32> to vector<24xf32>
    %99 = vector.shape_cast %98 : vector<24xf32> to vector<24x1xf32>
    %100 = tpu.concatenate %96, %99 in 1 : vector<24x1xf32>, vector<24x1xf32> -> vector<24x2xf32>
    %cst_35 = arith.constant dense<0.000000e+00> : vector<24x2xf32>
    %101 = tpu.matmul %3, %100, %cst_35 {dimension_numbers = #tpu.dot_dimension_numbers<[1], [0], [0], [1], [0, 0, 1, 1], [], []>} : vector<24x24xf32>, vector<24x2xf32>, vector<24x2xf32> -> vector<24x2xf32>
    %cst_36 = arith.constant 7.812500e-03 : f32
    %102 = vector.broadcast %cst_36 : f32 to vector<24x2xf32>
    %103 = arith.mulf %101, %102 : vector<24x2xf32>
    %104 = vector.extract_strided_slice %103 {offsets = [0, 0], sizes = [24, 1], strides = [1, 1]} : vector<24x2xf32> to vector<24x1xf32>
    %105 = vector.extract_strided_slice %103 {offsets = [0, 1], sizes = [24, 1], strides = [1, 1]} : vector<24x2xf32> to vector<24x1xf32>
    %106 = arith.mulf %104, %104 : vector<24x1xf32>
    %107 = arith.subf %105, %106 : vector<24x1xf32>
    %cst_37 = arith.constant 9.99999997E-7 : f32
    %108 = vector.broadcast %cst_37 : f32 to vector<24x1xf32>
    %109 = arith.addf %107, %108 : vector<24x1xf32>
    %110 = math.rsqrt %109 : vector<24x1xf32>
    %111 = vector.broadcast %104 : vector<24x1xf32> to vector<24x64xf32>
    %112 = arith.subf %94, %111 : vector<24x64xf32>
    %113 = arith.mulf %110, %14 : vector<24x1xf32>
    %114 = vector.broadcast %113 : vector<24x1xf32> to vector<24x64xf32>
    %115 = arith.mulf %112, %114 : vector<24x64xf32>
    %116 = vector.broadcast %15 : vector<24x1xf32> to vector<24x64xf32>
    %117 = arith.addf %115, %116 : vector<24x64xf32>
    %cst_38 = arith.constant 0.000000e+00 : f32
    %118 = vector.broadcast %cst_38 : f32 to vector<24x64xf32>
    %119 = arith.maximumf %117, %118 : vector<24x64xf32>
    %c144 = arith.constant 144 : index
    %c0_39 = arith.constant 0 : index
    %120 = vector.load %arg3[%c144, %c0_39] : memref<240x24xf32, #tpu.memory_space<vmem>>, vector<24x24xf32>
    %cst_40 = arith.constant dense<0.000000e+00> : vector<24x64xf32>
    %121 = tpu.matmul %120, %119, %cst_40 {dimension_numbers = #tpu.dot_dimension_numbers<[1], [0], [0], [1], [0, 0, 1, 1], [], []>} : vector<24x24xf32>, vector<24x64xf32>, vector<24x64xf32> -> vector<24x64xf32>
    %c168 = arith.constant 168 : index
    %c0_41 = arith.constant 0 : index
    %122 = vector.load %arg3[%c168, %c0_41] : memref<240x24xf32, #tpu.memory_space<vmem>>, vector<24x24xf32>
    %cst_42 = arith.constant dense<0.000000e+00> : vector<24x64xf32>
    %123 = tpu.matmul %122, %119, %cst_42 {dimension_numbers = #tpu.dot_dimension_numbers<[1], [0], [0], [1], [0, 0, 1, 1], [], []>} : vector<24x24xf32>, vector<24x64xf32>, vector<24x64xf32> -> vector<24x64xf32>
    %c192 = arith.constant 192 : index
    %c0_43 = arith.constant 0 : index
    %124 = vector.load %arg3[%c192, %c0_43] : memref<240x24xf32, #tpu.memory_space<vmem>>, vector<24x24xf32>
    %cst_44 = arith.constant dense<0.000000e+00> : vector<24x64xf32>
    %125 = tpu.matmul %124, %119, %cst_44 {dimension_numbers = #tpu.dot_dimension_numbers<[1], [0], [0], [1], [0, 0, 1, 1], [], []>} : vector<24x24xf32>, vector<24x64xf32>, vector<24x64xf32> -> vector<24x64xf32>
    %c216 = arith.constant 216 : index
    %c0_45 = arith.constant 0 : index
    %126 = vector.load %arg3[%c216, %c0_45] : memref<240x24xf32, #tpu.memory_space<vmem>>, vector<24x24xf32>
    %cst_46 = arith.constant dense<0.000000e+00> : vector<24x64xf32>
    %127 = tpu.matmul %126, %119, %cst_46 {dimension_numbers = #tpu.dot_dimension_numbers<[1], [0], [0], [1], [0, 0, 1, 1], [], []>} : vector<24x24xf32>, vector<24x64xf32>, vector<24x64xf32> -> vector<24x64xf32>
    %128 = tpu.concatenate %121, %123, %125, %127 in 1 : vector<24x64xf32>, vector<24x64xf32>, vector<24x64xf32>, vector<24x64xf32> -> vector<24x256xf32>
    %129 = vector.broadcast %16 : vector<24x1xf32> to vector<24x256xf32>
    %130 = arith.addf %128, %129 : vector<24x256xf32>
    %c0_47 = arith.constant 0 : index
    %c0_48 = arith.constant 0 : index
    %c0_49 = arith.constant 0 : index
    %131 = vector.load %arg5[%c0_47, %c0_48, %c0_49] : memref<2x24x256xf32, #tpu.memory_space<vmem>>, vector<1x24x256xf32>
    %132 = vector.shape_cast %131 : vector<1x24x256xf32> to vector<24x256xf32>
    %133 = vector.shape_cast %130 : vector<24x256xf32> to vector<1x24x256xf32>
    tpu.vector_store %arg5[%c0_47, %c0_48, %c0_49], %133 {strides = array<i32>} : memref<2x24x256xf32, #tpu.memory_space<vmem>>, vector<1x24x256xf32>,
    %c1 = arith.constant 1 : index
    %c0_50 = arith.constant 0 : index
    %c0_51 = arith.constant 0 : index
    %134 = vector.load %arg2[%c1, %c0_50, %c0_51] : memref<2x24x64xf32, #tpu.memory_space<vmem>>, vector<1x24x64xf32>
    %135 = vector.shape_cast %134 : vector<1x24x64xf32> to vector<24x64xf32>
    %cst_52 = arith.constant dense<0.000000e+00> : vector<24x64xf32>
    %136 = tpu.matmul %0, %135, %cst_52 {dimension_numbers = #tpu.dot_dimension_numbers<[1], [0], [0], [1], [0, 0, 1, 1], [], []>} : vector<24x24xf32>, vector<24x64xf32>, vector<24x64xf32> -> vector<24x64xf32>
    %137 = vector.broadcast %7 : vector<24x1xf32> to vector<24x64xf32>
    %138 = arith.addf %136, %137 : vector<24x64xf32>
    %cst_53 = arith.constant dense<0.000000e+00> : vector<24xf32>
    %139 = vector.multi_reduction <add>, %138, %cst_53 [1] : vector<24x64xf32> to vector<24xf32>
    %140 = vector.shape_cast %139 : vector<24xf32> to vector<24x1xf32>
    %141 = arith.mulf %138, %138 : vector<24x64xf32>
    %cst_54 = arith.constant dense<0.000000e+00> : vector<24xf32>
    %142 = vector.multi_reduction <add>, %141, %cst_54 [1] : vector<24x64xf32> to vector<24xf32>
    %143 = vector.shape_cast %142 : vector<24xf32> to vector<24x1xf32>
    %144 = tpu.concatenate %140, %143 in 1 : vector<24x1xf32>, vector<24x1xf32> -> vector<24x2xf32>
    %cst_55 = arith.constant dense<0.000000e+00> : vector<24x2xf32>
    %145 = tpu.matmul %3, %144, %cst_55 {dimension_numbers = #tpu.dot_dimension_numbers<[1], [0], [0], [1], [0, 0, 1, 1], [], []>} : vector<24x24xf32>, vector<24x2xf32>, vector<24x2xf32> -> vector<24x2xf32>
    %cst_56 = arith.constant 7.812500e-03 : f32
    %146 = vector.broadcast %cst_56 : f32 to vector<24x2xf32>
    %147 = arith.mulf %145, %146 : vector<24x2xf32>
    %148 = vector.extract_strided_slice %147 {offsets = [0, 0], sizes = [24, 1], strides = [1, 1]} : vector<24x2xf32> to vector<24x1xf32>
    %149 = vector.extract_strided_slice %147 {offsets = [0, 1], sizes = [24, 1], strides = [1, 1]} : vector<24x2xf32> to vector<24x1xf32>
    %150 = arith.mulf %148, %148 : vector<24x1xf32>
    %151 = arith.subf %149, %150 : vector<24x1xf32>
    %cst_57 = arith.constant 9.99999997E-7 : f32
    %152 = vector.broadcast %cst_57 : f32 to vector<24x1xf32>
    %153 = arith.addf %151, %152 : vector<24x1xf32>
    %154 = math.rsqrt %153 : vector<24x1xf32>
    %155 = vector.broadcast %148 : vector<24x1xf32> to vector<24x64xf32>
    %156 = arith.subf %138, %155 : vector<24x64xf32>
    %157 = arith.mulf %154, %8 : vector<24x1xf32>
    %158 = vector.broadcast %157 : vector<24x1xf32> to vector<24x64xf32>
    %159 = arith.mulf %156, %158 : vector<24x64xf32>
    %160 = vector.broadcast %9 : vector<24x1xf32> to vector<24x64xf32>
    %161 = arith.addf %159, %160 : vector<24x64xf32>
    %cst_58 = arith.constant 0.000000e+00 : f32
    %162 = vector.broadcast %cst_58 : f32 to vector<24x64xf32>
    %163 = arith.maximumf %161, %162 : vector<24x64xf32>
    %c1_59 = arith.constant 1 : index
    %c0_60 = arith.constant 0 : index
    %c0_61 = arith.constant 0 : index
    %164 = vector.load %arg1[%c1_59, %c0_60, %c0_61] : memref<2x16x64xf32, #tpu.memory_space<vmem>>, vector<1x16x64xf32>
    %165 = vector.shape_cast %164 : vector<1x16x64xf32> to vector<16x64xf32>
    %cst_62 = arith.constant dense<0.000000e+00> : vector<24x64xf32>
    %166 = tpu.matmul %6, %165, %cst_62 {dimension_numbers = #tpu.dot_dimension_numbers<[1], [0], [0], [1], [0, 0, 1, 1], [], []>} : vector<24x16xf32>, vector<16x64xf32>, vector<24x64xf32> -> vector<24x64xf32>
    %167 = vector.broadcast %10 : vector<24x1xf32> to vector<24x64xf32>
    %168 = arith.addf %166, %167 : vector<24x64xf32>
    %cst_63 = arith.constant dense<0.000000e+00> : vector<24xf32>
    %169 = vector.multi_reduction <add>, %168, %cst_63 [1] : vector<24x64xf32> to vector<24xf32>
    %170 = vector.shape_cast %169 : vector<24xf32> to vector<24x1xf32>
    %171 = arith.mulf %168, %168 : vector<24x64xf32>
    %cst_64 = arith.constant dense<0.000000e+00> : vector<24xf32>
    %172 = vector.multi_reduction <add>, %171, %cst_64 [1] : vector<24x64xf32> to vector<24xf32>
    %173 = vector.shape_cast %172 : vector<24xf32> to vector<24x1xf32>
    %174 = tpu.concatenate %170, %173 in 1 : vector<24x1xf32>, vector<24x1xf32> -> vector<24x2xf32>
    %cst_65 = arith.constant dense<0.000000e+00> : vector<24x2xf32>
    %175 = tpu.matmul %3, %174, %cst_65 {dimension_numbers = #tpu.dot_dimension_numbers<[1], [0], [0], [1], [0, 0, 1, 1], [], []>} : vector<24x24xf32>, vector<24x2xf32>, vector<24x2xf32> -> vector<24x2xf32>
    %cst_66 = arith.constant 7.812500e-03 : f32
    %176 = vector.broadcast %cst_66 : f32 to vector<24x2xf32>
    %177 = arith.mulf %175, %176 : vector<24x2xf32>
    %178 = vector.extract_strided_slice %177 {offsets = [0, 0], sizes = [24, 1], strides = [1, 1]} : vector<24x2xf32> to vector<24x1xf32>
    %179 = vector.extract_strided_slice %177 {offsets = [0, 1], sizes = [24, 1], strides = [1, 1]} : vector<24x2xf32> to vector<24x1xf32>
    %180 = arith.mulf %178, %178 : vector<24x1xf32>
    %181 = arith.subf %179, %180 : vector<24x1xf32>
    %cst_67 = arith.constant 9.99999997E-7 : f32
    %182 = vector.broadcast %cst_67 : f32 to vector<24x1xf32>
    %183 = arith.addf %181, %182 : vector<24x1xf32>
    %184 = math.rsqrt %183 : vector<24x1xf32>
    %185 = vector.broadcast %178 : vector<24x1xf32> to vector<24x64xf32>
    %186 = arith.subf %168, %185 : vector<24x64xf32>
    %187 = arith.mulf %184, %11 : vector<24x1xf32>
    %188 = vector.broadcast %187 : vector<24x1xf32> to vector<24x64xf32>
    %189 = arith.mulf %186, %188 : vector<24x64xf32>
    %190 = vector.broadcast %12 : vector<24x1xf32> to vector<24x64xf32>
    %191 = arith.addf %189, %190 : vector<24x64xf32>
    %cst_68 = arith.constant 0.000000e+00 : f32
    %192 = vector.broadcast %cst_68 : f32 to vector<24x64xf32>
    %193 = arith.maximumf %191, %192 : vector<24x64xf32>
    %cst_69 = arith.constant dense<0.000000e+00> : vector<48x64xf32>
    %194 = tpu.matmul %4, %193, %cst_69 {dimension_numbers = #tpu.dot_dimension_numbers<[1], [0], [0], [1], [0, 0, 1, 1], [], []>} : vector<48x24xf32>, vector<24x64xf32>, vector<48x64xf32> -> vector<48x64xf32>
    %195 = vector.extract_strided_slice %194 {offsets = [0, 0], sizes = [24, 64], strides = [1, 1]} : vector<48x64xf32> to vector<24x64xf32>
    %196 = vector.extract_strided_slice %194 {offsets = [24, 0], sizes = [24, 64], strides = [1, 1]} : vector<48x64xf32> to vector<24x64xf32>
    %cst_70 = arith.constant dense<0.000000e+00> : vector<24x64xf32>
    %197 = tpu.matmul %1, %163, %cst_70 {dimension_numbers = #tpu.dot_dimension_numbers<[1], [0], [0], [1], [0, 0, 1, 1], [], []>} : vector<24x24xf32>, vector<24x64xf32>, vector<24x64xf32> -> vector<24x64xf32>
    %cst_71 = arith.constant dense<0.000000e+00> : vector<64x64xf32>
    %198 = tpu.matmul %195, %196, %cst_71 {dimension_numbers = #tpu.dot_dimension_numbers<[0], [0], [1], [1], [0, 1, 1, 1], [], []>} : vector<24x64xf32>, vector<24x64xf32>, vector<64x64xf32> -> vector<64x64xf32>
    %cst_72 = arith.constant dense<0xFF800000> : vector<64xf32>
    %199 = vector.multi_reduction <maximumf>, %198, %cst_72 [0] : vector<64x64xf32> to vector<64xf32>
    %200 = vector.shape_cast %199 : vector<64xf32> to vector<1x64xf32>
    %201 = vector.broadcast %200 : vector<1x64xf32> to vector<64x64xf32>
    %202 = arith.subf %198, %201 : vector<64x64xf32>
    %203 = math.exp %202 : vector<64x64xf32>
    %cst_73 = arith.constant dense<0.000000e+00> : vector<64xf32>
    %204 = vector.multi_reduction <add>, %203, %cst_73 [0] : vector<64x64xf32> to vector<64xf32>
    %205 = vector.shape_cast %204 : vector<64xf32> to vector<1x64xf32>
    %206 = vector.broadcast %205 : vector<1x64xf32> to vector<64x64xf32>
    %207 = arith.divf %203, %206 : vector<64x64xf32>
    %cst_74 = arith.constant dense<0.000000e+00> : vector<24x64xf32>
    %208 = tpu.matmul %197, %207, %cst_74 {dimension_numbers = #tpu.dot_dimension_numbers<[1], [1], [0], [0], [0, 0, 1, 0], [], []>} : vector<24x64xf32>, vector<64x64xf32>, vector<24x64xf32> -> vector<24x64xf32>
    %cst_75 = arith.constant dense<0.000000e+00> : vector<24x64xf32>
    %209 = tpu.matmul %2, %208, %cst_75 {dimension_numbers = #tpu.dot_dimension_numbers<[1], [0], [0], [1], [0, 0, 1, 1], [], []>} : vector<24x24xf32>, vector<24x64xf32>, vector<24x64xf32> -> vector<24x64xf32>
    %210 = vector.broadcast %13 : vector<24x1xf32> to vector<24x64xf32>
    %211 = arith.addf %209, %210 : vector<24x64xf32>
    %cst_76 = arith.constant dense<0.000000e+00> : vector<24xf32>
    %212 = vector.multi_reduction <add>, %211, %cst_76 [1] : vector<24x64xf32> to vector<24xf32>
    %213 = vector.shape_cast %212 : vector<24xf32> to vector<24x1xf32>
    %214 = arith.mulf %211, %211 : vector<24x64xf32>
    %cst_77 = arith.constant dense<0.000000e+00> : vector<24xf32>
    %215 = vector.multi_reduction <add>, %214, %cst_77 [1] : vector<24x64xf32> to vector<24xf32>
    %216 = vector.shape_cast %215 : vector<24xf32> to vector<24x1xf32>
    %217 = tpu.concatenate %213, %216 in 1 : vector<24x1xf32>, vector<24x1xf32> -> vector<24x2xf32>
    %cst_78 = arith.constant dense<0.000000e+00> : vector<24x2xf32>
    %218 = tpu.matmul %3, %217, %cst_78 {dimension_numbers = #tpu.dot_dimension_numbers<[1], [0], [0], [1], [0, 0, 1, 1], [], []>} : vector<24x24xf32>, vector<24x2xf32>, vector<24x2xf32> -> vector<24x2xf32>
    %cst_79 = arith.constant 7.812500e-03 : f32
    %219 = vector.broadcast %cst_79 : f32 to vector<24x2xf32>
    %220 = arith.mulf %218, %219 : vector<24x2xf32>
    %221 = vector.extract_strided_slice %220 {offsets = [0, 0], sizes = [24, 1], strides = [1, 1]} : vector<24x2xf32> to vector<24x1xf32>
    %222 = vector.extract_strided_slice %220 {offsets = [0, 1], sizes = [24, 1], strides = [1, 1]} : vector<24x2xf32> to vector<24x1xf32>
    %223 = arith.mulf %221, %221 : vector<24x1xf32>
    %224 = arith.subf %222, %223 : vector<24x1xf32>
    %cst_80 = arith.constant 9.99999997E-7 : f32
    %225 = vector.broadcast %cst_80 : f32 to vector<24x1xf32>
    %226 = arith.addf %224, %225 : vector<24x1xf32>
    %227 = math.rsqrt %226 : vector<24x1xf32>
    %228 = vector.broadcast %221 : vector<24x1xf32> to vector<24x64xf32>
    %229 = arith.subf %211, %228 : vector<24x64xf32>
    %230 = arith.mulf %227, %14 : vector<24x1xf32>
    %231 = vector.broadcast %230 : vector<24x1xf32> to vector<24x64xf32>
    %232 = arith.mulf %229, %231 : vector<24x64xf32>
    %233 = vector.broadcast %15 : vector<24x1xf32> to vector<24x64xf32>
    %234 = arith.addf %232, %233 : vector<24x64xf32>
    %cst_81 = arith.constant 0.000000e+00 : f32
    %235 = vector.broadcast %cst_81 : f32 to vector<24x64xf32>
    %236 = arith.maximumf %234, %235 : vector<24x64xf32>
    %c144_82 = arith.constant 144 : index
    %c0_83 = arith.constant 0 : index
    %237 = vector.load %arg3[%c144_82, %c0_83] : memref<240x24xf32, #tpu.memory_space<vmem>>, vector<24x24xf32>
    %cst_84 = arith.constant dense<0.000000e+00> : vector<24x64xf32>
    %238 = tpu.matmul %237, %236, %cst_84 {dimension_numbers = #tpu.dot_dimension_numbers<[1], [0], [0], [1], [0, 0, 1, 1], [], []>} : vector<24x24xf32>, vector<24x64xf32>, vector<24x64xf32> -> vector<24x64xf32>
    %c168_85 = arith.constant 168 : index
    %c0_86 = arith.constant 0 : index
    %239 = vector.load %arg3[%c168_85, %c0_86] : memref<240x24xf32, #tpu.memory_space<vmem>>, vector<24x24xf32>
    %cst_87 = arith.constant dense<0.000000e+00> : vector<24x64xf32>
    %240 = tpu.matmul %239, %236, %cst_87 {dimension_numbers = #tpu.dot_dimension_numbers<[1], [0], [0], [1], [0, 0, 1, 1], [], []>} : vector<24x24xf32>, vector<24x64xf32>, vector<24x64xf32> -> vector<24x64xf32>
    %c192_88 = arith.constant 192 : index
    %c0_89 = arith.constant 0 : index
    %241 = vector.load %arg3[%c192_88, %c0_89] : memref<240x24xf32, #tpu.memory_space<vmem>>, vector<24x24xf32>
    %cst_90 = arith.constant dense<0.000000e+00> : vector<24x64xf32>
    %242 = tpu.matmul %241, %236, %cst_90 {dimension_numbers = #tpu.dot_dimension_numbers<[1], [0], [0], [1], [0, 0, 1, 1], [], []>} : vector<24x24xf32>, vector<24x64xf32>, vector<24x64xf32> -> vector<24x64xf32>
    %c216_91 = arith.constant 216 : index
    %c0_92 = arith.constant 0 : index
    %243 = vector.load %arg3[%c216_91, %c0_92] : memref<240x24xf32, #tpu.memory_space<vmem>>, vector<24x24xf32>
    %cst_93 = arith.constant dense<0.000000e+00> : vector<24x64xf32>
    %244 = tpu.matmul %243, %236, %cst_93 {dimension_numbers = #tpu.dot_dimension_numbers<[1], [0], [0], [1], [0, 0, 1, 1], [], []>} : vector<24x24xf32>, vector<24x64xf32>, vector<24x64xf32> -> vector<24x64xf32>
    %245 = tpu.concatenate %238, %240, %242, %244 in 1 : vector<24x64xf32>, vector<24x64xf32>, vector<24x64xf32>, vector<24x64xf32> -> vector<24x256xf32>
    %246 = vector.broadcast %16 : vector<24x1xf32> to vector<24x256xf32>
    %247 = arith.addf %245, %246 : vector<24x256xf32>
    %c1_94 = arith.constant 1 : index
    %c0_95 = arith.constant 0 : index
    %c0_96 = arith.constant 0 : index
    %248 = vector.load %arg5[%c1_94, %c0_95, %c0_96] : memref<2x24x256xf32, #tpu.memory_space<vmem>>, vector<1x24x256xf32>
    %249 = vector.shape_cast %248 : vector<1x24x256xf32> to vector<24x256xf32>
    %250 = vector.shape_cast %247 : vector<24x256xf32> to vector<1x24x256xf32>
    tpu.vector_store %arg5[%c1_94, %c0_95, %c0_96], %250 {strides = array<i32>} : memref<2x24x256xf32, #tpu.memory_space<vmem>>, vector<1x24x256xf32>,
    return
  }
  func.func @transform_0(%arg0: i32) -> (i32, i32, i32) {
    %c0_i32 = arith.constant 0 : i32
    %c0_i32_0 = arith.constant 0 : i32
    %c0_i32_1 = arith.constant 0 : i32
    return %arg0, %c0_i32, %c0_i32_0 : i32, i32, i32
  }
  func.func @transform_1(%arg0: i32) -> (i32, i32, i32) {
    %c0_i32 = arith.constant 0 : i32
    %c0_i32_0 = arith.constant 0 : i32
    %c0_i32_1 = arith.constant 0 : i32
    return %arg0, %c0_i32, %c0_i32_0 : i32, i32, i32
  }
  func.func @transform_2(%arg0: i32) -> (i32, i32) {
    %c0_i32 = arith.constant 0 : i32
    %c0_i32_0 = arith.constant 0 : i32
    %c0_i32_1 = arith.constant 0 : i32
    return %c0_i32, %c0_i32_0 : i32, i32
  }
  func.func @transform_3(%arg0: i32) -> (i32, i32) {
    %c0_i32 = arith.constant 0 : i32
    %c0_i32_0 = arith.constant 0 : i32
    %c0_i32_1 = arith.constant 0 : i32
    return %c0_i32, %c0_i32_0 : i32, i32
  }
  func.func @transform_4(%arg0: i32) -> (i32, i32, i32) {
    %c0_i32 = arith.constant 0 : i32
    %c0_i32_0 = arith.constant 0 : i32
    %c0_i32_1 = arith.constant 0 : i32
    return %arg0, %c0_i32, %c0_i32_0 : i32, i32, i32
  }
}

</mosaic_0001>

<llo_original>
// kernel: multi_head_cross_attention_forward.1
$region0: #{multi_head_cross_attention_forward.1}
  #allocation0 [shape = 'u32[]', space=smem, size = 0x4, offset = 0x4, fixed_abs, tag = 'smem constant byte address 0x4 - core index']
  #allocation1 [shape = 'u32[144,128]{1,0:T(1,128)}', space=vmem, size = 0x12000, scoped, tag = 'internal scratch']
  %s0 = inlined_call_operand.vmem [shape: f32[2,16,64], index: 0, kind: input, shape index: {}]
  %s1 = inlined_call_operand.vmem [shape: f32[2,24,64], index: 1, kind: input, shape index: {}]
  %s2 = inlined_call_operand.vmem [shape: f32[240,24], index: 2, kind: input, shape index: {}]
  %s3 = inlined_call_operand.vmem [shape: f32[24,26], index: 3, kind: input, shape index: {}]
  %s4 = inlined_call_operand.vmem [shape: f32[2,24,256], index: 4, kind: output, shape index: {}]
  %s5 = sld [smem:[#allocation0]]
  $region26: #{multi_head_cross_attention_forward.1} parent=0
    _
  %s7 = ssub.s32 1, %s5
  %s8 = scalar_select 0, %s7, %s5
  // Predicated region
  $region2: #{multi_head_cross_attention_forward.1} parent=0 // pred_check
    _
  $region3: #{multi_head_cross_attention_forward.1} parent=0 // pred_check_branch
    %10 = sbr.rel (0) target = $region5
  $region4: #{multi_head_cross_attention_forward.1} parent=0 // pred_region
    _
  $region5: #{multi_head_cross_attention_forward.1} parent=0 // pred_fallthru
    _
  // Predicated region
  $region6: #{multi_head_cross_attention_forward.1} parent=0 // pred_check
    _
  $region7: #{multi_head_cross_attention_forward.1} parent=0 // pred_check_branch
    %12 = sbr.rel (0) target = $region9
  $region8: #{multi_head_cross_attention_forward.1} parent=0 // pred_region
    _
  $region9: #{multi_head_cross_attention_forward.1} parent=0 // pred_fallthru
    _
  // Predicated region
  $region10: #{multi_head_cross_attention_forward.1} parent=0 // pred_check
    _
  $region11: #{multi_head_cross_attention_forward.1} parent=0 // pred_check_branch
    %14 = sbr.rel (0) target = $region13
  $region12: #{multi_head_cross_attention_forward.1} parent=0 // pred_region
    _
  $region13: #{multi_head_cross_attention_forward.1} parent=0 // pred_fallthru
    _
  // Predicated region
  $region14: #{multi_head_cross_attention_forward.1} parent=0 // pred_check
    _
  $region15: #{multi_head_cross_attention_forward.1} parent=0 // pred_check_branch
    %16 = sbr.rel (0) target = $region17
  $region16: #{multi_head_cross_attention_forward.1} parent=0 // pred_region
    _
  $region17: #{multi_head_cross_attention_forward.1} parent=0 // pred_fallthru
    _
  %v17 = vld [vmem:[%s2] sm:$0xff]
  %v18 = vld [vmem:[%s2 + $0x8] sm:$0xff]
  %v19 = vld [vmem:[%s2 + $0x10] sm:$0xff]
  %v20 = vld [vmem:[%s2 + $0x18] sm:$0xff]
  %v21 = vld [vmem:[%s2 + $0x20] sm:$0xff]
  %v22 = vld [vmem:[%s2 + $0x28] sm:$0xff]
  %v23 = vld [vmem:[%s2 + $0x30] sm:$0xff]
  %v24 = vld [vmem:[%s2 + $0x38] sm:$0xff]
  %v25 = vld [vmem:[%s2 + $0x40] sm:$0xff]
  %v26 = vld [vmem:[%s2 + $0x48] sm:$0xff]
  %v27 = vld [vmem:[%s2 + $0x50] sm:$0xff]
  %v28 = vld [vmem:[%s2 + $0x58] sm:$0xff]
  %v29 = vld [vmem:[%s2 + $0x60] sm:$0xff]
  %v30 = vld [vmem:[%s2 + $0x68] sm:$0xff]
  %v31 = vld [vmem:[%s2 + $0x70] sm:$0xff]
  %v32 = vld [vmem:[%s2 + $0x78] sm:$0xff]
  %v33 = vld [vmem:[%s2 + $0x80] sm:$0xff]
  %v34 = vld [vmem:[%s2 + $0x88] sm:$0xff]
  %v35 = vld [vmem:[%s3] sm:$0xff]
  %v36 = vld [vmem:[%s3 + $0x8] sm:$0xff]
  %v37 = vld [vmem:[%s3 + $0x10] sm:$0xff]
  %v38 = vld [vmem:[%s1] sm:$0xff]
  %v39 = vld [vmem:[%s1 + $0x8] sm:$0xff]
  %v40 = vld [vmem:[%s1 + $0x10] sm:$0xff]
  %42 = vset.pattern.permute.xlu0 16
  %43 = vperm.xlu0 %42, %v35
  %v44 = vpop.permute.xlu0 %43
  %47 = vset.pattern.permute.xlu0 16
  %48 = vperm.xlu0 %47, %v36
  %v49 = vpop.permute.xlu0 %48
  %52 = vset.pattern.permute.xlu0 16
  %53 = vperm.xlu0 %52, %v37
  %v54 = vpop.permute.xlu0 %53
  %vm56 = vcmask 195584
  %v58 = vsel %vm56, %v17, 0
  %v61 = vsel %vm56, %v18, 0
  %v64 = vsel %vm56, %v19, 0
  %66 = vmatprep.subr.mxu0 0.0
  %67 = vmatpush1.msra.mxu0 0.0
  %68 = vmatprep.subr.mxu0 0.0
  %69 = vmatpush1.msra.mxu0 0.0
  %70 = vmatprep.subr.mxu0 0.0
  %71 = vmatpush1.msra.mxu0 0.0
  %72 = vmatprep.subr.mxu0 0.0
  %73 = vmatpush1.msra.mxu0 0.0
  %74 = vmatprep.subr.mxu0 0.0
  %75 = vmatpush1.msra.mxu0 0.0
  %76 = vmatprep.subr.mxu0 0.0
  %77 = vmatpush1.msra.mxu0 0.0
  %78 = vmatprep.subr.mxu0 0.0
  %79 = vmatpush1.msra.mxu0 0.0
  %80 = vmatprep.subr.mxu0 0.0
  %81 = vmatpush1.msra.mxu0 0.0
  %82 = vmatprep.subr.mxu0 0.0
  %83 = vmatpush1.msra.mxu0 0.0
  %84 = vmatprep.subr.mxu0 0.0
  %85 = vmatpush1.msra.mxu0 0.0
  %86 = vmatprep.subr.mxu0 0.0
  %87 = vmatpush1.msra.mxu0 0.0
  %88 = vmatprep.subr.mxu0 0.0
  %89 = vmatpush1.msra.mxu0 0.0
  %90 = vmatprep.subr.mxu0 0.0
  %91 = vmatpush1.msra.mxu0 0.0
  %92 = vmatprep.subr.mxu0 0.0
  %93 = vmatpush1.msra.mxu0 %v40
  %94 = vmatprep.subr.mxu0 0.0
  %95 = vmatpush1.msra.mxu0 %v39
  %96 = vmatprep.subr.mxu0 0.0
  %97 = vmatpush1.msra.mxu0 %v38
  %98 = vmatprep.subr.mxu0 0.0
  %99 = vmatpush2.msra.mxu0 0.0
  %100 = vmatprep.subr.mxu0 0.0
  %101 = vmatpush2.msra.mxu0 0.0
  %102 = vmatprep.subr.mxu0 0.0
  %103 = vmatpush2.msra.mxu0 0.0
  %104 = vmatprep.subr.mxu0 0.0
  %105 = vmatpush2.msra.mxu0 0.0
  %106 = vmatprep.subr.mxu0 0.0
  %107 = vmatpush2.msra.mxu0 0.0
  %108 = vmatprep.subr.mxu0 0.0
  %109 = vmatpush2.msra.mxu0 0.0
  %110 = vmatprep.subr.mxu0 0.0
  %111 = vmatpush2.msra.mxu0 0.0
  %112 = vmatprep.subr.mxu0 0.0
  %113 = vmatpush2.msra.mxu0 0.0
  %114 = vmatprep.subr.mxu0 0.0
  %115 = vmatpush2.msra.mxu0 0.0
  %116 = vmatprep.subr.mxu0 0.0
  %117 = vmatpush2.msra.mxu0 0.0
  %118 = vmatprep.subr.mxu0 0.0
  %119 = vmatpush2.msra.mxu0 0.0
  %120 = vmatprep.subr.mxu0 0.0
  %121 = vmatpush2.msra.mxu0 0.0
  %122 = vmatprep.subr.mxu0 0.0
  %123 = vmatpush2.msra.mxu0 0.0
  %124 = vmatprep.subr.mxu0 0.0
  %125 = vmatpush2.msra.mxu0 0.0
  %126 = vmatprep.subr.mxu0 0.0
  %127 = vmatpush2.msra.mxu0 0.0
  %128 = vmatprep.subr.mxu0 0.0
  %129 = vmatpush2.msra.mxu0 0.0
  %130 = vmatprep.mubr.f32.mxu0 0.0
  %131 = vmatmul.mubr.f32.gmra.mxu0 %v58
  %v132 = vpop.f32.mrf.mxu0
  %v133 = vadd.f32 %v44, %v132
  %v134 = vpop.f32.mrf.mxu0
  %135 = vmatprep.mubr.f32.mxu0 0.0
  %136 = vmatmul.mubr.f32.gmra.mxu0 %v61
  %v137 = vpop.f32.mrf.mxu0
  %v138 = vadd.f32 %v49, %v137
  %v139 = vpop.f32.mrf.mxu0
  %140 = vmatprep.mubr.f32.mxu0 0.0
  %141 = vmatmul.mubr.f32.gmra.mxu0 %v64
  %v142 = vpop.f32.mrf.mxu0
  %v143 = vadd.f32 %v54, %v142
  %v144 = vpop.f32.mrf.mxu0
  %145 = vdwg.mxu0
  %vm146 = vcmask 523264
  %v147 = vsel %vm146, %v133, 0.0
  %148 = vadd.xlane.f32.xlu0 %v147
  %v149 = vpop.xlane.xlu0 %148
  %v150 = vsel %vm146, %v138, 0.0
  %151 = vadd.xlane.f32.xlu0 %v150
  %v152 = vpop.xlane.xlu0 %151
  %v153 = vsel %vm146, %v143, 0.0
  %154 = vadd.xlane.f32.xlu0 %v153
  %v155 = vpop.xlane.xlu0 %154
  %v156 = vmul.f32 %v133, %v133
  %v157 = vmul.f32 %v138, %v138
  %v158 = vmul.f32 %v143, %v143
  %v159 = vsel %vm146, %v156, 0.0
  %160 = vadd.xlane.f32.xlu0 %v159
  %v161 = vpop.xlane.xlu0 %160
  %v162 = vsel %vm146, %v157, 0.0
  %163 = vadd.xlane.f32.xlu0 %v162
  %v164 = vpop.xlane.xlu0 %163
  %v165 = vsel %vm146, %v158, 0.0
  %166 = vadd.xlane.f32.xlu0 %v165
  %v167 = vpop.xlane.xlu0 %166
  %vm168 = vcmask 7168
  %v169 = vsel %vm168, %v149, %v161
  %v170 = vsel %vm168, %v152, %v164
  %v171 = vsel %vm168, %v155, %v167
  %v173 = vsel %vm56, %v26, 0
  %v176 = vsel %vm56, %v27, 0
  %v179 = vsel %vm56, %v28, 0
  %181 = vmatprep.subr.mxu0 0.0
  %182 = vmatpush1.msra.mxu0 0.0
  %183 = vmatprep.subr.mxu0 0.0
  %184 = vmatpush1.msra.mxu0 0.0
  %185 = vmatprep.subr.mxu0 0.0
  %186 = vmatpush1.msra.mxu0 0.0
  %187 = vmatprep.subr.mxu0 0.0
  %188 = vmatpush1.msra.mxu0 0.0
  %189 = vmatprep.subr.mxu0 0.0
  %190 = vmatpush1.msra.mxu0 0.0
  %191 = vmatprep.subr.mxu0 0.0
  %192 = vmatpush1.msra.mxu0 0.0
  %193 = vmatprep.subr.mxu0 0.0
  %194 = vmatpush1.msra.mxu0 0.0
  %195 = vmatprep.subr.mxu0 0.0
  %196 = vmatpush1.msra.mxu0 0.0
  %197 = vmatprep.subr.mxu0 0.0
  %198 = vmatpush1.msra.mxu0 0.0
  %199 = vmatprep.subr.mxu0 0.0
  %200 = vmatpush1.msra.mxu0 0.0
  %201 = vmatprep.subr.mxu0 0.0
  %202 = vmatpush1.msra.mxu0 0.0
  %203 = vmatprep.subr.mxu0 0.0
  %204 = vmatpush1.msra.mxu0 0.0
  %205 = vmatprep.subr.mxu0 0.0
  %206 = vmatpush1.msra.mxu0 0.0
  %207 = vmatprep.subr.mxu0 0.0
  %208 = vmatpush1.msra.mxu0 %v171
  %209 = vmatprep.subr.mxu0 0.0
  %210 = vmatpush1.msra.mxu0 %v170
  %211 = vmatprep.subr.mxu0 0.0
  %212 = vmatpush1.msra.mxu0 %v169
  %213 = vmatprep.subr.mxu0 0.0
  %214 = vmatpush2.msra.mxu0 0.0
  %215 = vmatprep.subr.mxu0 0.0
  %216 = vmatpush2.msra.mxu0 0.0
  %217 = vmatprep.subr.mxu0 0.0
  %218 = vmatpush2.msra.mxu0 0.0
  %219 = vmatprep.subr.mxu0 0.0
  %220 = vmatpush2.msra.mxu0 0.0
  %221 = vmatprep.subr.mxu0 0.0
  %222 = vmatpush2.msra.mxu0 0.0
  %223 = vmatprep.subr.mxu0 0.0
  %224 = vmatpush2.msra.mxu0 0.0
  %225 = vmatprep.subr.mxu0 0.0
  %226 = vmatpush2.msra.mxu0 0.0
  %227 = vmatprep.subr.mxu0 0.0
  %228 = vmatpush2.msra.mxu0 0.0
  %229 = vmatprep.subr.mxu0 0.0
  %230 = vmatpush2.msra.mxu0 0.0
  %231 = vmatprep.subr.mxu0 0.0
  %232 = vmatpush2.msra.mxu0 0.0
  %233 = vmatprep.subr.mxu0 0.0
  %234 = vmatpush2.msra.mxu0 0.0
  %235 = vmatprep.subr.mxu0 0.0
  %236 = vmatpush2.msra.mxu0 0.0
  %237 = vmatprep.subr.mxu0 0.0
  %238 = vmatpush2.msra.mxu0 0.0
  %239 = vmatprep.subr.mxu0 0.0
  %240 = vmatpush2.msra.mxu0 0.0
  %241 = vmatprep.subr.mxu0 0.0
  %242 = vmatpush2.msra.mxu0 0.0
  %243 = vmatprep.subr.mxu0 0.0
  %244 = vmatpush2.msra.mxu0 0.0
  %245 = vmatprep.mubr.f32.mxu0 0.0
  %246 = vmatmul.mubr.f32.gmra.mxu0 %v173
  %v247 = vpop.f32.mrf.mxu0
  %v248 = vadd.f32 0.0, %v247
  %v249 = vpop.f32.mrf.mxu0
  %250 = vmatprep.mubr.f32.mxu0 0.0
  %251 = vmatmul.mubr.f32.gmra.mxu0 %v176
  %v252 = vpop.f32.mrf.mxu0
  %v253 = vadd.f32 0.0, %v252
  %v254 = vpop.f32.mrf.mxu0
  %255 = vmatprep.mubr.f32.mxu0 0.0
  %256 = vmatmul.mubr.f32.gmra.mxu0 %v179
  %v257 = vpop.f32.mrf.mxu0
  %v258 = vadd.f32 0.0, %v257
  %v259 = vpop.f32.mrf.mxu0
  %260 = vdwg.mxu0
  %v261 = vmul.f32 %v248, 0.0078125
  %v262 = vmul.f32 %v253, 0.0078125
  %v263 = vmul.f32 %v258, 0.0078125
  %v264 = vmul.f32 %v261, %v261
  %v265 = vmul.f32 %v262, %v262
  %v266 = vmul.f32 %v263, %v263
  %270 = vrot.lane.b32.xlu0 %v264, 1
  %v271 = vpop.permute.xlu0 %270
  %272 = vrot.lane.b32.xlu0 %v265, 1
  %v273 = vpop.permute.xlu0 %272
  %274 = vrot.lane.b32.xlu0 %v266, 1
  %v275 = vpop.permute.xlu0 %274
  %v279 = vsub.f32 %v261, %v271
  %v280 = vsub.f32 %v262, %v273
  %v281 = vsub.f32 %v263, %v275
  %v282 = vadd.f32 %v279, 1e-06
  %v283 = vadd.f32 %v280, 1e-06
  %v284 = vadd.f32 %v281, 1e-06
  %v285 = vrsqrt.pop %v282
  %v286 = vrsqrt.pop %v283
  %v287 = vrsqrt.pop %v284
  %289 = vset.pattern.permute.xlu0 0
  %290 = vperm.xlu0 %289, %v261
  %v291 = vpop.permute.xlu0 %290
  %294 = vset.pattern.permute.xlu0 0
  %295 = vperm.xlu0 %294, %v262
  %v296 = vpop.permute.xlu0 %295
  %299 = vset.pattern.permute.xlu0 0
  %300 = vperm.xlu0 %299, %v263
  %v301 = vpop.permute.xlu0 %300
  %v303 = vsub.f32 %v133, %v291
  %v304 = vsub.f32 %v138, %v296
  %v305 = vsub.f32 %v143, %v301
  %306 = vrot.lane.b32.xlu0 %v35, 112
  %v307 = vpop.permute.xlu0 %306
  %308 = vrot.lane.b32.xlu0 %v36, 112
  %v309 = vpop.permute.xlu0 %308
  %310 = vrot.lane.b32.xlu0 %v37, 112
  %v311 = vpop.permute.xlu0 %310
  %v315 = vmul.f32 %v285, %v307
  %v316 = vmul.f32 %v286, %v309
  %v317 = vmul.f32 %v287, %v311
  %319 = vset.pattern.permute.xlu0 1
  %320 = vperm.xlu0 %319, %v315
  %v321 = vpop.permute.xlu0 %320
  %324 = vset.pattern.permute.xlu0 1
  %325 = vperm.xlu0 %324, %v316
  %v326 = vpop.permute.xlu0 %325
  %329 = vset.pattern.permute.xlu0 1
  %330 = vperm.xlu0 %329, %v317
  %v331 = vpop.permute.xlu0 %330
  %v333 = vmul.f32 %v303, %v321
  %v334 = vmul.f32 %v304, %v326
  %v335 = vmul.f32 %v305, %v331
  %336 = vset.pattern.permute.xlu0 18
  %337 = vperm.xlu0 %336, %v35
  %v338 = vpop.permute.xlu0 %337
  %340 = vset.pattern.permute.xlu0 18
  %341 = vperm.xlu0 %340, %v36
  %v342 = vpop.permute.xlu0 %341
  %344 = vset.pattern.permute.xlu0 18
  %345 = vperm.xlu0 %344, %v37
  %v346 = vpop.permute.xlu0 %345
  %v348 = vadd.f32 %v333, %v338
  %v349 = vadd.f32 %v334, %v342
  %v350 = vadd.f32 %v335, %v346
  %v351 = vmax.f32 %v348, 0.0
  %v352 = vmax.f32 %v349, 0.0
  %v353 = vmax.f32 %v350, 0.0
  %v354 = vld [vmem:[%s0] sm:$0xff]
  %v355 = vld [vmem:[%s0 + $0x8] sm:$0xff]
  %356 = vset.pattern.permute.xlu0 19
  %357 = vperm.xlu0 %356, %v35
  %v358 = vpop.permute.xlu0 %357
  %360 = vset.pattern.permute.xlu0 19
  %361 = vperm.xlu0 %360, %v36
  %v362 = vpop.permute.xlu0 %361
  %364 = vset.pattern.permute.xlu0 19
  %365 = vperm.xlu0 %364, %v37
  %v366 = vpop.permute.xlu0 %365
  %vm368 = vcmask 130048
  %v369 = vsel %vm368, %v35, 0
  %v371 = vsel %vm368, %v36, 0
  %v373 = vsel %vm368, %v37, 0
  %375 = vmatprep.subr.mxu0 0.0
  %376 = vmatpush1.msra.mxu0 0.0
  %377 = vmatprep.subr.mxu0 0.0
  %378 = vmatpush1.msra.mxu0 0.0
  %379 = vmatprep.subr.mxu0 0.0
  %380 = vmatpush1.msra.mxu0 0.0
  %381 = vmatprep.subr.mxu0 0.0
  %382 = vmatpush1.msra.mxu0 0.0
  %383 = vmatprep.subr.mxu0 0.0
  %384 = vmatpush1.msra.mxu0 0.0
  %385 = vmatprep.subr.mxu0 0.0
  %386 = vmatpush1.msra.mxu0 0.0
  %387 = vmatprep.subr.mxu0 0.0
  %388 = vmatpush1.msra.mxu0 0.0
  %389 = vmatprep.subr.mxu0 0.0
  %390 = vmatpush1.msra.mxu0 0.0
  %391 = vmatprep.subr.mxu0 0.0
  %392 = vmatpush1.msra.mxu0 0.0
  %393 = vmatprep.subr.mxu0 0.0
  %394 = vmatpush1.msra.mxu0 0.0
  %395 = vmatprep.subr.mxu0 0.0
  %396 = vmatpush1.msra.mxu0 0.0
  %397 = vmatprep.subr.mxu0 0.0
  %398 = vmatpush1.msra.mxu0 0.0
  %399 = vmatprep.subr.mxu0 0.0
  %400 = vmatpush1.msra.mxu0 0.0
  %401 = vmatprep.subr.mxu0 0.0
  %402 = vmatpush1.msra.mxu0 0.0
  %403 = vmatprep.subr.mxu0 0.0
  %404 = vmatpush1.msra.mxu0 %v355
  %405 = vmatprep.subr.mxu0 0.0
  %406 = vmatpush1.msra.mxu0 %v354
  %407 = vmatprep.subr.mxu0 0.0
  %408 = vmatpush2.msra.mxu0 0.0
  %409 = vmatprep.subr.mxu0 0.0
  %410 = vmatpush2.msra.mxu0 0.0
  %411 = vmatprep.subr.mxu0 0.0
  %412 = vmatpush2.msra.mxu0 0.0
  %413 = vmatprep.subr.mxu0 0.0
  %414 = vmatpush2.msra.mxu0 0.0
  %415 = vmatprep.subr.mxu0 0.0
  %416 = vmatpush2.msra.mxu0 0.0
  %417 = vmatprep.subr.mxu0 0.0
  %418 = vmatpush2.msra.mxu0 0.0
  %419 = vmatprep.subr.mxu0 0.0
  %420 = vmatpush2.msra.mxu0 0.0
  %421 = vmatprep.subr.mxu0 0.0
  %422 = vmatpush2.msra.mxu0 0.0
  %423 = vmatprep.subr.mxu0 0.0
  %424 = vmatpush2.msra.mxu0 0.0
  %425 = vmatprep.subr.mxu0 0.0
  %426 = vmatpush2.msra.mxu0 0.0
  %427 = vmatprep.subr.mxu0 0.0
  %428 = vmatpush2.msra.mxu0 0.0
  %429 = vmatprep.subr.mxu0 0.0
  %430 = vmatpush2.msra.mxu0 0.0
  %431 = vmatprep.subr.mxu0 0.0
  %432 = vmatpush2.msra.mxu0 0.0
  %433 = vmatprep.subr.mxu0 0.0
  %434 = vmatpush2.msra.mxu0 0.0
  %435 = vmatprep.subr.mxu0 0.0
  %436 = vmatpush2.msra.mxu0 0.0
  %437 = vmatprep.subr.mxu0 0.0
  %438 = vmatpush2.msra.mxu0 0.0
  %439 = vmatprep.mubr.f32.mxu0 0.0
  %440 = vmatmul.mubr.f32.gmra.mxu0 %v369
  %v441 = vpop.f32.mrf.mxu0
  %v442 = vadd.f32 %v358, %v441
  %v443 = vpop.f32.mrf.mxu0
  %444 = vmatprep.mubr.f32.mxu0 0.0
  %445 = vmatmul.mubr.f32.gmra.mxu0 %v371
  %v446 = vpop.f32.mrf.mxu0
  %v447 = vadd.f32 %v362, %v446
  %v448 = vpop.f32.mrf.mxu0
  %449 = vmatprep.mubr.f32.mxu0 0.0
  %450 = vmatmul.mubr.f32.gmra.mxu0 %v373
  %v451 = vpop.f32.mrf.mxu0
  %v452 = vadd.f32 %v366, %v451
  %v453 = vpop.f32.mrf.mxu0
  %454 = vdwg.mxu0
  %v455 = vsel %vm146, %v442, 0.0
  %456 = vadd.xlane.f32.xlu0 %v455
  %v457 = vpop.xlane.xlu0 %456
  %v458 = vsel %vm146, %v447, 0.0
  %459 = vadd.xlane.f32.xlu0 %v458
  %v460 = vpop.xlane.xlu0 %459
  %v461 = vsel %vm146, %v452, 0.0
  %462 = vadd.xlane.f32.xlu0 %v461
  %v463 = vpop.xlane.xlu0 %462
  %v464 = vmul.f32 %v442, %v442
  %v465 = vmul.f32 %v447, %v447
  %v466 = vmul.f32 %v452, %v452
  %v467 = vsel %vm146, %v464, 0.0
  %468 = vadd.xlane.f32.xlu0 %v467
  %v469 = vpop.xlane.xlu0 %468
  %v470 = vsel %vm146, %v465, 0.0
  %471 = vadd.xlane.f32.xlu0 %v470
  %v472 = vpop.xlane.xlu0 %471
  %v473 = vsel %vm146, %v466, 0.0
  %474 = vadd.xlane.f32.xlu0 %v473
  %v475 = vpop.xlane.xlu0 %474
  %v476 = vsel %vm168, %v457, %v469
  %v477 = vsel %vm168, %v460, %v472
  %v478 = vsel %vm168, %v463, %v475
  %479 = vmatprep.subr.mxu0 0.0
  %480 = vmatpush1.msra.mxu0 0.0
  %481 = vmatprep.subr.mxu0 0.0
  %482 = vmatpush1.msra.mxu0 0.0
  %483 = vmatprep.subr.mxu0 0.0
  %484 = vmatpush1.msra.mxu0 0.0
  %485 = vmatprep.subr.mxu0 0.0
  %486 = vmatpush1.msra.mxu0 0.0
  %487 = vmatprep.subr.mxu0 0.0
  %488 = vmatpush1.msra.mxu0 0.0
  %489 = vmatprep.subr.mxu0 0.0
  %490 = vmatpush1.msra.mxu0 0.0
  %491 = vmatprep.subr.mxu0 0.0
  %492 = vmatpush1.msra.mxu0 0.0
  %493 = vmatprep.subr.mxu0 0.0
  %494 = vmatpush1.msra.mxu0 0.0
  %495 = vmatprep.subr.mxu0 0.0
  %496 = vmatpush1.msra.mxu0 0.0
  %497 = vmatprep.subr.mxu0 0.0
  %498 = vmatpush1.msra.mxu0 0.0
  %499 = vmatprep.subr.mxu0 0.0
  %500 = vmatpush1.msra.mxu0 0.0
  %501 = vmatprep.subr.mxu0 0.0
  %502 = vmatpush1.msra.mxu0 0.0
  %503 = vmatprep.subr.mxu0 0.0
  %504 = vmatpush1.msra.mxu0 0.0
  %505 = vmatprep.subr.mxu0 0.0
  %506 = vmatpush1.msra.mxu0 %v478
  %507 = vmatprep.subr.mxu0 0.0
  %508 = vmatpush1.msra.mxu0 %v477
  %509 = vmatprep.subr.mxu0 0.0
  %510 = vmatpush1.msra.mxu0 %v476
  %511 = vmatprep.subr.mxu0 0.0
  %512 = vmatpush2.msra.mxu0 0.0
  %513 = vmatprep.subr.mxu0 0.0
  %514 = vmatpush2.msra.mxu0 0.0
  %515 = vmatprep.subr.mxu0 0.0
  %516 = vmatpush2.msra.mxu0 0.0
  %517 = vmatprep.subr.mxu0 0.0
  %518 = vmatpush2.msra.mxu0 0.0
  %519 = vmatprep.subr.mxu0 0.0
  %520 = vmatpush2.msra.mxu0 0.0
  %521 = vmatprep.subr.mxu0 0.0
  %522 = vmatpush2.msra.mxu0 0.0
  %523 = vmatprep.subr.mxu0 0.0
  %524 = vmatpush2.msra.mxu0 0.0
  %525 = vmatprep.subr.mxu0 0.0
  %526 = vmatpush2.msra.mxu0 0.0
  %527 = vmatprep.subr.mxu0 0.0
  %528 = vmatpush2.msra.mxu0 0.0
  %529 = vmatprep.subr.mxu0 0.0
  %530 = vmatpush2.msra.mxu0 0.0
  %531 = vmatprep.subr.mxu0 0.0
  %532 = vmatpush2.msra.mxu0 0.0
  %533 = vmatprep.subr.mxu0 0.0
  %534 = vmatpush2.msra.mxu0 0.0
  %535 = vmatprep.subr.mxu0 0.0
  %536 = vmatpush2.msra.mxu0 0.0
  %537 = vmatprep.subr.mxu0 0.0
  %538 = vmatpush2.msra.mxu0 0.0
  %539 = vmatprep.subr.mxu0 0.0
  %540 = vmatpush2.msra.mxu0 0.0
  %541 = vmatprep.subr.mxu0 0.0
  %542 = vmatpush2.msra.mxu0 0.0
  %543 = vmatprep.mubr.f32.mxu0 0.0
  %544 = vmatmul.mubr.f32.gmra.mxu0 %v173
  %v545 = vpop.f32.mrf.mxu0
  %v546 = vadd.f32 0.0, %v545
  %v547 = vpop.f32.mrf.mxu0
  %548 = vmatprep.mubr.f32.mxu0 0.0
  %549 = vmatmul.mubr.f32.gmra.mxu0 %v176
  %v550 = vpop.f32.mrf.mxu0
  %v551 = vadd.f32 0.0, %v550
  %v552 = vpop.f32.mrf.mxu0
  %553 = vmatprep.mubr.f32.mxu0 0.0
  %554 = vmatmul.mubr.f32.gmra.mxu0 %v179
  %v555 = vpop.f32.mrf.mxu0
  %v556 = vadd.f32 0.0, %v555
  %v557 = vpop.f32.mrf.mxu0
  %558 = vdwg.mxu0
  %v559 = vmul.f32 %v546, 0.0078125
  %v560 = vmul.f32 %v551, 0.0078125
  %v561 = vmul.f32 %v556, 0.0078125
  %v562 = vmul.f32 %v559, %v559
  %v563 = vmul.f32 %v560, %v560
  %v564 = vmul.f32 %v561, %v561
  %568 = vrot.lane.b32.xlu0 %v562, 1
  %v569 = vpop.permute.xlu0 %568
  %570 = vrot.lane.b32.xlu0 %v563, 1
  %v571 = vpop.permute.xlu0 %570
  %572 = vrot.lane.b32.xlu0 %v564, 1
  %v573 = vpop.permute.xlu0 %572
  %v577 = vsub.f32 %v559, %v569
  %v578 = vsub.f32 %v560, %v571
  %v579 = vsub.f32 %v561, %v573
  %v580 = vadd.f32 %v577, 1e-06
  %v581 = vadd.f32 %v578, 1e-06
  %v582 = vadd.f32 %v579, 1e-06
  %v583 = vrsqrt.pop %v580
  %v584 = vrsqrt.pop %v581
  %v585 = vrsqrt.pop %v582
  %587 = vset.pattern.permute.xlu0 0
  %588 = vperm.xlu0 %587, %v559
  %v589 = vpop.permute.xlu0 %588
  %592 = vset.pattern.permute.xlu0 0
  %593 = vperm.xlu0 %592, %v560
  %v594 = vpop.permute.xlu0 %593
  %597 = vset.pattern.permute.xlu0 0
  %598 = vperm.xlu0 %597, %v561
  %v599 = vpop.permute.xlu0 %598
  %v601 = vsub.f32 %v442, %v589
  %v602 = vsub.f32 %v447, %v594
  %v603 = vsub.f32 %v452, %v599
  %604 = vrot.lane.b32.xlu0 %v35, 109
  %v605 = vpop.permute.xlu0 %604
  %606 = vrot.lane.b32.xlu0 %v36, 109
  %v607 = vpop.permute.xlu0 %606
  %608 = vrot.lane.b32.xlu0 %v37, 109
  %v609 = vpop.permute.xlu0 %608
  %v613 = vmul.f32 %v583, %v605
  %v614 = vmul.f32 %v584, %v607
  %v615 = vmul.f32 %v585, %v609
  %617 = vset.pattern.permute.xlu0 1
  %618 = vperm.xlu0 %617, %v613
  %v619 = vpop.permute.xlu0 %618
  %622 = vset.pattern.permute.xlu0 1
  %623 = vperm.xlu0 %622, %v614
  %v624 = vpop.permute.xlu0 %623
  %627 = vset.pattern.permute.xlu0 1
  %628 = vperm.xlu0 %627, %v615
  %v629 = vpop.permute.xlu0 %628
  %v631 = vmul.f32 %v601, %v619
  %v632 = vmul.f32 %v602, %v624
  %v633 = vmul.f32 %v603, %v629
  %634 = vset.pattern.permute.xlu0 21
  %635 = vperm.xlu0 %634, %v35
  %v636 = vpop.permute.xlu0 %635
  %638 = vset.pattern.permute.xlu0 21
  %639 = vperm.xlu0 %638, %v36
  %v640 = vpop.permute.xlu0 %639
  %642 = vset.pattern.permute.xlu0 21
  %643 = vperm.xlu0 %642, %v37
  %v644 = vpop.permute.xlu0 %643
  %v646 = vadd.f32 %v631, %v636
  %v647 = vadd.f32 %v632, %v640
  %v648 = vadd.f32 %v633, %v644
  %v649 = vmax.f32 %v646, 0.0
  %v650 = vmax.f32 %v647, 0.0
  %v651 = vmax.f32 %v648, 0.0
  %v653 = vsel %vm56, %v29, 0
  %v656 = vsel %vm56, %v30, 0
  %v659 = vsel %vm56, %v31, 0
  %v662 = vsel %vm56, %v32, 0
  %v665 = vsel %vm56, %v33, 0
  %v668 = vsel %vm56, %v34, 0
  %670 = vmatprep.subr.mxu0 0.0
  %671 = vmatpush1.msra.mxu0 0.0
  %672 = vmatprep.subr.mxu0 0.0
  %673 = vmatpush1.msra.mxu0 0.0
  %674 = vmatprep.subr.mxu0 0.0
  %675 = vmatpush1.msra.mxu0 0.0
  %676 = vmatprep.subr.mxu0 0.0
  %677 = vmatpush1.msra.mxu0 0.0
  %678 = vmatprep.subr.mxu0 0.0
  %679 = vmatpush1.msra.mxu0 0.0
  %680 = vmatprep.subr.mxu0 0.0
  %681 = vmatpush1.msra.mxu0 0.0
  %682 = vmatprep.subr.mxu0 0.0
  %683 = vmatpush1.msra.mxu0 0.0
  %684 = vmatprep.subr.mxu0 0.0
  %685 = vmatpush1.msra.mxu0 0.0
  %686 = vmatprep.subr.mxu0 0.0
  %687 = vmatpush1.msra.mxu0 0.0
  %688 = vmatprep.subr.mxu0 0.0
  %689 = vmatpush1.msra.mxu0 0.0
  %690 = vmatprep.subr.mxu0 0.0
  %691 = vmatpush1.msra.mxu0 0.0
  %692 = vmatprep.subr.mxu0 0.0
  %693 = vmatpush1.msra.mxu0 0.0
  %694 = vmatprep.subr.mxu0 0.0
  %695 = vmatpush1.msra.mxu0 0.0
  %696 = vmatprep.subr.mxu0 0.0
  %697 = vmatpush1.msra.mxu0 %v651
  %698 = vmatprep.subr.mxu0 0.0
  %699 = vmatpush1.msra.mxu0 %v650
  %700 = vmatprep.subr.mxu0 0.0
  %701 = vmatpush1.msra.mxu0 %v649
  %702 = vmatprep.subr.mxu0 0.0
  %703 = vmatpush2.msra.mxu0 0.0
  %704 = vmatprep.subr.mxu0 0.0
  %705 = vmatpush2.msra.mxu0 0.0
  %706 = vmatprep.subr.mxu0 0.0
  %707 = vmatpush2.msra.mxu0 0.0
  %708 = vmatprep.subr.mxu0 0.0
  %709 = vmatpush2.msra.mxu0 0.0
  %710 = vmatprep.subr.mxu0 0.0
  %711 = vmatpush2.msra.mxu0 0.0
  %712 = vmatprep.subr.mxu0 0.0
  %713 = vmatpush2.msra.mxu0 0.0
  %714 = vmatprep.subr.mxu0 0.0
  %715 = vmatpush2.msra.mxu0 0.0
  %716 = vmatprep.subr.mxu0 0.0
  %717 = vmatpush2.msra.mxu0 0.0
  %718 = vmatprep.subr.mxu0 0.0
  %719 = vmatpush2.msra.mxu0 0.0
  %720 = vmatprep.subr.mxu0 0.0
  %721 = vmatpush2.msra.mxu0 0.0
  %722 = vmatprep.subr.mxu0 0.0
  %723 = vmatpush2.msra.mxu0 0.0
  %724 = vmatprep.subr.mxu0 0.0
  %725 = vmatpush2.msra.mxu0 0.0
  %726 = vmatprep.subr.mxu0 0.0
  %727 = vmatpush2.msra.mxu0 0.0
  %728 = vmatprep.subr.mxu0 0.0
  %729 = vmatpush2.msra.mxu0 0.0
  %730 = vmatprep.subr.mxu0 0.0
  %731 = vmatpush2.msra.mxu0 0.0
  %732 = vmatprep.subr.mxu0 0.0
  %733 = vmatpush2.msra.mxu0 0.0
  %734 = vmatprep.mubr.f32.mxu0 0.0
  %735 = vmatmul.mubr.f32.gmra.mxu0 %v653
  %v736 = vpop.f32.mrf.mxu0
  %v737 = vadd.f32 0.0, %v736
  %v738 = vpop.f32.mrf.mxu0
  %739 = vmatprep.mubr.f32.mxu0 0.0
  %740 = vmatmul.mubr.f32.gmra.mxu0 %v656
  %v741 = vpop.f32.mrf.mxu0
  %v742 = vadd.f32 0.0, %v741
  %v743 = vpop.f32.mrf.mxu0
  %744 = vmatprep.mubr.f32.mxu0 0.0
  %745 = vmatmul.mubr.f32.gmra.mxu0 %v659
  %v746 = vpop.f32.mrf.mxu0
  %v747 = vadd.f32 0.0, %v746
  %v748 = vpop.f32.mrf.mxu0
  %749 = vmatprep.mubr.f32.mxu0 0.0
  %750 = vmatmul.mubr.f32.gmra.mxu0 %v662
  %v751 = vpop.f32.mrf.mxu0
  %v752 = vadd.f32 0.0, %v751
  %v753 = vpop.f32.mrf.mxu0
  %754 = vmatprep.mubr.f32.mxu0 0.0
  %755 = vmatmul.mubr.f32.gmra.mxu0 %v665
  %v756 = vpop.f32.mrf.mxu0
  %v757 = vadd.f32 0.0, %v756
  %v758 = vpop.f32.mrf.mxu0
  %759 = vmatprep.mubr.f32.mxu0 0.0
  %760 = vmatmul.mubr.f32.gmra.mxu0 %v668
  %v761 = vpop.f32.mrf.mxu0
  %v762 = vadd.f32 0.0, %v761
  %v763 = vpop.f32.mrf.mxu0
  %764 = vdwg.mxu0
  %v766 = vsel %vm56, %v20, 0
  %v769 = vsel %vm56, %v21, 0
  %v772 = vsel %vm56, %v22, 0
  %774 = vmatprep.subr.mxu0 0.0
  %775 = vmatpush1.msra.mxu0 0.0
  %776 = vmatprep.subr.mxu0 0.0
  %777 = vmatpush1.msra.mxu0 0.0
  %778 = vmatprep.subr.mxu0 0.0
  %779 = vmatpush1.msra.mxu0 0.0
  %780 = vmatprep.subr.mxu0 0.0
  %781 = vmatpush1.msra.mxu0 0.0
  %782 = vmatprep.subr.mxu0 0.0
  %783 = vmatpush1.msra.mxu0 0.0
  %784 = vmatprep.subr.mxu0 0.0
  %785 = vmatpush1.msra.mxu0 0.0
  %786 = vmatprep.subr.mxu0 0.0
  %787 = vmatpush1.msra.mxu0 0.0
  %788 = vmatprep.subr.mxu0 0.0
  %789 = vmatpush1.msra.mxu0 0.0
  %790 = vmatprep.subr.mxu0 0.0
  %791 = vmatpush1.msra.mxu0 0.0
  %792 = vmatprep.subr.mxu0 0.0
  %793 = vmatpush1.msra.mxu0 0.0
  %794 = vmatprep.subr.mxu0 0.0
  %795 = vmatpush1.msra.mxu0 0.0
  %796 = vmatprep.subr.mxu0 0.0
  %797 = vmatpush1.msra.mxu0 0.0
  %798 = vmatprep.subr.mxu0 0.0
  %799 = vmatpush1.msra.mxu0 0.0
  %800 = vmatprep.subr.mxu0 0.0
  %801 = vmatpush1.msra.mxu0 %v353
  %802 = vmatprep.subr.mxu0 0.0
  %803 = vmatpush1.msra.mxu0 %v352
  %804 = vmatprep.subr.mxu0 0.0
  %805 = vmatpush1.msra.mxu0 %v351
  %806 = vmatprep.subr.mxu0 0.0
  %807 = vmatpush2.msra.mxu0 0.0
  %808 = vmatprep.subr.mxu0 0.0
  %809 = vmatpush2.msra.mxu0 0.0
  %810 = vmatprep.subr.mxu0 0.0
  %811 = vmatpush2.msra.mxu0 0.0
  %812 = vmatprep.subr.mxu0 0.0
  %813 = vmatpush2.msra.mxu0 0.0
  %814 = vmatprep.subr.mxu0 0.0
  %815 = vmatpush2.msra.mxu0 0.0
  %816 = vmatprep.subr.mxu0 0.0
  %817 = vmatpush2.msra.mxu0 0.0
  %818 = vmatprep.subr.mxu0 0.0
  %819 = vmatpush2.msra.mxu0 0.0
  %820 = vmatprep.subr.mxu0 0.0
  %821 = vmatpush2.msra.mxu0 0.0
  %822 = vmatprep.subr.mxu0 0.0
  %823 = vmatpush2.msra.mxu0 0.0
  %824 = vmatprep.subr.mxu0 0.0
  %825 = vmatpush2.msra.mxu0 0.0
  %826 = vmatprep.subr.mxu0 0.0
  %827 = vmatpush2.msra.mxu0 0.0
  %828 = vmatprep.subr.mxu0 0.0
  %829 = vmatpush2.msra.mxu0 0.0
  %830 = vmatprep.subr.mxu0 0.0
  %831 = vmatpush2.msra.mxu0 0.0
  %832 = vmatprep.subr.mxu0 0.0
  %833 = vmatpush2.msra.mxu0 0.0
  %834 = vmatprep.subr.mxu0 0.0
  %835 = vmatpush2.msra.mxu0 0.0
  %836 = vmatprep.subr.mxu0 0.0
  %837 = vmatpush2.msra.mxu0 0.0
  %838 = vmatprep.mubr.f32.mxu0 0.0
  %839 = vmatmul.mubr.f32.gmra.mxu0 %v766
  %v840 = vpop.f32.mrf.mxu0
  %v841 = vadd.f32 0.0, %v840
  %v842 = vpop.f32.mrf.mxu0
  %843 = vmatprep.mubr.f32.mxu0 0.0
  %844 = vmatmul.mubr.f32.gmra.mxu0 %v769
  %v845 = vpop.f32.mrf.mxu0
  %v846 = vadd.f32 0.0, %v845
  %v847 = vpop.f32.mrf.mxu0
  %848 = vmatprep.mubr.f32.mxu0 0.0
  %849 = vmatmul.mubr.f32.gmra.mxu0 %v772
  %v850 = vpop.f32.mrf.mxu0
  %v851 = vadd.f32 0.0, %v850
  %v852 = vpop.f32.mrf.mxu0
  %853 = vdwg.mxu0
  %854 = vxpose.xlu0.b32.start [1/16] %v737, 128
  %855 = vxpose.xlu0.b32.cont [2/16] %v742, 128
  %856 = vxpose.xlu0.b32.cont [3/16] %v747, 128
  %857 = vxpose.xlu0.b32.cont [4/16] 0.0, 128
  %858 = vxpose.xlu0.b32.cont [5/16] 0.0, 128
  %859 = vxpose.xlu0.b32.cont [6/16] 0.0, 128
  %860 = vxpose.xlu0.b32.cont [7/16] 0.0, 128
  %861 = vxpose.xlu0.b32.cont [8/16] 0.0, 128
  %862 = vxpose.xlu0.b32.cont [9/16] 0.0, 128
  %863 = vxpose.xlu0.b32.cont [10/16] 0.0, 128
  %864 = vxpose.xlu0.b32.cont [11/16] 0.0, 128
  %865 = vxpose.xlu0.b32.cont [12/16] 0.0, 128
  %866 = vxpose.xlu0.b32.cont [13/16] 0.0, 128
  %867 = vxpose.xlu0.b32.cont [14/16] 0.0, 128
  %868 = vxpose.xlu0.b32.cont [15/16] 0.0, 128
  %869 = vxpose.xlu0.b32.end [16/16] 0.0, 128
  %v870 = vpop.trf.xlu0
  %v871 = vpop.trf.xlu0
  %v872 = vpop.trf.xlu0
  %v873 = vpop.trf.xlu0
  %v874 = vpop.trf.xlu0
  %v875 = vpop.trf.xlu0
  %v876 = vpop.trf.xlu0
  %v877 = vpop.trf.xlu0
  %v878 = vpop.trf.xlu0
  %v879 = vpop.trf.xlu0
  %v880 = vpop.trf.xlu0
  %v881 = vpop.trf.xlu0
  %v882 = vpop.trf.xlu0
  %v883 = vpop.trf.xlu0
  %v884 = vpop.trf.xlu0
  %v885 = vpop.trf.xlu0
  %v887 = vsel %vm56, %v870, 0
  %v890 = vsel %vm56, %v871, 0
  %v893 = vsel %vm56, %v872, 0
  %v896 = vsel %vm56, %v873, 0
  %v899 = vsel %vm56, %v874, 0
  %v902 = vsel %vm56, %v875, 0
  %v905 = vsel %vm56, %v876, 0
  %v908 = vsel %vm56, %v877, 0
  %910 = vmatprep.subr.mxu0 0.0
  %911 = vmatpush1.msra.mxu0 0.0
  %912 = vmatprep.subr.mxu0 0.0
  %913 = vmatpush1.msra.mxu0 0.0
  %914 = vmatprep.subr.mxu0 0.0
  %915 = vmatpush1.msra.mxu0 0.0
  %916 = vmatprep.subr.mxu0 0.0
  %917 = vmatpush1.msra.mxu0 0.0
  %918 = vmatprep.subr.mxu0 0.0
  %919 = vmatpush1.msra.mxu0 0.0
  %920 = vmatprep.subr.mxu0 0.0
  %921 = vmatpush1.msra.mxu0 0.0
  %922 = vmatprep.subr.mxu0 0.0
  %923 = vmatpush1.msra.mxu0 0.0
  %924 = vmatprep.subr.mxu0 0.0
  %925 = vmatpush1.msra.mxu0 0.0
  %926 = vmatprep.subr.mxu0 0.0
  %927 = vmatpush1.msra.mxu0 0.0
  %928 = vmatprep.subr.mxu0 0.0
  %929 = vmatpush1.msra.mxu0 0.0
  %930 = vmatprep.subr.mxu0 0.0
  %931 = vmatpush1.msra.mxu0 0.0
  %932 = vmatprep.subr.mxu0 0.0
  %933 = vmatpush1.msra.mxu0 0.0
  %934 = vmatprep.subr.mxu0 0.0
  %935 = vmatpush1.msra.mxu0 0.0
  %936 = vmatprep.subr.mxu0 0.0
  %937 = vmatpush1.msra.mxu0 %v762
  %938 = vmatprep.subr.mxu0 0.0
  %939 = vmatpush1.msra.mxu0 %v757
  %940 = vmatprep.subr.mxu0 0.0
  %941 = vmatpush1.msra.mxu0 %v752
  %942 = vmatprep.subr.mxu0 0.0
  %943 = vmatpush2.msra.mxu0 0.0
  %944 = vmatprep.subr.mxu0 0.0
  %945 = vmatpush2.msra.mxu0 0.0
  %946 = vmatprep.subr.mxu0 0.0
  %947 = vmatpush2.msra.mxu0 0.0
  %948 = vmatprep.subr.mxu0 0.0
  %949 = vmatpush2.msra.mxu0 0.0
  %950 = vmatprep.subr.mxu0 0.0
  %951 = vmatpush2.msra.mxu0 0.0
  %952 = vmatprep.subr.mxu0 0.0
  %953 = vmatpush2.msra.mxu0 0.0
  %954 = vmatprep.subr.mxu0 0.0
  %955 = vmatpush2.msra.mxu0 0.0
  %956 = vmatprep.subr.mxu0 0.0
  %957 = vmatpush2.msra.mxu0 0.0
  %958 = vmatprep.subr.mxu0 0.0
  %959 = vmatpush2.msra.mxu0 0.0
  %960 = vmatprep.subr.mxu0 0.0
  %961 = vmatpush2.msra.mxu0 0.0
  %962 = vmatprep.subr.mxu0 0.0
  %963 = vmatpush2.msra.mxu0 0.0
  %964 = vmatprep.subr.mxu0 0.0
  %965 = vmatpush2.msra.mxu0 0.0
  %966 = vmatprep.subr.mxu0 0.0
  %967 = vmatpush2.msra.mxu0 0.0
  %968 = vmatprep.subr.mxu0 0.0
  %969 = vmatpush2.msra.mxu0 0.0
  %970 = vmatprep.subr.mxu0 0.0
  %971 = vmatpush2.msra.mxu0 0.0
  %972 = vmatprep.subr.mxu0 0.0
  %973 = vmatpush2.msra.mxu0 0.0
  %974 = vmatprep.mubr.f32.mxu0 0.0
  %975 = vmatmul.mubr.f32.gmra.mxu0 %v887
  %v976 = vpop.f32.mrf.mxu0
  %v977 = vadd.f32 0.0, %v976
  %v978 = vpop.f32.mrf.mxu0
  %979 = vmatprep.mubr.f32.mxu0 0.0
  %980 = vmatmul.mubr.f32.gmra.mxu0 %v890
  %v981 = vpop.f32.mrf.mxu0
  %v982 = vadd.f32 0.0, %v981
  %v983 = vpop.f32.mrf.mxu0
  %984 = vmatprep.mubr.f32.mxu0 0.0
  %985 = vmatmul.mubr.f32.gmra.mxu0 %v893
  %v986 = vpop.f32.mrf.mxu0
  %v987 = vadd.f32 0.0, %v986
  %v988 = vpop.f32.mrf.mxu0
  %989 = vmatprep.mubr.f32.mxu0 0.0
  %990 = vmatmul.mubr.f32.gmra.mxu0 %v896
  %v991 = vpop.f32.mrf.mxu0
  %v992 = vadd.f32 0.0, %v991
  %v993 = vpop.f32.mrf.mxu0
  %994 = vmatprep.mubr.f32.mxu0 0.0
  %995 = vmatmul.mubr.f32.gmra.mxu0 %v899
  %v996 = vpop.f32.mrf.mxu0
  %v997 = vadd.f32 0.0, %v996
  %v998 = vpop.f32.mrf.mxu0
  %999 = vmatprep.mubr.f32.mxu0 0.0
  %1000 = vmatmul.mubr.f32.gmra.mxu0 %v902
  %v1001 = vpop.f32.mrf.mxu0
  %v1002 = vadd.f32 0.0, %v1001
  %v1003 = vpop.f32.mrf.mxu0
  %1004 = vmatprep.mubr.f32.mxu0 0.0
  %1005 = vmatmul.mubr.f32.gmra.mxu0 %v905
  %v1006 = vpop.f32.mrf.mxu0
  %v1007 = vadd.f32 0.0, %v1006
  %v1008 = vpop.f32.mrf.mxu0
  %1009 = vmatprep.mubr.f32.mxu0 0.0
  %1010 = vmatmul.mubr.f32.gmra.mxu0 %v908
  %v1011 = vpop.f32.mrf.mxu0
  %v1012 = vadd.f32 0.0, %v1011
  %v1013 = vpop.f32.mrf.mxu0
  %1014 = vdwg.mxu0
  %v1015 = vsel %vm146, %v977, -inf
  %v1016 = vsel %vm146, %v982, -inf
  %v1017 = vsel %vm146, %v987, -inf
  %v1018 = vsel %vm146, %v992, -inf
  %v1019 = vsel %vm146, %v997, -inf
  %v1020 = vmax.f32 %v1015, %v1019
  %v1021 = vsel %vm146, %v1002, -inf
  %v1022 = vmax.f32 %v1016, %v1021
  %v1023 = vsel %vm146, %v1007, -inf
  %v1024 = vmax.f32 %v1017, %v1023
  %v1025 = vsel %vm146, %v1012, -inf
  %v1026 = vmax.f32 %v1018, %v1025
  %v1027 = vmax.f32 %v1020, %v1022
  %v1028 = vmax.f32 %v1024, %v1026
  %v1029 = vmax.f32 %v1027, %v1028
  %v1030 = vrot.slane %v1029, 4
  %v1031 = vmax.f32 %v1029, %v1030
  %v1032 = vrot.slane %v1031, 2
  %v1033 = vmax.f32 %v1031, %v1032
  %v1034 = vrot.slane %v1033, 1
  %v1035 = vmax.f32 %v1033, %v1034
  %v1036 = vsub.f32 %v977, %v1035
  %v1037 = vsub.f32 %v982, %v1035
  %v1038 = vsub.f32 %v987, %v1035
  %v1039 = vsub.f32 %v992, %v1035
  %v1040 = vsub.f32 %v997, %v1035
  %v1041 = vsub.f32 %v1002, %v1035
  %v1042 = vsub.f32 %v1007, %v1035
  %v1043 = vsub.f32 %v1012, %v1035
  %v1044 = vmul.f32 %v1036, 1.442695
  %v1045 = vpow.pop %v1044
  %v1046 = vmul.f32 %v1037, 1.442695
  %v1047 = vpow.pop %v1046
  %v1048 = vmul.f32 %v1038, 1.442695
  %v1049 = vpow.pop %v1048
  %v1050 = vmul.f32 %v1039, 1.442695
  %v1051 = vpow.pop %v1050
  %v1052 = vmul.f32 %v1040, 1.442695
  %v1053 = vpow.pop %v1052
  %v1054 = vmul.f32 %v1041, 1.442695
  %v1055 = vpow.pop %v1054
  %v1056 = vmul.f32 %v1042, 1.442695
  %v1057 = vpow.pop %v1056
  %v1058 = vmul.f32 %v1043, 1.442695
  %v1059 = vpow.pop %v1058
  %v1060 = vsel %vm146, %v1045, 0.0
  %v1061 = vsel %vm146, %v1047, 0.0
  %v1062 = vadd.f32 %v1060, %v1061
  %v1063 = vsel %vm146, %v1049, 0.0
  %v1064 = vadd.f32 %v1062, %v1063
  %v1065 = vsel %vm146, %v1051, 0.0
  %v1066 = vadd.f32 %v1064, %v1065
  %v1067 = vsel %vm146, %v1053, 0.0
  %v1068 = vadd.f32 %v1066, %v1067
  %v1069 = vsel %vm146, %v1055, 0.0
  %v1070 = vadd.f32 %v1068, %v1069
  %v1071 = vsel %vm146, %v1057, 0.0
  %v1072 = vadd.f32 %v1070, %v1071
  %v1073 = vsel %vm146, %v1059, 0.0
  %v1074 = vadd.f32 %v1072, %v1073
  %v1075 = vrot.slane %v1074, 4
  %v1076 = vadd.f32 %v1074, %v1075
  %v1077 = vrot.slane %v1076, 2
  %v1078 = vadd.f32 %v1076, %v1077
  %v1079 = vrot.slane %v1078, 1
  %v1080 = vadd.f32 %v1078, %v1079
  %v1081 = vrcp.pop %v1080
  %v1082 = vmul.f32 %v1045, %v1081
  %v1083 = vmul.f32 %v1047, %v1081
  %v1084 = vmul.f32 %v1049, %v1081
  %v1085 = vmul.f32 %v1051, %v1081
  %v1086 = vmul.f32 %v1053, %v1081
  %v1087 = vmul.f32 %v1055, %v1081
  %v1088 = vmul.f32 %v1057, %v1081
  %v1089 = vmul.f32 %v1059, %v1081
  %v1091 = vsel %vm146, %v841, 0
  %v1094 = vsel %vm146, %v846, 0
  %v1097 = vsel %vm146, %v851, 0
  %v1100 = vsel %vm146, %v1082, 0
  %v1103 = vsel %vm146, %v1083, 0
  %v1106 = vsel %vm146, %v1084, 0
  %v1109 = vsel %vm146, %v1085, 0
  %v1112 = vsel %vm146, %v1086, 0
  %v1115 = vsel %vm146, %v1087, 0
  %v1118 = vsel %vm146, %v1088, 0
  %v1121 = vsel %vm146, %v1089, 0
  %1123 = vmatprep.subr.mxu0 0.0
  %1124 = vmatpush1.xpose.msra.mxu0 0.0
  %1125 = vmatprep.subr.mxu0 0.0
  %1126 = vmatpush1.xpose.msra.mxu0 0.0
  %1127 = vmatprep.subr.mxu0 0.0
  %1128 = vmatpush1.xpose.msra.mxu0 0.0
  %1129 = vmatprep.subr.mxu0 0.0
  %1130 = vmatpush1.xpose.msra.mxu0 0.0
  %1131 = vmatprep.subr.mxu0 0.0
  %1132 = vmatpush1.xpose.msra.mxu0 0.0
  %1133 = vmatprep.subr.mxu0 0.0
  %1134 = vmatpush1.xpose.msra.mxu0 0.0
  %1135 = vmatprep.subr.mxu0 0.0
  %1136 = vmatpush1.xpose.msra.mxu0 0.0
  %1137 = vmatprep.subr.mxu0 0.0
  %1138 = vmatpush1.xpose.msra.mxu0 0.0
  %1139 = vmatprep.subr.mxu0 0.0
  %1140 = vmatpush1.xpose.msra.mxu0 %v1121
  %1141 = vmatprep.subr.mxu0 0.0
  %1142 = vmatpush1.xpose.msra.mxu0 %v1118
  %1143 = vmatprep.subr.mxu0 0.0
  %1144 = vmatpush1.xpose.msra.mxu0 %v1115
  %1145 = vmatprep.subr.mxu0 0.0
  %1146 = vmatpush1.xpose.msra.mxu0 %v1112
  %1147 = vmatprep.subr.mxu0 0.0
  %1148 = vmatpush1.xpose.msra.mxu0 %v1109
  %1149 = vmatprep.subr.mxu0 0.0
  %1150 = vmatpush1.xpose.msra.mxu0 %v1106
  %1151 = vmatprep.subr.mxu0 0.0
  %1152 = vmatpush1.xpose.msra.mxu0 %v1103
  %1153 = vmatprep.subr.mxu0 0.0
  %1154 = vmatpush1.xpose.msra.mxu0 %v1100
  %1155 = vmatprep.subr.mxu0 0.0
  %1156 = vmatpush2.xpose.msra.mxu0 0.0
  %1157 = vmatprep.subr.mxu0 0.0
  %1158 = vmatpush2.xpose.msra.mxu0 0.0
  %1159 = vmatprep.subr.mxu0 0.0
  %1160 = vmatpush2.xpose.msra.mxu0 0.0
  %1161 = vmatprep.subr.mxu0 0.0
  %1162 = vmatpush2.xpose.msra.mxu0 0.0
  %1163 = vmatprep.subr.mxu0 0.0
  %1164 = vmatpush2.xpose.msra.mxu0 0.0
  %1165 = vmatprep.subr.mxu0 0.0
  %1166 = vmatpush2.xpose.msra.mxu0 0.0
  %1167 = vmatprep.subr.mxu0 0.0
  %1168 = vmatpush2.xpose.msra.mxu0 0.0
  %1169 = vmatprep.subr.mxu0 0.0
  %1170 = vmatpush2.xpose.msra.mxu0 0.0
  %1171 = vmatprep.subr.mxu0 0.0
  %1172 = vmatpush2.xpose.msra.mxu0 0.0
  %1173 = vmatprep.subr.mxu0 0.0
  %1174 = vmatpush2.xpose.msra.mxu0 0.0
  %1175 = vmatprep.subr.mxu0 0.0
  %1176 = vmatpush2.xpose.msra.mxu0 0.0
  %1177 = vmatprep.subr.mxu0 0.0
  %1178 = vmatpush2.xpose.msra.mxu0 0.0
  %1179 = vmatprep.subr.mxu0 0.0
  %1180 = vmatpush2.xpose.msra.mxu0 0.0
  %1181 = vmatprep.subr.mxu0 0.0
  %1182 = vmatpush2.xpose.msra.mxu0 0.0
  %1183 = vmatprep.subr.mxu0 0.0
  %1184 = vmatpush2.xpose.msra.mxu0 0.0
  %1185 = vmatprep.subr.mxu0 0.0
  %1186 = vmatpush2.xpose.msra.mxu0 0.0
  %1187 = vmatprep.mubr.f32.mxu0 0.0
  %1188 = vmatmul.mubr.f32.gmra.mxu0 %v1091
  %v1189 = vpop.f32.mrf.mxu0
  %v1190 = vadd.f32 0.0, %v1189
  %v1191 = vpop.f32.mrf.mxu0
  %1192 = vmatprep.mubr.f32.mxu0 0.0
  %1193 = vmatmul.mubr.f32.gmra.mxu0 %v1094
  %v1194 = vpop.f32.mrf.mxu0
  %v1195 = vadd.f32 0.0, %v1194
  %v1196 = vpop.f32.mrf.mxu0
  %1197 = vmatprep.mubr.f32.mxu0 0.0
  %1198 = vmatmul.mubr.f32.gmra.mxu0 %v1097
  %v1199 = vpop.f32.mrf.mxu0
  %v1200 = vadd.f32 0.0, %v1199
  %v1201 = vpop.f32.mrf.mxu0
  %1202 = vdwg.mxu0
  %1203 = vset.pattern.permute.xlu0 22
  %1204 = vperm.xlu0 %1203, %v35
  %v1205 = vpop.permute.xlu0 %1204
  %1207 = vset.pattern.permute.xlu0 22
  %1208 = vperm.xlu0 %1207, %v36
  %v1209 = vpop.permute.xlu0 %1208
  %1211 = vset.pattern.permute.xlu0 22
  %1212 = vperm.xlu0 %1211, %v37
  %v1213 = vpop.permute.xlu0 %1212
  %v1216 = vsel %vm56, %v23, 0
  %v1219 = vsel %vm56, %v24, 0
  %v1222 = vsel %vm56, %v25, 0
  %1224 = vmatprep.subr.mxu0 0.0
  %1225 = vmatpush1.msra.mxu0 0.0
  %1226 = vmatprep.subr.mxu0 0.0
  %1227 = vmatpush1.msra.mxu0 0.0
  %1228 = vmatprep.subr.mxu0 0.0
  %1229 = vmatpush1.msra.mxu0 0.0
  %1230 = vmatprep.subr.mxu0 0.0
  %1231 = vmatpush1.msra.mxu0 0.0
  %1232 = vmatprep.subr.mxu0 0.0
  %1233 = vmatpush1.msra.mxu0 0.0
  %1234 = vmatprep.subr.mxu0 0.0
  %1235 = vmatpush1.msra.mxu0 0.0
  %1236 = vmatprep.subr.mxu0 0.0
  %1237 = vmatpush1.msra.mxu0 0.0
  %1238 = vmatprep.subr.mxu0 0.0
  %1239 = vmatpush1.msra.mxu0 0.0
  %1240 = vmatprep.subr.mxu0 0.0
  %1241 = vmatpush1.msra.mxu0 0.0
  %1242 = vmatprep.subr.mxu0 0.0
  %1243 = vmatpush1.msra.mxu0 0.0
  %1244 = vmatprep.subr.mxu0 0.0
  %1245 = vmatpush1.msra.mxu0 0.0
  %1246 = vmatprep.subr.mxu0 0.0
  %1247 = vmatpush1.msra.mxu0 0.0
  %1248 = vmatprep.subr.mxu0 0.0
  %1249 = vmatpush1.msra.mxu0 0.0
  %1250 = vmatprep.subr.mxu0 0.0
  %1251 = vmatpush1.msra.mxu0 %v1200
  %1252 = vmatprep.subr.mxu0 0.0
  %1253 = vmatpush1.msra.mxu0 %v1195
  %1254 = vmatprep.subr.mxu0 0.0
  %1255 = vmatpush1.msra.mxu0 %v1190
  %1256 = vmatprep.subr.mxu0 0.0
  %1257 = vmatpush2.msra.mxu0 0.0
  %1258 = vmatprep.subr.mxu0 0.0
  %1259 = vmatpush2.msra.mxu0 0.0
  %1260 = vmatprep.subr.mxu0 0.0
  %1261 = vmatpush2.msra.mxu0 0.0
  %1262 = vmatprep.subr.mxu0 0.0
  %1263 = vmatpush2.msra.mxu0 0.0
  %1264 = vmatprep.subr.mxu0 0.0
  %1265 = vmatpush2.msra.mxu0 0.0
  %1266 = vmatprep.subr.mxu0 0.0
  %1267 = vmatpush2.msra.mxu0 0.0
  %1268 = vmatprep.subr.mxu0 0.0
  %1269 = vmatpush2.msra.mxu0 0.0
  %1270 = vmatprep.subr.mxu0 0.0
  %1271 = vmatpush2.msra.mxu0 0.0
  %1272 = vmatprep.subr.mxu0 0.0
  %1273 = vmatpush2.msra.mxu0 0.0
  %1274 = vmatprep.subr.mxu0 0.0
  %1275 = vmatpush2.msra.mxu0 0.0
  %1276 = vmatprep.subr.mxu0 0.0
  %1277 = vmatpush2.msra.mxu0 0.0
  %1278 = vmatprep.subr.mxu0 0.0
  %1279 = vmatpush2.msra.mxu0 0.0
  %1280 = vmatprep.subr.mxu0 0.0
  %1281 = vmatpush2.msra.mxu0 0.0
  %1282 = vmatprep.subr.mxu0 0.0
  %1283 = vmatpush2.msra.mxu0 0.0
  %1284 = vmatprep.subr.mxu0 0.0
  %1285 = vmatpush2.msra.mxu0 0.0
  %1286 = vmatprep.subr.mxu0 0.0
  %1287 = vmatpush2.msra.mxu0 0.0
  %1288 = vmatprep.mubr.f32.mxu0 0.0
  %1289 = vmatmul.mubr.f32.gmra.mxu0 %v1216
  %v1290 = vpop.f32.mrf.mxu0
  %v1291 = vadd.f32 %v1205, %v1290
  %v1292 = vpop.f32.mrf.mxu0
  %1293 = vmatprep.mubr.f32.mxu0 0.0
  %1294 = vmatmul.mubr.f32.gmra.mxu0 %v1219
  %v1295 = vpop.f32.mrf.mxu0
  %v1296 = vadd.f32 %v1209, %v1295
  %v1297 = vpop.f32.mrf.mxu0
  %1298 = vmatprep.mubr.f32.mxu0 0.0
  %1299 = vmatmul.mubr.f32.gmra.mxu0 %v1222
  %v1300 = vpop.f32.mrf.mxu0
  %v1301 = vadd.f32 %v1213, %v1300
  %v1302 = vpop.f32.mrf.mxu0
  %1303 = vdwg.mxu0
  %v1304 = vsel %vm146, %v1291, 0.0
  %1305 = vadd.xlane.f32.xlu0 %v1304
  %v1306 = vpop.xlane.xlu0 %1305
  %v1307 = vsel %vm146, %v1296, 0.0
  %1308 = vadd.xlane.f32.xlu0 %v1307
  %v1309 = vpop.xlane.xlu0 %1308
  %v1310 = vsel %vm146, %v1301, 0.0
  %1311 = vadd.xlane.f32.xlu0 %v1310
  %v1312 = vpop.xlane.xlu0 %1311
  %v1313 = vmul.f32 %v1291, %v1291
  %v1314 = vmul.f32 %v1296, %v1296
  %v1315 = vmul.f32 %v1301, %v1301
  %v1316 = vsel %vm146, %v1313, 0.0
  %1317 = vadd.xlane.f32.xlu0 %v1316
  %v1318 = vpop.xlane.xlu0 %1317
  %v1319 = vsel %vm146, %v1314, 0.0
  %1320 = vadd.xlane.f32.xlu0 %v1319
  %v1321 = vpop.xlane.xlu0 %1320
  %v1322 = vsel %vm146, %v1315, 0.0
  %1323 = vadd.xlane.f32.xlu0 %v1322
  %v1324 = vpop.xlane.xlu0 %1323
  %v1325 = vsel %vm168, %v1306, %v1318
  %v1326 = vsel %vm168, %v1309, %v1321
  %v1327 = vsel %vm168, %v1312, %v1324
  %1328 = vmatprep.subr.mxu0 0.0
  %1329 = vmatpush1.msra.mxu0 0.0
  %1330 = vmatprep.subr.mxu0 0.0
  %1331 = vmatpush1.msra.mxu0 0.0
  %1332 = vmatprep.subr.mxu0 0.0
  %1333 = vmatpush1.msra.mxu0 0.0
  %1334 = vmatprep.subr.mxu0 0.0
  %1335 = vmatpush1.msra.mxu0 0.0
  %1336 = vmatprep.subr.mxu0 0.0
  %1337 = vmatpush1.msra.mxu0 0.0
  %1338 = vmatprep.subr.mxu0 0.0
  %1339 = vmatpush1.msra.mxu0 0.0
  %1340 = vmatprep.subr.mxu0 0.0
  %1341 = vmatpush1.msra.mxu0 0.0
  %1342 = vmatprep.subr.mxu0 0.0
  %1343 = vmatpush1.msra.mxu0 0.0
  %1344 = vmatprep.subr.mxu0 0.0
  %1345 = vmatpush1.msra.mxu0 0.0
  %1346 = vmatprep.subr.mxu0 0.0
  %1347 = vmatpush1.msra.mxu0 0.0
  %1348 = vmatprep.subr.mxu0 0.0
  %1349 = vmatpush1.msra.mxu0 0.0
  %1350 = vmatprep.subr.mxu0 0.0
  %1351 = vmatpush1.msra.mxu0 0.0
  %1352 = vmatprep.subr.mxu0 0.0
  %1353 = vmatpush1.msra.mxu0 0.0
  %1354 = vmatprep.subr.mxu0 0.0
  %1355 = vmatpush1.msra.mxu0 %v1327
  %1356 = vmatprep.subr.mxu0 0.0
  %1357 = vmatpush1.msra.mxu0 %v1326
  %1358 = vmatprep.subr.mxu0 0.0
  %1359 = vmatpush1.msra.mxu0 %v1325
  %1360 = vmatprep.subr.mxu0 0.0
  %1361 = vmatpush2.msra.mxu0 0.0
  %1362 = vmatprep.subr.mxu0 0.0
  %1363 = vmatpush2.msra.mxu0 0.0
  %1364 = vmatprep.subr.mxu0 0.0
  %1365 = vmatpush2.msra.mxu0 0.0
  %1366 = vmatprep.subr.mxu0 0.0
  %1367 = vmatpush2.msra.mxu0 0.0
  %1368 = vmatprep.subr.mxu0 0.0
  %1369 = vmatpush2.msra.mxu0 0.0
  %1370 = vmatprep.subr.mxu0 0.0
  %1371 = vmatpush2.msra.mxu0 0.0
  %1372 = vmatprep.subr.mxu0 0.0
  %1373 = vmatpush2.msra.mxu0 0.0
  %1374 = vmatprep.subr.mxu0 0.0
  %1375 = vmatpush2.msra.mxu0 0.0
  %1376 = vmatprep.subr.mxu0 0.0
  %1377 = vmatpush2.msra.mxu0 0.0
  %1378 = vmatprep.subr.mxu0 0.0
  %1379 = vmatpush2.msra.mxu0 0.0
  %1380 = vmatprep.subr.mxu0 0.0
  %1381 = vmatpush2.msra.mxu0 0.0
  %1382 = vmatprep.subr.mxu0 0.0
  %1383 = vmatpush2.msra.mxu0 0.0
  %1384 = vmatprep.subr.mxu0 0.0
  %1385 = vmatpush2.msra.mxu0 0.0
  %1386 = vmatprep.subr.mxu0 0.0
  %1387 = vmatpush2.msra.mxu0 0.0
  %1388 = vmatprep.subr.mxu0 0.0
  %1389 = vmatpush2.msra.mxu0 0.0
  %1390 = vmatprep.subr.mxu0 0.0
  %1391 = vmatpush2.msra.mxu0 0.0
  %1392 = vmatprep.mubr.f32.mxu0 0.0
  %1393 = vmatmul.mubr.f32.gmra.mxu0 %v173
  %v1394 = vpop.f32.mrf.mxu0
  %v1395 = vadd.f32 0.0, %v1394
  %v1396 = vpop.f32.mrf.mxu0
  %1397 = vmatprep.mubr.f32.mxu0 0.0
  %1398 = vmatmul.mubr.f32.gmra.mxu0 %v176
  %v1399 = vpop.f32.mrf.mxu0
  %v1400 = vadd.f32 0.0, %v1399
  %v1401 = vpop.f32.mrf.mxu0
  %1402 = vmatprep.mubr.f32.mxu0 0.0
  %1403 = vmatmul.mubr.f32.gmra.mxu0 %v179
  %v1404 = vpop.f32.mrf.mxu0
  %v1405 = vadd.f32 0.0, %v1404
  %v1406 = vpop.f32.mrf.mxu0
  %1407 = vdwg.mxu0
  %v1408 = vmul.f32 %v1395, 0.0078125
  %v1409 = vmul.f32 %v1400, 0.0078125
  %v1410 = vmul.f32 %v1405, 0.0078125
  %v1411 = vmul.f32 %v1408, %v1408
  %v1412 = vmul.f32 %v1409, %v1409
  %v1413 = vmul.f32 %v1410, %v1410
  %1417 = vrot.lane.b32.xlu0 %v1411, 1
  %v1418 = vpop.permute.xlu0 %1417
  %1419 = vrot.lane.b32.xlu0 %v1412, 1
  %v1420 = vpop.permute.xlu0 %1419
  %1421 = vrot.lane.b32.xlu0 %v1413, 1
  %v1422 = vpop.permute.xlu0 %1421
  %v1426 = vsub.f32 %v1408, %v1418
  %v1427 = vsub.f32 %v1409, %v1420
  %v1428 = vsub.f32 %v1410, %v1422
  %v1429 = vadd.f32 %v1426, 1e-06
  %v1430 = vadd.f32 %v1427, 1e-06
  %v1431 = vadd.f32 %v1428, 1e-06
  %v1432 = vrsqrt.pop %v1429
  %v1433 = vrsqrt.pop %v1430
  %v1434 = vrsqrt.pop %v1431
  %1436 = vset.pattern.permute.xlu0 0
  %1437 = vperm.xlu0 %1436, %v1408
  %v1438 = vpop.permute.xlu0 %1437
  %1441 = vset.pattern.permute.xlu0 0
  %1442 = vperm.xlu0 %1441, %v1409
  %v1443 = vpop.permute.xlu0 %1442
  %1446 = vset.pattern.permute.xlu0 0
  %1447 = vperm.xlu0 %1446, %v1410
  %v1448 = vpop.permute.xlu0 %1447
  %v1450 = vsub.f32 %v1291, %v1438
  %v1451 = vsub.f32 %v1296, %v1443
  %v1452 = vsub.f32 %v1301, %v1448
  %1453 = vrot.lane.b32.xlu0 %v35, 106
  %v1454 = vpop.permute.xlu0 %1453
  %1455 = vrot.lane.b32.xlu0 %v36, 106
  %v1456 = vpop.permute.xlu0 %1455
  %1457 = vrot.lane.b32.xlu0 %v37, 106
  %v1458 = vpop.permute.xlu0 %1457
  %v1462 = vmul.f32 %v1432, %v1454
  %v1463 = vmul.f32 %v1433, %v1456
  %v1464 = vmul.f32 %v1434, %v1458
  %1466 = vset.pattern.permute.xlu0 1
  %1467 = vperm.xlu0 %1466, %v1462
  %v1468 = vpop.permute.xlu0 %1467
  %1471 = vset.pattern.permute.xlu0 1
  %1472 = vperm.xlu0 %1471, %v1463
  %v1473 = vpop.permute.xlu0 %1472
  %1476 = vset.pattern.permute.xlu0 1
  %1477 = vperm.xlu0 %1476, %v1464
  %v1478 = vpop.permute.xlu0 %1477
  %v1480 = vmul.f32 %v1450, %v1468
  %v1481 = vmul.f32 %v1451, %v1473
  %v1482 = vmul.f32 %v1452, %v1478
  %1483 = vset.pattern.permute.xlu0 24
  %1484 = vperm.xlu0 %1483, %v35
  %v1485 = vpop.permute.xlu0 %1484
  %1487 = vset.pattern.permute.xlu0 24
  %1488 = vperm.xlu0 %1487, %v36
  %v1489 = vpop.permute.xlu0 %1488
  %1491 = vset.pattern.permute.xlu0 24
  %1492 = vperm.xlu0 %1491, %v37
  %v1493 = vpop.permute.xlu0 %1492
  %v1495 = vadd.f32 %v1480, %v1485
  %v1496 = vadd.f32 %v1481, %v1489
  %v1497 = vadd.f32 %v1482, %v1493
  %v1498 = vmax.f32 %v1495, 0.0
  %v1499 = vmax.f32 %v1496, 0.0
  %v1500 = vmax.f32 %v1497, 0.0
  %v1501 = vld [vmem:[%s2 + $0x90] sm:$0xff]
  %v1502 = vld [vmem:[%s2 + $0x98] sm:$0xff]
  %v1503 = vld [vmem:[%s2 + $0xa0] sm:$0xff]
  %v1505 = vsel %vm56, %v1501, 0
  %v1508 = vsel %vm56, %v1502, 0
  %v1511 = vsel %vm56, %v1503, 0
  %1513 = vmatprep.subr.mxu0 0.0
  %1514 = vmatpush1.msra.mxu0 0.0
  %1515 = vmatprep.subr.mxu0 0.0
  %1516 = vmatpush1.msra.mxu0 0.0
  %1517 = vmatprep.subr.mxu0 0.0
  %1518 = vmatpush1.msra.mxu0 0.0
  %1519 = vmatprep.subr.mxu0 0.0
  %1520 = vmatpush1.msra.mxu0 0.0
  %1521 = vmatprep.subr.mxu0 0.0
  %1522 = vmatpush1.msra.mxu0 0.0
  %1523 = vmatprep.subr.mxu0 0.0
  %1524 = vmatpush1.msra.mxu0 0.0
  %1525 = vmatprep.subr.mxu0 0.0
  %1526 = vmatpush1.msra.mxu0 0.0
  %1527 = vmatprep.subr.mxu0 0.0
  %1528 = vmatpush1.msra.mxu0 0.0
  %1529 = vmatprep.subr.mxu0 0.0
  %1530 = vmatpush1.msra.mxu0 0.0
  %1531 = vmatprep.subr.mxu0 0.0
  %1532 = vmatpush1.msra.mxu0 0.0
  %1533 = vmatprep.subr.mxu0 0.0
  %1534 = vmatpush1.msra.mxu0 0.0
  %1535 = vmatprep.subr.mxu0 0.0
  %1536 = vmatpush1.msra.mxu0 0.0
  %1537 = vmatprep.subr.mxu0 0.0
  %1538 = vmatpush1.msra.mxu0 0.0
  %1539 = vmatprep.subr.mxu0 0.0
  %1540 = vmatpush1.msra.mxu0 %v1500
  %1541 = vmatprep.subr.mxu0 0.0
  %1542 = vmatpush1.msra.mxu0 %v1499
  %1543 = vmatprep.subr.mxu0 0.0
  %1544 = vmatpush1.msra.mxu0 %v1498
  %1545 = vmatprep.subr.mxu0 0.0
  %1546 = vmatpush2.msra.mxu0 0.0
  %1547 = vmatprep.subr.mxu0 0.0
  %1548 = vmatpush2.msra.mxu0 0.0
  %1549 = vmatprep.subr.mxu0 0.0
  %1550 = vmatpush2.msra.mxu0 0.0
  %1551 = vmatprep.subr.mxu0 0.0
  %1552 = vmatpush2.msra.mxu0 0.0
  %1553 = vmatprep.subr.mxu0 0.0
  %1554 = vmatpush2.msra.mxu0 0.0
  %1555 = vmatprep.subr.mxu0 0.0
  %1556 = vmatpush2.msra.mxu0 0.0
  %1557 = vmatprep.subr.mxu0 0.0
  %1558 = vmatpush2.msra.mxu0 0.0
  %1559 = vmatprep.subr.mxu0 0.0
  %1560 = vmatpush2.msra.mxu0 0.0
  %1561 = vmatprep.subr.mxu0 0.0
  %1562 = vmatpush2.msra.mxu0 0.0
  %1563 = vmatprep.subr.mxu0 0.0
  %1564 = vmatpush2.msra.mxu0 0.0
  %1565 = vmatprep.subr.mxu0 0.0
  %1566 = vmatpush2.msra.mxu0 0.0
  %1567 = vmatprep.subr.mxu0 0.0
  %1568 = vmatpush2.msra.mxu0 0.0
  %1569 = vmatprep.subr.mxu0 0.0
  %1570 = vmatpush2.msra.mxu0 0.0
  %1571 = vmatprep.subr.mxu0 0.0
  %1572 = vmatpush2.msra.mxu0 0.0
  %1573 = vmatprep.subr.mxu0 0.0
  %1574 = vmatpush2.msra.mxu0 0.0
  %1575 = vmatprep.subr.mxu0 0.0
  %1576 = vmatpush2.msra.mxu0 0.0
  %1577 = vmatprep.mubr.f32.mxu0 0.0
  %1578 = vmatmul.mubr.f32.gmra.mxu0 %v1505
  %v1579 = vpop.f32.mrf.mxu0
  %v1580 = vadd.f32 0.0, %v1579
  %v1581 = vpop.f32.mrf.mxu0
  %1582 = vmatprep.mubr.f32.mxu0 0.0
  %1583 = vmatmul.mubr.f32.gmra.mxu0 %v1508
  %v1584 = vpop.f32.mrf.mxu0
  %v1585 = vadd.f32 0.0, %v1584
  %v1586 = vpop.f32.mrf.mxu0
  %1587 = vmatprep.mubr.f32.mxu0 0.0
  %1588 = vmatmul.mubr.f32.gmra.mxu0 %v1511
  %v1589 = vpop.f32.mrf.mxu0
  %v1590 = vadd.f32 0.0, %v1589
  %v1591 = vpop.f32.mrf.mxu0
  %1592 = vdwg.mxu0
  %v1593 = vld [vmem:[%s2 + $0xa8] sm:$0xff]
  %v1594 = vld [vmem:[%s2 + $0xb0] sm:$0xff]
  %v1595 = vld [vmem:[%s2 + $0xb8] sm:$0xff]
  %v1597 = vsel %vm56, %v1593, 0
  %v1600 = vsel %vm56, %v1594, 0
  %v1603 = vsel %vm56, %v1595, 0
  %1605 = vmatprep.subr.mxu0 0.0
  %1606 = vmatpush1.msra.mxu0 0.0
  %1607 = vmatprep.subr.mxu0 0.0
  %1608 = vmatpush1.msra.mxu0 0.0
  %1609 = vmatprep.subr.mxu0 0.0
  %1610 = vmatpush1.msra.mxu0 0.0
  %1611 = vmatprep.subr.mxu0 0.0
  %1612 = vmatpush1.msra.mxu0 0.0
  %1613 = vmatprep.subr.mxu0 0.0
  %1614 = vmatpush1.msra.mxu0 0.0
  %1615 = vmatprep.subr.mxu0 0.0
  %1616 = vmatpush1.msra.mxu0 0.0
  %1617 = vmatprep.subr.mxu0 0.0
  %1618 = vmatpush1.msra.mxu0 0.0
  %1619 = vmatprep.subr.mxu0 0.0
  %1620 = vmatpush1.msra.mxu0 0.0
  %1621 = vmatprep.subr.mxu0 0.0
  %1622 = vmatpush1.msra.mxu0 0.0
  %1623 = vmatprep.subr.mxu0 0.0
  %1624 = vmatpush1.msra.mxu0 0.0
  %1625 = vmatprep.subr.mxu0 0.0
  %1626 = vmatpush1.msra.mxu0 0.0
  %1627 = vmatprep.subr.mxu0 0.0
  %1628 = vmatpush1.msra.mxu0 0.0
  %1629 = vmatprep.subr.mxu0 0.0
  %1630 = vmatpush1.msra.mxu0 0.0
  %1631 = vmatprep.subr.mxu0 0.0
  %1632 = vmatpush1.msra.mxu0 %v1500
  %1633 = vmatprep.subr.mxu0 0.0
  %1634 = vmatpush1.msra.mxu0 %v1499
  %1635 = vmatprep.subr.mxu0 0.0
  %1636 = vmatpush1.msra.mxu0 %v1498
  %1637 = vmatprep.subr.mxu0 0.0
  %1638 = vmatpush2.msra.mxu0 0.0
  %1639 = vmatprep.subr.mxu0 0.0
  %1640 = vmatpush2.msra.mxu0 0.0
  %1641 = vmatprep.subr.mxu0 0.0
  %1642 = vmatpush2.msra.mxu0 0.0
  %1643 = vmatprep.subr.mxu0 0.0
  %1644 = vmatpush2.msra.mxu0 0.0
  %1645 = vmatprep.subr.mxu0 0.0
  %1646 = vmatpush2.msra.mxu0 0.0
  %1647 = vmatprep.subr.mxu0 0.0
  %1648 = vmatpush2.msra.mxu0 0.0
  %1649 = vmatprep.subr.mxu0 0.0
  %1650 = vmatpush2.msra.mxu0 0.0
  %1651 = vmatprep.subr.mxu0 0.0
  %1652 = vmatpush2.msra.mxu0 0.0
  %1653 = vmatprep.subr.mxu0 0.0
  %1654 = vmatpush2.msra.mxu0 0.0
  %1655 = vmatprep.subr.mxu0 0.0
  %1656 = vmatpush2.msra.mxu0 0.0
  %1657 = vmatprep.subr.mxu0 0.0
  %1658 = vmatpush2.msra.mxu0 0.0
  %1659 = vmatprep.subr.mxu0 0.0
  %1660 = vmatpush2.msra.mxu0 0.0
  %1661 = vmatprep.subr.mxu0 0.0
  %1662 = vmatpush2.msra.mxu0 0.0
  %1663 = vmatprep.subr.mxu0 0.0
  %1664 = vmatpush2.msra.mxu0 0.0
  %1665 = vmatprep.subr.mxu0 0.0
  %1666 = vmatpush2.msra.mxu0 0.0
  %1667 = vmatprep.subr.mxu0 0.0
  %1668 = vmatpush2.msra.mxu0 0.0
  %1669 = vmatprep.mubr.f32.mxu0 0.0
  %1670 = vmatmul.mubr.f32.gmra.mxu0 %v1597
  %v1671 = vpop.f32.mrf.mxu0
  %v1672 = vadd.f32 0.0, %v1671
  %v1673 = vpop.f32.mrf.mxu0
  %1674 = vmatprep.mubr.f32.mxu0 0.0
  %1675 = vmatmul.mubr.f32.gmra.mxu0 %v1600
  %v1676 = vpop.f32.mrf.mxu0
  %v1677 = vadd.f32 0.0, %v1676
  %v1678 = vpop.f32.mrf.mxu0
  %1679 = vmatprep.mubr.f32.mxu0 0.0
  %1680 = vmatmul.mubr.f32.gmra.mxu0 %v1603
  %v1681 = vpop.f32.mrf.mxu0
  %v1682 = vadd.f32 0.0, %v1681
  %v1683 = vpop.f32.mrf.mxu0
  %1684 = vdwg.mxu0
  %v1685 = vld [vmem:[%s2 + $0xc0] sm:$0xff]
  %v1686 = vld [vmem:[%s2 + $0xc8] sm:$0xff]
  %v1687 = vld [vmem:[%s2 + $0xd0] sm:$0xff]
  %v1689 = vsel %vm56, %v1685, 0
  %v1692 = vsel %vm56, %v1686, 0
  %v1695 = vsel %vm56, %v1687, 0
  %1697 = vmatprep.subr.mxu0 0.0
  %1698 = vmatpush1.msra.mxu0 0.0
  %1699 = vmatprep.subr.mxu0 0.0
  %1700 = vmatpush1.msra.mxu0 0.0
  %1701 = vmatprep.subr.mxu0 0.0
  %1702 = vmatpush1.msra.mxu0 0.0
  %1703 = vmatprep.subr.mxu0 0.0
  %1704 = vmatpush1.msra.mxu0 0.0
  %1705 = vmatprep.subr.mxu0 0.0
  %1706 = vmatpush1.msra.mxu0 0.0
  %1707 = vmatprep.subr.mxu0 0.0
  %1708 = vmatpush1.msra.mxu0 0.0
  %1709 = vmatprep.subr.mxu0 0.0
  %1710 = vmatpush1.msra.mxu0 0.0
  %1711 = vmatprep.subr.mxu0 0.0
  %1712 = vmatpush1.msra.mxu0 0.0
  %1713 = vmatprep.subr.mxu0 0.0
  %1714 = vmatpush1.msra.mxu0 0.0
  %1715 = vmatprep.subr.mxu0 0.0
  %1716 = vmatpush1.msra.mxu0 0.0
  %1717 = vmatprep.subr.mxu0 0.0
  %1718 = vmatpush1.msra.mxu0 0.0
  %1719 = vmatprep.subr.mxu0 0.0
  %1720 = vmatpush1.msra.mxu0 0.0
  %1721 = vmatprep.subr.mxu0 0.0
  %1722 = vmatpush1.msra.mxu0 0.0
  %1723 = vmatprep.subr.mxu0 0.0
  %1724 = vmatpush1.msra.mxu0 %v1500
  %1725 = vmatprep.subr.mxu0 0.0
  %1726 = vmatpush1.msra.mxu0 %v1499
  %1727 = vmatprep.subr.mxu0 0.0
  %1728 = vmatpush1.msra.mxu0 %v1498
  %1729 = vmatprep.subr.mxu0 0.0
  %1730 = vmatpush2.msra.mxu0 0.0
  %1731 = vmatprep.subr.mxu0 0.0
  %1732 = vmatpush2.msra.mxu0 0.0
  %1733 = vmatprep.subr.mxu0 0.0
  %1734 = vmatpush2.msra.mxu0 0.0
  %1735 = vmatprep.subr.mxu0 0.0
  %1736 = vmatpush2.msra.mxu0 0.0
  %1737 = vmatprep.subr.mxu0 0.0
  %1738 = vmatpush2.msra.mxu0 0.0
  %1739 = vmatprep.subr.mxu0 0.0
  %1740 = vmatpush2.msra.mxu0 0.0
  %1741 = vmatprep.subr.mxu0 0.0
  %1742 = vmatpush2.msra.mxu0 0.0
  %1743 = vmatprep.subr.mxu0 0.0
  %1744 = vmatpush2.msra.mxu0 0.0
  %1745 = vmatprep.subr.mxu0 0.0
  %1746 = vmatpush2.msra.mxu0 0.0
  %1747 = vmatprep.subr.mxu0 0.0
  %1748 = vmatpush2.msra.mxu0 0.0
  %1749 = vmatprep.subr.mxu0 0.0
  %1750 = vmatpush2.msra.mxu0 0.0
  %1751 = vmatprep.subr.mxu0 0.0
  %1752 = vmatpush2.msra.mxu0 0.0
  %1753 = vmatprep.subr.mxu0 0.0
  %1754 = vmatpush2.msra.mxu0 0.0
  %1755 = vmatprep.subr.mxu0 0.0
  %1756 = vmatpush2.msra.mxu0 0.0
  %1757 = vmatprep.subr.mxu0 0.0
  %1758 = vmatpush2.msra.mxu0 0.0
  %1759 = vmatprep.subr.mxu0 0.0
  %1760 = vmatpush2.msra.mxu0 0.0
  %1761 = vmatprep.mubr.f32.mxu0 0.0
  %1762 = vmatmul.mubr.f32.gmra.mxu0 %v1689
  %v1763 = vpop.f32.mrf.mxu0
  %v1764 = vadd.f32 0.0, %v1763
  %v1765 = vpop.f32.mrf.mxu0
  %1766 = vmatprep.mubr.f32.mxu0 0.0
  %1767 = vmatmul.mubr.f32.gmra.mxu0 %v1692
  %v1768 = vpop.f32.mrf.mxu0
  %v1769 = vadd.f32 0.0, %v1768
  %v1770 = vpop.f32.mrf.mxu0
  %1771 = vmatprep.mubr.f32.mxu0 0.0
  %1772 = vmatmul.mubr.f32.gmra.mxu0 %v1695
  %v1773 = vpop.f32.mrf.mxu0
  %v1774 = vadd.f32 0.0, %v1773
  %v1775 = vpop.f32.mrf.mxu0
  %1776 = vdwg.mxu0
  %v1777 = vld [vmem:[%s2 + $0xd8] sm:$0xff]
  %v1778 = vld [vmem:[%s2 + $0xe0] sm:$0xff]
  %v1779 = vld [vmem:[%s2 + $0xe8] sm:$0xff]
  %v1781 = vsel %vm56, %v1777, 0
  %v1784 = vsel %vm56, %v1778, 0
  %v1787 = vsel %vm56, %v1779, 0
  %1789 = vmatprep.subr.mxu0 0.0
  %1790 = vmatpush1.msra.mxu0 0.0
  %1791 = vmatprep.subr.mxu0 0.0
  %1792 = vmatpush1.msra.mxu0 0.0
  %1793 = vmatprep.subr.mxu0 0.0
  %1794 = vmatpush1.msra.mxu0 0.0
  %1795 = vmatprep.subr.mxu0 0.0
  %1796 = vmatpush1.msra.mxu0 0.0
  %1797 = vmatprep.subr.mxu0 0.0
  %1798 = vmatpush1.msra.mxu0 0.0
  %1799 = vmatprep.subr.mxu0 0.0
  %1800 = vmatpush1.msra.mxu0 0.0
  %1801 = vmatprep.subr.mxu0 0.0
  %1802 = vmatpush1.msra.mxu0 0.0
  %1803 = vmatprep.subr.mxu0 0.0
  %1804 = vmatpush1.msra.mxu0 0.0
  %1805 = vmatprep.subr.mxu0 0.0
  %1806 = vmatpush1.msra.mxu0 0.0
  %1807 = vmatprep.subr.mxu0 0.0
  %1808 = vmatpush1.msra.mxu0 0.0
  %1809 = vmatprep.subr.mxu0 0.0
  %1810 = vmatpush1.msra.mxu0 0.0
  %1811 = vmatprep.subr.mxu0 0.0
  %1812 = vmatpush1.msra.mxu0 0.0
  %1813 = vmatprep.subr.mxu0 0.0
  %1814 = vmatpush1.msra.mxu0 0.0
  %1815 = vmatprep.subr.mxu0 0.0
  %1816 = vmatpush1.msra.mxu0 %v1500
  %1817 = vmatprep.subr.mxu0 0.0
  %1818 = vmatpush1.msra.mxu0 %v1499
  %1819 = vmatprep.subr.mxu0 0.0
  %1820 = vmatpush1.msra.mxu0 %v1498
  %1821 = vmatprep.subr.mxu0 0.0
  %1822 = vmatpush2.msra.mxu0 0.0
  %1823 = vmatprep.subr.mxu0 0.0
  %1824 = vmatpush2.msra.mxu0 0.0
  %1825 = vmatprep.subr.mxu0 0.0
  %1826 = vmatpush2.msra.mxu0 0.0
  %1827 = vmatprep.subr.mxu0 0.0
  %1828 = vmatpush2.msra.mxu0 0.0
  %1829 = vmatprep.subr.mxu0 0.0
  %1830 = vmatpush2.msra.mxu0 0.0
  %1831 = vmatprep.subr.mxu0 0.0
  %1832 = vmatpush2.msra.mxu0 0.0
  %1833 = vmatprep.subr.mxu0 0.0
  %1834 = vmatpush2.msra.mxu0 0.0
  %1835 = vmatprep.subr.mxu0 0.0
  %1836 = vmatpush2.msra.mxu0 0.0
  %1837 = vmatprep.subr.mxu0 0.0
  %1838 = vmatpush2.msra.mxu0 0.0
  %1839 = vmatprep.subr.mxu0 0.0
  %1840 = vmatpush2.msra.mxu0 0.0
  %1841 = vmatprep.subr.mxu0 0.0
  %1842 = vmatpush2.msra.mxu0 0.0
  %1843 = vmatprep.subr.mxu0 0.0
  %1844 = vmatpush2.msra.mxu0 0.0
  %1845 = vmatprep.subr.mxu0 0.0
  %1846 = vmatpush2.msra.mxu0 0.0
  %1847 = vmatprep.subr.mxu0 0.0
  %1848 = vmatpush2.msra.mxu0 0.0
  %1849 = vmatprep.subr.mxu0 0.0
  %1850 = vmatpush2.msra.mxu0 0.0
  %1851 = vmatprep.subr.mxu0 0.0
  %1852 = vmatpush2.msra.mxu0 0.0
  %1853 = vmatprep.mubr.f32.mxu0 0.0
  %1854 = vmatmul.mubr.f32.gmra.mxu0 %v1781
  %v1855 = vpop.f32.mrf.mxu0
  %v1856 = vadd.f32 0.0, %v1855
  %v1857 = vpop.f32.mrf.mxu0
  %1858 = vmatprep.mubr.f32.mxu0 0.0
  %1859 = vmatmul.mubr.f32.gmra.mxu0 %v1784
  %v1860 = vpop.f32.mrf.mxu0
  %v1861 = vadd.f32 0.0, %v1860
  %v1862 = vpop.f32.mrf.mxu0
  %1863 = vmatprep.mubr.f32.mxu0 0.0
  %1864 = vmatmul.mubr.f32.gmra.mxu0 %v1787
  %v1865 = vpop.f32.mrf.mxu0
  %v1866 = vadd.f32 0.0, %v1865
  %v1867 = vpop.f32.mrf.mxu0
  %1868 = vdwg.mxu0
  %1872 = vrot.lane.b32.xlu0 %v1672, 64
  %v1873 = vpop.permute.xlu0 %1872
  %1874 = vrot.lane.b32.xlu0 %v1677, 64
  %v1875 = vpop.permute.xlu0 %1874
  %1876 = vrot.lane.b32.xlu0 %v1682, 64
  %v1877 = vpop.permute.xlu0 %1876
  %1884 = vrot.lane.b32.xlu0 %v1856, 64
  %v1885 = vpop.permute.xlu0 %1884
  %1886 = vrot.lane.b32.xlu0 %v1861, 64
  %v1887 = vpop.permute.xlu0 %1886
  %1888 = vrot.lane.b32.xlu0 %v1866, 64
  %v1889 = vpop.permute.xlu0 %1888
  %v1893 = vsel %vm146, %v1580, %v1873
  %v1894 = vsel %vm146, %v1585, %v1875
  %v1895 = vsel %vm146, %v1590, %v1877
  %v1896 = vsel %vm146, %v1764, %v1885
  %v1897 = vsel %vm146, %v1769, %v1887
  %v1898 = vsel %vm146, %v1774, %v1889
  %1899 = vset.pattern.permute.xlu0 25
  %1900 = vperm.xlu0 %1899, %v35
  %v1901 = vpop.permute.xlu0 %1900
  %1903 = vset.pattern.permute.xlu0 25
  %1904 = vperm.xlu0 %1903, %v36
  %v1905 = vpop.permute.xlu0 %1904
  %1907 = vset.pattern.permute.xlu0 25
  %1908 = vperm.xlu0 %1907, %v37
  %v1909 = vpop.permute.xlu0 %1908
  %v1911 = vadd.f32 %v1893, %v1901
  %v1912 = vadd.f32 %v1896, %v1901
  %v1913 = vadd.f32 %v1894, %v1905
  %v1914 = vadd.f32 %v1897, %v1905
  %v1915 = vadd.f32 %v1895, %v1909
  %v1916 = vadd.f32 %v1898, %v1909
  %1917 = vst [vmem:[%s4] sm:$0xff] %v1911
  %1918 = vst [vmem:[%s4 + $0x8] sm:$0xff] %v1912
  %1919 = vst [vmem:[%s4 + $0x10] sm:$0xff] %v1913
  %1920 = vst [vmem:[%s4 + $0x18] sm:$0xff] %v1914
  %1921 = vst [vmem:[%s4 + $0x20] sm:$0xff] %v1915
  %1922 = vst [vmem:[%s4 + $0x28] sm:$0xff] %v1916
  %s1923 = scalar_lea.vmem %s1, 24
  %v1924 = vld [vmem:[%s1923] sm:$0xff]
  %v1925 = vld [vmem:[%s1923 + $0x8] sm:$0xff]
  %v1926 = vld [vmem:[%s1923 + $0x10] sm:$0xff]
  %1927 = vmatprep.subr.mxu0 0.0
  %1928 = vmatpush1.msra.mxu0 0.0
  %1929 = vmatprep.subr.mxu0 0.0
  %1930 = vmatpush1.msra.mxu0 0.0
  %1931 = vmatprep.subr.mxu0 0.0
  %1932 = vmatpush1.msra.mxu0 0.0
  %1933 = vmatprep.subr.mxu0 0.0
  %1934 = vmatpush1.msra.mxu0 0.0
  %1935 = vmatprep.subr.mxu0 0.0
  %1936 = vmatpush1.msra.mxu0 0.0
  %1937 = vmatprep.subr.mxu0 0.0
  %1938 = vmatpush1.msra.mxu0 0.0
  %1939 = vmatprep.subr.mxu0 0.0
  %1940 = vmatpush1.msra.mxu0 0.0
  %1941 = vmatprep.subr.mxu0 0.0
  %1942 = vmatpush1.msra.mxu0 0.0
  %1943 = vmatprep.subr.mxu0 0.0
  %1944 = vmatpush1.msra.mxu0 0.0
  %1945 = vmatprep.subr.mxu0 0.0
  %1946 = vmatpush1.msra.mxu0 0.0
  %1947 = vmatprep.subr.mxu0 0.0
  %1948 = vmatpush1.msra.mxu0 0.0
  %1949 = vmatprep.subr.mxu0 0.0
  %1950 = vmatpush1.msra.mxu0 0.0
  %1951 = vmatprep.subr.mxu0 0.0
  %1952 = vmatpush1.msra.mxu0 0.0
  %1953 = vmatprep.subr.mxu0 0.0
  %1954 = vmatpush1.msra.mxu0 %v1926
  %1955 = vmatprep.subr.mxu0 0.0
  %1956 = vmatpush1.msra.mxu0 %v1925
  %1957 = vmatprep.subr.mxu0 0.0
  %1958 = vmatpush1.msra.mxu0 %v1924
  %1959 = vmatprep.subr.mxu0 0.0
  %1960 = vmatpush2.msra.mxu0 0.0
  %1961 = vmatprep.subr.mxu0 0.0
  %1962 = vmatpush2.msra.mxu0 0.0
  %1963 = vmatprep.subr.mxu0 0.0
  %1964 = vmatpush2.msra.mxu0 0.0
  %1965 = vmatprep.subr.mxu0 0.0
  %1966 = vmatpush2.msra.mxu0 0.0
  %1967 = vmatprep.subr.mxu0 0.0
  %1968 = vmatpush2.msra.mxu0 0.0
  %1969 = vmatprep.subr.mxu0 0.0
  %1970 = vmatpush2.msra.mxu0 0.0
  %1971 = vmatprep.subr.mxu0 0.0
  %1972 = vmatpush2.msra.mxu0 0.0
  %1973 = vmatprep.subr.mxu0 0.0
  %1974 = vmatpush2.msra.mxu0 0.0
  %1975 = vmatprep.subr.mxu0 0.0
  %1976 = vmatpush2.msra.mxu0 0.0
  %1977 = vmatprep.subr.mxu0 0.0
  %1978 = vmatpush2.msra.mxu0 0.0
  %1979 = vmatprep.subr.mxu0 0.0
  %1980 = vmatpush2.msra.mxu0 0.0
  %1981 = vmatprep.subr.mxu0 0.0
  %1982 = vmatpush2.msra.mxu0 0.0
  %1983 = vmatprep.subr.mxu0 0.0
  %1984 = vmatpush2.msra.mxu0 0.0
  %1985 = vmatprep.subr.mxu0 0.0
  %1986 = vmatpush2.msra.mxu0 0.0
  %1987 = vmatprep.subr.mxu0 0.0
  %1988 = vmatpush2.msra.mxu0 0.0
  %1989 = vmatprep.subr.mxu0 0.0
  %1990 = vmatpush2.msra.mxu0 0.0
  %1991 = vmatprep.mubr.f32.mxu0 0.0
  %1992 = vmatmul.mubr.f32.gmra.mxu0 %v58
  %v1993 = vpop.f32.mrf.mxu0
  %v1994 = vadd.f32 %v44, %v1993
  %v1995 = vpop.f32.mrf.mxu0
  %1996 = vmatprep.mubr.f32.mxu0 0.0
  %1997 = vmatmul.mubr.f32.gmra.mxu0 %v61
  %v1998 = vpop.f32.mrf.mxu0
  %v1999 = vadd.f32 %v49, %v1998
  %v2000 = vpop.f32.mrf.mxu0
  %2001 = vmatprep.mubr.f32.mxu0 0.0
  %2002 = vmatmul.mubr.f32.gmra.mxu0 %v64
  %v2003 = vpop.f32.mrf.mxu0
  %v2004 = vadd.f32 %v54, %v2003
  %v2005 = vpop.f32.mrf.mxu0
  %2006 = vdwg.mxu0
  %v2007 = vsel %vm146, %v1994, 0.0
  %2008 = vadd.xlane.f32.xlu0 %v2007
  %v2009 = vpop.xlane.xlu0 %2008
  %v2010 = vsel %vm146, %v1999, 0.0
  %2011 = vadd.xlane.f32.xlu0 %v2010
  %v2012 = vpop.xlane.xlu0 %2011
  %v2013 = vsel %vm146, %v2004, 0.0
  %2014 = vadd.xlane.f32.xlu0 %v2013
  %v2015 = vpop.xlane.xlu0 %2014
  %v2016 = vmul.f32 %v1994, %v1994
  %v2017 = vmul.f32 %v1999, %v1999
  %v2018 = vmul.f32 %v2004, %v2004
  %v2019 = vsel %vm146, %v2016, 0.0
  %2020 = vadd.xlane.f32.xlu0 %v2019
  %v2021 = vpop.xlane.xlu0 %2020
  %v2022 = vsel %vm146, %v2017, 0.0
  %2023 = vadd.xlane.f32.xlu0 %v2022
  %v2024 = vpop.xlane.xlu0 %2023
  %v2025 = vsel %vm146, %v2018, 0.0
  %2026 = vadd.xlane.f32.xlu0 %v2025
  %v2027 = vpop.xlane.xlu0 %2026
  %v2028 = vsel %vm168, %v2009, %v2021
  %v2029 = vsel %vm168, %v2012, %v2024
  %v2030 = vsel %vm168, %v2015, %v2027
  %2031 = vmatprep.subr.mxu0 0.0
  %2032 = vmatpush1.msra.mxu0 0.0
  %2033 = vmatprep.subr.mxu0 0.0
  %2034 = vmatpush1.msra.mxu0 0.0
  %2035 = vmatprep.subr.mxu0 0.0
  %2036 = vmatpush1.msra.mxu0 0.0
  %2037 = vmatprep.subr.mxu0 0.0
  %2038 = vmatpush1.msra.mxu0 0.0
  %2039 = vmatprep.subr.mxu0 0.0
  %2040 = vmatpush1.msra.mxu0 0.0
  %2041 = vmatprep.subr.mxu0 0.0
  %2042 = vmatpush1.msra.mxu0 0.0
  %2043 = vmatprep.subr.mxu0 0.0
  %2044 = vmatpush1.msra.mxu0 0.0
  %2045 = vmatprep.subr.mxu0 0.0
  %2046 = vmatpush1.msra.mxu0 0.0
  %2047 = vmatprep.subr.mxu0 0.0
  %2048 = vmatpush1.msra.mxu0 0.0
  %2049 = vmatprep.subr.mxu0 0.0
  %2050 = vmatpush1.msra.mxu0 0.0
  %2051 = vmatprep.subr.mxu0 0.0
  %2052 = vmatpush1.msra.mxu0 0.0
  %2053 = vmatprep.subr.mxu0 0.0
  %2054 = vmatpush1.msra.mxu0 0.0
  %2055 = vmatprep.subr.mxu0 0.0
  %2056 = vmatpush1.msra.mxu0 0.0
  %2057 = vmatprep.subr.mxu0 0.0
  %2058 = vmatpush1.msra.mxu0 %v2030
  %2059 = vmatprep.subr.mxu0 0.0
  %2060 = vmatpush1.msra.mxu0 %v2029
  %2061 = vmatprep.subr.mxu0 0.0
  %2062 = vmatpush1.msra.mxu0 %v2028
  %2063 = vmatprep.subr.mxu0 0.0
  %2064 = vmatpush2.msra.mxu0 0.0
  %2065 = vmatprep.subr.mxu0 0.0
  %2066 = vmatpush2.msra.mxu0 0.0
  %2067 = vmatprep.subr.mxu0 0.0
  %2068 = vmatpush2.msra.mxu0 0.0
  %2069 = vmatprep.subr.mxu0 0.0
  %2070 = vmatpush2.msra.mxu0 0.0
  %2071 = vmatprep.subr.mxu0 0.0
  %2072 = vmatpush2.msra.mxu0 0.0
  %2073 = vmatprep.subr.mxu0 0.0
  %2074 = vmatpush2.msra.mxu0 0.0
  %2075 = vmatprep.subr.mxu0 0.0
  %2076 = vmatpush2.msra.mxu0 0.0
  %2077 = vmatprep.subr.mxu0 0.0
  %2078 = vmatpush2.msra.mxu0 0.0
  %2079 = vmatprep.subr.mxu0 0.0
  %2080 = vmatpush2.msra.mxu0 0.0
  %2081 = vmatprep.subr.mxu0 0.0
  %2082 = vmatpush2.msra.mxu0 0.0
  %2083 = vmatprep.subr.mxu0 0.0
  %2084 = vmatpush2.msra.mxu0 0.0
  %2085 = vmatprep.subr.mxu0 0.0
  %2086 = vmatpush2.msra.mxu0 0.0
  %2087 = vmatprep.subr.mxu0 0.0
  %2088 = vmatpush2.msra.mxu0 0.0
  %2089 = vmatprep.subr.mxu0 0.0
  %2090 = vmatpush2.msra.mxu0 0.0
  %2091 = vmatprep.subr.mxu0 0.0
  %2092 = vmatpush2.msra.mxu0 0.0
  %2093 = vmatprep.subr.mxu0 0.0
  %2094 = vmatpush2.msra.mxu0 0.0
  %2095 = vmatprep.mubr.f32.mxu0 0.0
  %2096 = vmatmul.mubr.f32.gmra.mxu0 %v173
  %v2097 = vpop.f32.mrf.mxu0
  %v2098 = vadd.f32 0.0, %v2097
  %v2099 = vpop.f32.mrf.mxu0
  %2100 = vmatprep.mubr.f32.mxu0 0.0
  %2101 = vmatmul.mubr.f32.gmra.mxu0 %v176
  %v2102 = vpop.f32.mrf.mxu0
  %v2103 = vadd.f32 0.0, %v2102
  %v2104 = vpop.f32.mrf.mxu0
  %2105 = vmatprep.mubr.f32.mxu0 0.0
  %2106 = vmatmul.mubr.f32.gmra.mxu0 %v179
  %v2107 = vpop.f32.mrf.mxu0
  %v2108 = vadd.f32 0.0, %v2107
  %v2109 = vpop.f32.mrf.mxu0
  %2110 = vdwg.mxu0
  %v2111 = vmul.f32 %v2098, 0.0078125
  %v2112 = vmul.f32 %v2103, 0.0078125
  %v2113 = vmul.f32 %v2108, 0.0078125
  %v2114 = vmul.f32 %v2111, %v2111
  %v2115 = vmul.f32 %v2112, %v2112
  %v2116 = vmul.f32 %v2113, %v2113
  %2120 = vrot.lane.b32.xlu0 %v2114, 1
  %v2121 = vpop.permute.xlu0 %2120
  %2122 = vrot.lane.b32.xlu0 %v2115, 1
  %v2123 = vpop.permute.xlu0 %2122
  %2124 = vrot.lane.b32.xlu0 %v2116, 1
  %v2125 = vpop.permute.xlu0 %2124
  %v2129 = vsub.f32 %v2111, %v2121
  %v2130 = vsub.f32 %v2112, %v2123
  %v2131 = vsub.f32 %v2113, %v2125
  %v2132 = vadd.f32 %v2129, 1e-06
  %v2133 = vadd.f32 %v2130, 1e-06
  %v2134 = vadd.f32 %v2131, 1e-06
  %v2135 = vrsqrt.pop %v2132
  %v2136 = vrsqrt.pop %v2133
  %v2137 = vrsqrt.pop %v2134
  %2139 = vset.pattern.permute.xlu0 0
  %2140 = vperm.xlu0 %2139, %v2111
  %v2141 = vpop.permute.xlu0 %2140
  %2144 = vset.pattern.permute.xlu0 0
  %2145 = vperm.xlu0 %2144, %v2112
  %v2146 = vpop.permute.xlu0 %2145
  %2149 = vset.pattern.permute.xlu0 0
  %2150 = vperm.xlu0 %2149, %v2113
  %v2151 = vpop.permute.xlu0 %2150
  %v2153 = vsub.f32 %v1994, %v2141
  %v2154 = vsub.f32 %v1999, %v2146
  %v2155 = vsub.f32 %v2004, %v2151
  %v2156 = vmul.f32 %v2135, %v307
  %v2157 = vmul.f32 %v2136, %v309
  %v2158 = vmul.f32 %v2137, %v311
  %2160 = vset.pattern.permute.xlu0 1
  %2161 = vperm.xlu0 %2160, %v2156
  %v2162 = vpop.permute.xlu0 %2161
  %2165 = vset.pattern.permute.xlu0 1
  %2166 = vperm.xlu0 %2165, %v2157
  %v2167 = vpop.permute.xlu0 %2166
  %2170 = vset.pattern.permute.xlu0 1
  %2171 = vperm.xlu0 %2170, %v2158
  %v2172 = vpop.permute.xlu0 %2171
  %v2174 = vmul.f32 %v2153, %v2162
  %v2175 = vmul.f32 %v2154, %v2167
  %v2176 = vmul.f32 %v2155, %v2172
  %v2177 = vadd.f32 %v2174, %v338
  %v2178 = vadd.f32 %v2175, %v342
  %v2179 = vadd.f32 %v2176, %v346
  %v2180 = vmax.f32 %v2177, 0.0
  %v2181 = vmax.f32 %v2178, 0.0
  %v2182 = vmax.f32 %v2179, 0.0
  %s2183 = scalar_lea.vmem %s0, 16
  %v2184 = vld [vmem:[%s2183] sm:$0xff]
  %v2185 = vld [vmem:[%s2183 + $0x8] sm:$0xff]
  %2186 = vmatprep.subr.mxu0 0.0
  %2187 = vmatpush1.msra.mxu0 0.0
  %2188 = vmatprep.subr.mxu0 0.0
  %2189 = vmatpush1.msra.mxu0 0.0
  %2190 = vmatprep.subr.mxu0 0.0
  %2191 = vmatpush1.msra.mxu0 0.0
  %2192 = vmatprep.subr.mxu0 0.0
  %2193 = vmatpush1.msra.mxu0 0.0
  %2194 = vmatprep.subr.mxu0 0.0
  %2195 = vmatpush1.msra.mxu0 0.0
  %2196 = vmatprep.subr.mxu0 0.0
  %2197 = vmatpush1.msra.mxu0 0.0
  %2198 = vmatprep.subr.mxu0 0.0
  %2199 = vmatpush1.msra.mxu0 0.0
  %2200 = vmatprep.subr.mxu0 0.0
  %2201 = vmatpush1.msra.mxu0 0.0
  %2202 = vmatprep.subr.mxu0 0.0
  %2203 = vmatpush1.msra.mxu0 0.0
  %2204 = vmatprep.subr.mxu0 0.0
  %2205 = vmatpush1.msra.mxu0 0.0
  %2206 = vmatprep.subr.mxu0 0.0
  %2207 = vmatpush1.msra.mxu0 0.0
  %2208 = vmatprep.subr.mxu0 0.0
  %2209 = vmatpush1.msra.mxu0 0.0
  %2210 = vmatprep.subr.mxu0 0.0
  %2211 = vmatpush1.msra.mxu0 0.0
  %2212 = vmatprep.subr.mxu0 0.0
  %2213 = vmatpush1.msra.mxu0 0.0
  %2214 = vmatprep.subr.mxu0 0.0
  %2215 = vmatpush1.msra.mxu0 %v2185
  %2216 = vmatprep.subr.mxu0 0.0
  %2217 = vmatpush1.msra.mxu0 %v2184
  %2218 = vmatprep.subr.mxu0 0.0
  %2219 = vmatpush2.msra.mxu0 0.0
  %2220 = vmatprep.subr.mxu0 0.0
  %2221 = vmatpush2.msra.mxu0 0.0
  %2222 = vmatprep.subr.mxu0 0.0
  %2223 = vmatpush2.msra.mxu0 0.0
  %2224 = vmatprep.subr.mxu0 0.0
  %2225 = vmatpush2.msra.mxu0 0.0
  %2226 = vmatprep.subr.mxu0 0.0
  %2227 = vmatpush2.msra.mxu0 0.0
  %2228 = vmatprep.subr.mxu0 0.0
  %2229 = vmatpush2.msra.mxu0 0.0
  %2230 = vmatprep.subr.mxu0 0.0
  %2231 = vmatpush2.msra.mxu0 0.0
  %2232 = vmatprep.subr.mxu0 0.0
  %2233 = vmatpush2.msra.mxu0 0.0
  %2234 = vmatprep.subr.mxu0 0.0
  %2235 = vmatpush2.msra.mxu0 0.0
  %2236 = vmatprep.subr.mxu0 0.0
  %2237 = vmatpush2.msra.mxu0 0.0
  %2238 = vmatprep.subr.mxu0 0.0
  %2239 = vmatpush2.msra.mxu0 0.0
  %2240 = vmatprep.subr.mxu0 0.0
  %2241 = vmatpush2.msra.mxu0 0.0
  %2242 = vmatprep.subr.mxu0 0.0
  %2243 = vmatpush2.msra.mxu0 0.0
  %2244 = vmatprep.subr.mxu0 0.0
  %2245 = vmatpush2.msra.mxu0 0.0
  %2246 = vmatprep.subr.mxu0 0.0
  %2247 = vmatpush2.msra.mxu0 0.0
  %2248 = vmatprep.subr.mxu0 0.0
  %2249 = vmatpush2.msra.mxu0 0.0
  %2250 = vmatprep.mubr.f32.mxu0 0.0
  %2251 = vmatmul.mubr.f32.gmra.mxu0 %v369
  %v2252 = vpop.f32.mrf.mxu0
  %v2253 = vadd.f32 %v358, %v2252
  %v2254 = vpop.f32.mrf.mxu0
  %2255 = vmatprep.mubr.f32.mxu0 0.0
  %2256 = vmatmul.mubr.f32.gmra.mxu0 %v371
  %v2257 = vpop.f32.mrf.mxu0
  %v2258 = vadd.f32 %v362, %v2257
  %v2259 = vpop.f32.mrf.mxu0
  %2260 = vmatprep.mubr.f32.mxu0 0.0
  %2261 = vmatmul.mubr.f32.gmra.mxu0 %v373
  %v2262 = vpop.f32.mrf.mxu0
  %v2263 = vadd.f32 %v366, %v2262
  %v2264 = vpop.f32.mrf.mxu0
  %2265 = vdwg.mxu0
  %v2266 = vsel %vm146, %v2253, 0.0
  %2267 = vadd.xlane.f32.xlu0 %v2266
  %v2268 = vpop.xlane.xlu0 %2267
  %v2269 = vsel %vm146, %v2258, 0.0
  %2270 = vadd.xlane.f32.xlu0 %v2269
  %v2271 = vpop.xlane.xlu0 %2270
  %v2272 = vsel %vm146, %v2263, 0.0
  %2273 = vadd.xlane.f32.xlu0 %v2272
  %v2274 = vpop.xlane.xlu0 %2273
  %v2275 = vmul.f32 %v2253, %v2253
  %v2276 = vmul.f32 %v2258, %v2258
  %v2277 = vmul.f32 %v2263, %v2263
  %v2278 = vsel %vm146, %v2275, 0.0
  %2279 = vadd.xlane.f32.xlu0 %v2278
  %v2280 = vpop.xlane.xlu0 %2279
  %v2281 = vsel %vm146, %v2276, 0.0
  %2282 = vadd.xlane.f32.xlu0 %v2281
  %v2283 = vpop.xlane.xlu0 %2282
  %v2284 = vsel %vm146, %v2277, 0.0
  %2285 = vadd.xlane.f32.xlu0 %v2284
  %v2286 = vpop.xlane.xlu0 %2285
  %v2287 = vsel %vm168, %v2268, %v2280
  %v2288 = vsel %vm168, %v2271, %v2283
  %v2289 = vsel %vm168, %v2274, %v2286
  %2290 = vmatprep.subr.mxu0 0.0
  %2291 = vmatpush1.msra.mxu0 0.0
  %2292 = vmatprep.subr.mxu0 0.0
  %2293 = vmatpush1.msra.mxu0 0.0
  %2294 = vmatprep.subr.mxu0 0.0
  %2295 = vmatpush1.msra.mxu0 0.0
  %2296 = vmatprep.subr.mxu0 0.0
  %2297 = vmatpush1.msra.mxu0 0.0
  %2298 = vmatprep.subr.mxu0 0.0
  %2299 = vmatpush1.msra.mxu0 0.0
  %2300 = vmatprep.subr.mxu0 0.0
  %2301 = vmatpush1.msra.mxu0 0.0
  %2302 = vmatprep.subr.mxu0 0.0
  %2303 = vmatpush1.msra.mxu0 0.0
  %2304 = vmatprep.subr.mxu0 0.0
  %2305 = vmatpush1.msra.mxu0 0.0
  %2306 = vmatprep.subr.mxu0 0.0
  %2307 = vmatpush1.msra.mxu0 0.0
  %2308 = vmatprep.subr.mxu0 0.0
  %2309 = vmatpush1.msra.mxu0 0.0
  %2310 = vmatprep.subr.mxu0 0.0
  %2311 = vmatpush1.msra.mxu0 0.0
  %2312 = vmatprep.subr.mxu0 0.0
  %2313 = vmatpush1.msra.mxu0 0.0
  %2314 = vmatprep.subr.mxu0 0.0
  %2315 = vmatpush1.msra.mxu0 0.0
  %2316 = vmatprep.subr.mxu0 0.0
  %2317 = vmatpush1.msra.mxu0 %v2289
  %2318 = vmatprep.subr.mxu0 0.0
  %2319 = vmatpush1.msra.mxu0 %v2288
  %2320 = vmatprep.subr.mxu0 0.0
  %2321 = vmatpush1.msra.mxu0 %v2287
  %2322 = vmatprep.subr.mxu0 0.0
  %2323 = vmatpush2.msra.mxu0 0.0
  %2324 = vmatprep.subr.mxu0 0.0
  %2325 = vmatpush2.msra.mxu0 0.0
  %2326 = vmatprep.subr.mxu0 0.0
  %2327 = vmatpush2.msra.mxu0 0.0
  %2328 = vmatprep.subr.mxu0 0.0
  %2329 = vmatpush2.msra.mxu0 0.0
  %2330 = vmatprep.subr.mxu0 0.0
  %2331 = vmatpush2.msra.mxu0 0.0
  %2332 = vmatprep.subr.mxu0 0.0
  %2333 = vmatpush2.msra.mxu0 0.0
  %2334 = vmatprep.subr.mxu0 0.0
  %2335 = vmatpush2.msra.mxu0 0.0
  %2336 = vmatprep.subr.mxu0 0.0
  %2337 = vmatpush2.msra.mxu0 0.0
  %2338 = vmatprep.subr.mxu0 0.0
  %2339 = vmatpush2.msra.mxu0 0.0
  %2340 = vmatprep.subr.mxu0 0.0
  %2341 = vmatpush2.msra.mxu0 0.0
  %2342 = vmatprep.subr.mxu0 0.0
  %2343 = vmatpush2.msra.mxu0 0.0
  %2344 = vmatprep.subr.mxu0 0.0
  %2345 = vmatpush2.msra.mxu0 0.0
  %2346 = vmatprep.subr.mxu0 0.0
  %2347 = vmatpush2.msra.mxu0 0.0
  %2348 = vmatprep.subr.mxu0 0.0
  %2349 = vmatpush2.msra.mxu0 0.0
  %2350 = vmatprep.subr.mxu0 0.0
  %2351 = vmatpush2.msra.mxu0 0.0
  %2352 = vmatprep.subr.mxu0 0.0
  %2353 = vmatpush2.msra.mxu0 0.0
  %2354 = vmatprep.mubr.f32.mxu0 0.0
  %2355 = vmatmul.mubr.f32.gmra.mxu0 %v173
  %v2356 = vpop.f32.mrf.mxu0
  %v2357 = vadd.f32 0.0, %v2356
  %v2358 = vpop.f32.mrf.mxu0
  %2359 = vmatprep.mubr.f32.mxu0 0.0
  %2360 = vmatmul.mubr.f32.gmra.mxu0 %v176
  %v2361 = vpop.f32.mrf.mxu0
  %v2362 = vadd.f32 0.0, %v2361
  %v2363 = vpop.f32.mrf.mxu0
  %2364 = vmatprep.mubr.f32.mxu0 0.0
  %2365 = vmatmul.mubr.f32.gmra.mxu0 %v179
  %v2366 = vpop.f32.mrf.mxu0
  %v2367 = vadd.f32 0.0, %v2366
  %v2368 = vpop.f32.mrf.mxu0
  %2369 = vdwg.mxu0
  %v2370 = vmul.f32 %v2357, 0.0078125
  %v2371 = vmul.f32 %v2362, 0.0078125
  %v2372 = vmul.f32 %v2367, 0.0078125
  %v2373 = vmul.f32 %v2370, %v2370
  %v2374 = vmul.f32 %v2371, %v2371
  %v2375 = vmul.f32 %v2372, %v2372
  %2379 = vrot.lane.b32.xlu0 %v2373, 1
  %v2380 = vpop.permute.xlu0 %2379
  %2381 = vrot.lane.b32.xlu0 %v2374, 1
  %v2382 = vpop.permute.xlu0 %2381
  %2383 = vrot.lane.b32.xlu0 %v2375, 1
  %v2384 = vpop.permute.xlu0 %2383
  %v2388 = vsub.f32 %v2370, %v2380
  %v2389 = vsub.f32 %v2371, %v2382
  %v2390 = vsub.f32 %v2372, %v2384
  %v2391 = vadd.f32 %v2388, 1e-06
  %v2392 = vadd.f32 %v2389, 1e-06
  %v2393 = vadd.f32 %v2390, 1e-06
  %v2394 = vrsqrt.pop %v2391
  %v2395 = vrsqrt.pop %v2392
  %v2396 = vrsqrt.pop %v2393
  %2398 = vset.pattern.permute.xlu0 0
  %2399 = vperm.xlu0 %2398, %v2370
  %v2400 = vpop.permute.xlu0 %2399
  %2403 = vset.pattern.permute.xlu0 0
  %2404 = vperm.xlu0 %2403, %v2371
  %v2405 = vpop.permute.xlu0 %2404
  %2408 = vset.pattern.permute.xlu0 0
  %2409 = vperm.xlu0 %2408, %v2372
  %v2410 = vpop.permute.xlu0 %2409
  %v2412 = vsub.f32 %v2253, %v2400
  %v2413 = vsub.f32 %v2258, %v2405
  %v2414 = vsub.f32 %v2263, %v2410
  %v2415 = vmul.f32 %v2394, %v605
  %v2416 = vmul.f32 %v2395, %v607
  %v2417 = vmul.f32 %v2396, %v609
  %2419 = vset.pattern.permute.xlu0 1
  %2420 = vperm.xlu0 %2419, %v2415
  %v2421 = vpop.permute.xlu0 %2420
  %2424 = vset.pattern.permute.xlu0 1
  %2425 = vperm.xlu0 %2424, %v2416
  %v2426 = vpop.permute.xlu0 %2425
  %2429 = vset.pattern.permute.xlu0 1
  %2430 = vperm.xlu0 %2429, %v2417
  %v2431 = vpop.permute.xlu0 %2430
  %v2433 = vmul.f32 %v2412, %v2421
  %v2434 = vmul.f32 %v2413, %v2426
  %v2435 = vmul.f32 %v2414, %v2431
  %v2436 = vadd.f32 %v2433, %v636
  %v2437 = vadd.f32 %v2434, %v640
  %v2438 = vadd.f32 %v2435, %v644
  %v2439 = vmax.f32 %v2436, 0.0
  %v2440 = vmax.f32 %v2437, 0.0
  %v2441 = vmax.f32 %v2438, 0.0
  %2442 = vmatprep.subr.mxu0 0.0
  %2443 = vmatpush1.msra.mxu0 0.0
  %2444 = vmatprep.subr.mxu0 0.0
  %2445 = vmatpush1.msra.mxu0 0.0
  %2446 = vmatprep.subr.mxu0 0.0
  %2447 = vmatpush1.msra.mxu0 0.0
  %2448 = vmatprep.subr.mxu0 0.0
  %2449 = vmatpush1.msra.mxu0 0.0
  %2450 = vmatprep.subr.mxu0 0.0
  %2451 = vmatpush1.msra.mxu0 0.0
  %2452 = vmatprep.subr.mxu0 0.0
  %2453 = vmatpush1.msra.mxu0 0.0
  %2454 = vmatprep.subr.mxu0 0.0
  %2455 = vmatpush1.msra.mxu0 0.0
  %2456 = vmatprep.subr.mxu0 0.0
  %2457 = vmatpush1.msra.mxu0 0.0
  %2458 = vmatprep.subr.mxu0 0.0
  %2459 = vmatpush1.msra.mxu0 0.0
  %2460 = vmatprep.subr.mxu0 0.0
  %2461 = vmatpush1.msra.mxu0 0.0
  %2462 = vmatprep.subr.mxu0 0.0
  %2463 = vmatpush1.msra.mxu0 0.0
  %2464 = vmatprep.subr.mxu0 0.0
  %2465 = vmatpush1.msra.mxu0 0.0
  %2466 = vmatprep.subr.mxu0 0.0
  %2467 = vmatpush1.msra.mxu0 0.0
  %2468 = vmatprep.subr.mxu0 0.0
  %2469 = vmatpush1.msra.mxu0 %v2441
  %2470 = vmatprep.subr.mxu0 0.0
  %2471 = vmatpush1.msra.mxu0 %v2440
  %2472 = vmatprep.subr.mxu0 0.0
  %2473 = vmatpush1.msra.mxu0 %v2439
  %2474 = vmatprep.subr.mxu0 0.0
  %2475 = vmatpush2.msra.mxu0 0.0
  %2476 = vmatprep.subr.mxu0 0.0
  %2477 = vmatpush2.msra.mxu0 0.0
  %2478 = vmatprep.subr.mxu0 0.0
  %2479 = vmatpush2.msra.mxu0 0.0
  %2480 = vmatprep.subr.mxu0 0.0
  %2481 = vmatpush2.msra.mxu0 0.0
  %2482 = vmatprep.subr.mxu0 0.0
  %2483 = vmatpush2.msra.mxu0 0.0
  %2484 = vmatprep.subr.mxu0 0.0
  %2485 = vmatpush2.msra.mxu0 0.0
  %2486 = vmatprep.subr.mxu0 0.0
  %2487 = vmatpush2.msra.mxu0 0.0
  %2488 = vmatprep.subr.mxu0 0.0
  %2489 = vmatpush2.msra.mxu0 0.0
  %2490 = vmatprep.subr.mxu0 0.0
  %2491 = vmatpush2.msra.mxu0 0.0
  %2492 = vmatprep.subr.mxu0 0.0
  %2493 = vmatpush2.msra.mxu0 0.0
  %2494 = vmatprep.subr.mxu0 0.0
  %2495 = vmatpush2.msra.mxu0 0.0
  %2496 = vmatprep.subr.mxu0 0.0
  %2497 = vmatpush2.msra.mxu0 0.0
  %2498 = vmatprep.subr.mxu0 0.0
  %2499 = vmatpush2.msra.mxu0 0.0
  %2500 = vmatprep.subr.mxu0 0.0
  %2501 = vmatpush2.msra.mxu0 0.0
  %2502 = vmatprep.subr.mxu0 0.0
  %2503 = vmatpush2.msra.mxu0 0.0
  %2504 = vmatprep.subr.mxu0 0.0
  %2505 = vmatpush2.msra.mxu0 0.0
  %2506 = vmatprep.mubr.f32.mxu0 0.0
  %2507 = vmatmul.mubr.f32.gmra.mxu0 %v653
  %v2508 = vpop.f32.mrf.mxu0
  %v2509 = vadd.f32 0.0, %v2508
  %v2510 = vpop.f32.mrf.mxu0
  %2511 = vmatprep.mubr.f32.mxu0 0.0
  %2512 = vmatmul.mubr.f32.gmra.mxu0 %v656
  %v2513 = vpop.f32.mrf.mxu0
  %v2514 = vadd.f32 0.0, %v2513
  %v2515 = vpop.f32.mrf.mxu0
  %2516 = vmatprep.mubr.f32.mxu0 0.0
  %2517 = vmatmul.mubr.f32.gmra.mxu0 %v659
  %v2518 = vpop.f32.mrf.mxu0
  %v2519 = vadd.f32 0.0, %v2518
  %v2520 = vpop.f32.mrf.mxu0
  %2521 = vmatprep.mubr.f32.mxu0 0.0
  %2522 = vmatmul.mubr.f32.gmra.mxu0 %v662
  %v2523 = vpop.f32.mrf.mxu0
  %v2524 = vadd.f32 0.0, %v2523
  %v2525 = vpop.f32.mrf.mxu0
  %2526 = vmatprep.mubr.f32.mxu0 0.0
  %2527 = vmatmul.mubr.f32.gmra.mxu0 %v665
  %v2528 = vpop.f32.mrf.mxu0
  %v2529 = vadd.f32 0.0, %v2528
  %v2530 = vpop.f32.mrf.mxu0
  %2531 = vmatprep.mubr.f32.mxu0 0.0
  %2532 = vmatmul.mubr.f32.gmra.mxu0 %v668
  %v2533 = vpop.f32.mrf.mxu0
  %v2534 = vadd.f32 0.0, %v2533
  %v2535 = vpop.f32.mrf.mxu0
  %2536 = vdwg.mxu0
  %2537 = vmatprep.subr.mxu0 0.0
  %2538 = vmatpush1.msra.mxu0 0.0
  %2539 = vmatprep.subr.mxu0 0.0
  %2540 = vmatpush1.msra.mxu0 0.0
  %2541 = vmatprep.subr.mxu0 0.0
  %2542 = vmatpush1.msra.mxu0 0.0
  %2543 = vmatprep.subr.mxu0 0.0
  %2544 = vmatpush1.msra.mxu0 0.0
  %2545 = vmatprep.subr.mxu0 0.0
  %2546 = vmatpush1.msra.mxu0 0.0
  %2547 = vmatprep.subr.mxu0 0.0
  %2548 = vmatpush1.msra.mxu0 0.0
  %2549 = vmatprep.subr.mxu0 0.0
  %2550 = vmatpush1.msra.mxu0 0.0
  %2551 = vmatprep.subr.mxu0 0.0
  %2552 = vmatpush1.msra.mxu0 0.0
  %2553 = vmatprep.subr.mxu0 0.0
  %2554 = vmatpush1.msra.mxu0 0.0
  %2555 = vmatprep.subr.mxu0 0.0
  %2556 = vmatpush1.msra.mxu0 0.0
  %2557 = vmatprep.subr.mxu0 0.0
  %2558 = vmatpush1.msra.mxu0 0.0
  %2559 = vmatprep.subr.mxu0 0.0
  %2560 = vmatpush1.msra.mxu0 0.0
  %2561 = vmatprep.subr.mxu0 0.0
  %2562 = vmatpush1.msra.mxu0 0.0
  %2563 = vmatprep.subr.mxu0 0.0
  %2564 = vmatpush1.msra.mxu0 %v2182
  %2565 = vmatprep.subr.mxu0 0.0
  %2566 = vmatpush1.msra.mxu0 %v2181
  %2567 = vmatprep.subr.mxu0 0.0
  %2568 = vmatpush1.msra.mxu0 %v2180
  %2569 = vmatprep.subr.mxu0 0.0
  %2570 = vmatpush2.msra.mxu0 0.0
  %2571 = vmatprep.subr.mxu0 0.0
  %2572 = vmatpush2.msra.mxu0 0.0
  %2573 = vmatprep.subr.mxu0 0.0
  %2574 = vmatpush2.msra.mxu0 0.0
  %2575 = vmatprep.subr.mxu0 0.0
  %2576 = vmatpush2.msra.mxu0 0.0
  %2577 = vmatprep.subr.mxu0 0.0
  %2578 = vmatpush2.msra.mxu0 0.0
  %2579 = vmatprep.subr.mxu0 0.0
  %2580 = vmatpush2.msra.mxu0 0.0
  %2581 = vmatprep.subr.mxu0 0.0
  %2582 = vmatpush2.msra.mxu0 0.0
  %2583 = vmatprep.subr.mxu0 0.0
  %2584 = vmatpush2.msra.mxu0 0.0
  %2585 = vmatprep.subr.mxu0 0.0
  %2586 = vmatpush2.msra.mxu0 0.0
  %2587 = vmatprep.subr.mxu0 0.0
  %2588 = vmatpush2.msra.mxu0 0.0
  %2589 = vmatprep.subr.mxu0 0.0
  %2590 = vmatpush2.msra.mxu0 0.0
  %2591 = vmatprep.subr.mxu0 0.0
  %2592 = vmatpush2.msra.mxu0 0.0
  %2593 = vmatprep.subr.mxu0 0.0
  %2594 = vmatpush2.msra.mxu0 0.0
  %2595 = vmatprep.subr.mxu0 0.0
  %2596 = vmatpush2.msra.mxu0 0.0
  %2597 = vmatprep.subr.mxu0 0.0
  %2598 = vmatpush2.msra.mxu0 0.0
  %2599 = vmatprep.subr.mxu0 0.0
  %2600 = vmatpush2.msra.mxu0 0.0
  %2601 = vmatprep.mubr.f32.mxu0 0.0
  %2602 = vmatmul.mubr.f32.gmra.mxu0 %v766
  %v2603 = vpop.f32.mrf.mxu0
  %v2604 = vadd.f32 0.0, %v2603
  %v2605 = vpop.f32.mrf.mxu0
  %2606 = vmatprep.mubr.f32.mxu0 0.0
  %2607 = vmatmul.mubr.f32.gmra.mxu0 %v769
  %v2608 = vpop.f32.mrf.mxu0
  %v2609 = vadd.f32 0.0, %v2608
  %v2610 = vpop.f32.mrf.mxu0
  %2611 = vmatprep.mubr.f32.mxu0 0.0
  %2612 = vmatmul.mubr.f32.gmra.mxu0 %v772
  %v2613 = vpop.f32.mrf.mxu0
  %v2614 = vadd.f32 0.0, %v2613
  %v2615 = vpop.f32.mrf.mxu0
  %2616 = vdwg.mxu0
  %2617 = vxpose.xlu0.b32.start [1/16] %v2509, 128
  %2618 = vxpose.xlu0.b32.cont [2/16] %v2514, 128
  %2619 = vxpose.xlu0.b32.cont [3/16] %v2519, 128
  %2620 = vxpose.xlu0.b32.cont [4/16] 0.0, 128
  %2621 = vxpose.xlu0.b32.cont [5/16] 0.0, 128
  %2622 = vxpose.xlu0.b32.cont [6/16] 0.0, 128
  %2623 = vxpose.xlu0.b32.cont [7/16] 0.0, 128
  %2624 = vxpose.xlu0.b32.cont [8/16] 0.0, 128
  %2625 = vxpose.xlu0.b32.cont [9/16] 0.0, 128
  %2626 = vxpose.xlu0.b32.cont [10/16] 0.0, 128
  %2627 = vxpose.xlu0.b32.cont [11/16] 0.0, 128
  %2628 = vxpose.xlu0.b32.cont [12/16] 0.0, 128
  %2629 = vxpose.xlu0.b32.cont [13/16] 0.0, 128
  %2630 = vxpose.xlu0.b32.cont [14/16] 0.0, 128
  %2631 = vxpose.xlu0.b32.cont [15/16] 0.0, 128
  %2632 = vxpose.xlu0.b32.end [16/16] 0.0, 128
  %v2633 = vpop.trf.xlu0
  %v2634 = vpop.trf.xlu0
  %v2635 = vpop.trf.xlu0
  %v2636 = vpop.trf.xlu0
  %v2637 = vpop.trf.xlu0
  %v2638 = vpop.trf.xlu0
  %v2639 = vpop.trf.xlu0
  %v2640 = vpop.trf.xlu0
  %v2641 = vpop.trf.xlu0
  %v2642 = vpop.trf.xlu0
  %v2643 = vpop.trf.xlu0
  %v2644 = vpop.trf.xlu0
  %v2645 = vpop.trf.xlu0
  %v2646 = vpop.trf.xlu0
  %v2647 = vpop.trf.xlu0
  %v2648 = vpop.trf.xlu0
  %v2650 = vsel %vm56, %v2633, 0
  %v2653 = vsel %vm56, %v2634, 0
  %v2656 = vsel %vm56, %v2635, 0
  %v2659 = vsel %vm56, %v2636, 0
  %v2662 = vsel %vm56, %v2637, 0
  %v2665 = vsel %vm56, %v2638, 0
  %v2668 = vsel %vm56, %v2639, 0
  %v2671 = vsel %vm56, %v2640, 0
  %2673 = vmatprep.subr.mxu0 0.0
  %2674 = vmatpush1.msra.mxu0 0.0
  %2675 = vmatprep.subr.mxu0 0.0
  %2676 = vmatpush1.msra.mxu0 0.0
  %2677 = vmatprep.subr.mxu0 0.0
  %2678 = vmatpush1.msra.mxu0 0.0
  %2679 = vmatprep.subr.mxu0 0.0
  %2680 = vmatpush1.msra.mxu0 0.0
  %2681 = vmatprep.subr.mxu0 0.0
  %2682 = vmatpush1.msra.mxu0 0.0
  %2683 = vmatprep.subr.mxu0 0.0
  %2684 = vmatpush1.msra.mxu0 0.0
  %2685 = vmatprep.subr.mxu0 0.0
  %2686 = vmatpush1.msra.mxu0 0.0
  %2687 = vmatprep.subr.mxu0 0.0
  %2688 = vmatpush1.msra.mxu0 0.0
  %2689 = vmatprep.subr.mxu0 0.0
  %2690 = vmatpush1.msra.mxu0 0.0
  %2691 = vmatprep.subr.mxu0 0.0
  %2692 = vmatpush1.msra.mxu0 0.0
  %2693 = vmatprep.subr.mxu0 0.0
  %2694 = vmatpush1.msra.mxu0 0.0
  %2695 = vmatprep.subr.mxu0 0.0
  %2696 = vmatpush1.msra.mxu0 0.0
  %2697 = vmatprep.subr.mxu0 0.0
  %2698 = vmatpush1.msra.mxu0 0.0
  %2699 = vmatprep.subr.mxu0 0.0
  %2700 = vmatpush1.msra.mxu0 %v2534
  %2701 = vmatprep.subr.mxu0 0.0
  %2702 = vmatpush1.msra.mxu0 %v2529
  %2703 = vmatprep.subr.mxu0 0.0
  %2704 = vmatpush1.msra.mxu0 %v2524
  %2705 = vmatprep.subr.mxu0 0.0
  %2706 = vmatpush2.msra.mxu0 0.0
  %2707 = vmatprep.subr.mxu0 0.0
  %2708 = vmatpush2.msra.mxu0 0.0
  %2709 = vmatprep.subr.mxu0 0.0
  %2710 = vmatpush2.msra.mxu0 0.0
  %2711 = vmatprep.subr.mxu0 0.0
  %2712 = vmatpush2.msra.mxu0 0.0
  %2713 = vmatprep.subr.mxu0 0.0
  %2714 = vmatpush2.msra.mxu0 0.0
  %2715 = vmatprep.subr.mxu0 0.0
  %2716 = vmatpush2.msra.mxu0 0.0
  %2717 = vmatprep.subr.mxu0 0.0
  %2718 = vmatpush2.msra.mxu0 0.0
  %2719 = vmatprep.subr.mxu0 0.0
  %2720 = vmatpush2.msra.mxu0 0.0
  %2721 = vmatprep.subr.mxu0 0.0
  %2722 = vmatpush2.msra.mxu0 0.0
  %2723 = vmatprep.subr.mxu0 0.0
  %2724 = vmatpush2.msra.mxu0 0.0
  %2725 = vmatprep.subr.mxu0 0.0
  %2726 = vmatpush2.msra.mxu0 0.0
  %2727 = vmatprep.subr.mxu0 0.0
  %2728 = vmatpush2.msra.mxu0 0.0
  %2729 = vmatprep.subr.mxu0 0.0
  %2730 = vmatpush2.msra.mxu0 0.0
  %2731 = vmatprep.subr.mxu0 0.0
  %2732 = vmatpush2.msra.mxu0 0.0
  %2733 = vmatprep.subr.mxu0 0.0
  %2734 = vmatpush2.msra.mxu0 0.0
  %2735 = vmatprep.subr.mxu0 0.0
  %2736 = vmatpush2.msra.mxu0 0.0
  %2737 = vmatprep.mubr.f32.mxu0 0.0
  %2738 = vmatmul.mubr.f32.gmra.mxu0 %v2650
  %v2739 = vpop.f32.mrf.mxu0
  %v2740 = vadd.f32 0.0, %v2739
  %v2741 = vpop.f32.mrf.mxu0
  %2742 = vmatprep.mubr.f32.mxu0 0.0
  %2743 = vmatmul.mubr.f32.gmra.mxu0 %v2653
  %v2744 = vpop.f32.mrf.mxu0
  %v2745 = vadd.f32 0.0, %v2744
  %v2746 = vpop.f32.mrf.mxu0
  %2747 = vmatprep.mubr.f32.mxu0 0.0
  %2748 = vmatmul.mubr.f32.gmra.mxu0 %v2656
  %v2749 = vpop.f32.mrf.mxu0
  %v2750 = vadd.f32 0.0, %v2749
  %v2751 = vpop.f32.mrf.mxu0
  %2752 = vmatprep.mubr.f32.mxu0 0.0
  %2753 = vmatmul.mubr.f32.gmra.mxu0 %v2659
  %v2754 = vpop.f32.mrf.mxu0
  %v2755 = vadd.f32 0.0, %v2754
  %v2756 = vpop.f32.mrf.mxu0
  %2757 = vmatprep.mubr.f32.mxu0 0.0
  %2758 = vmatmul.mubr.f32.gmra.mxu0 %v2662
  %v2759 = vpop.f32.mrf.mxu0
  %v2760 = vadd.f32 0.0, %v2759
  %v2761 = vpop.f32.mrf.mxu0
  %2762 = vmatprep.mubr.f32.mxu0 0.0
  %2763 = vmatmul.mubr.f32.gmra.mxu0 %v2665
  %v2764 = vpop.f32.mrf.mxu0
  %v2765 = vadd.f32 0.0, %v2764
  %v2766 = vpop.f32.mrf.mxu0
  %2767 = vmatprep.mubr.f32.mxu0 0.0
  %2768 = vmatmul.mubr.f32.gmra.mxu0 %v2668
  %v2769 = vpop.f32.mrf.mxu0
  %v2770 = vadd.f32 0.0, %v2769
  %v2771 = vpop.f32.mrf.mxu0
  %2772 = vmatprep.mubr.f32.mxu0 0.0
  %2773 = vmatmul.mubr.f32.gmra.mxu0 %v2671
  %v2774 = vpop.f32.mrf.mxu0
  %v2775 = vadd.f32 0.0, %v2774
  %v2776 = vpop.f32.mrf.mxu0
  %2777 = vdwg.mxu0
  %v2778 = vsel %vm146, %v2740, -inf
  %v2779 = vsel %vm146, %v2745, -inf
  %v2780 = vsel %vm146, %v2750, -inf
  %v2781 = vsel %vm146, %v2755, -inf
  %v2782 = vsel %vm146, %v2760, -inf
  %v2783 = vmax.f32 %v2778, %v2782
  %v2784 = vsel %vm146, %v2765, -inf
  %v2785 = vmax.f32 %v2779, %v2784
  %v2786 = vsel %vm146, %v2770, -inf
  %v2787 = vmax.f32 %v2780, %v2786
  %v2788 = vsel %vm146, %v2775, -inf
  %v2789 = vmax.f32 %v2781, %v2788
  %v2790 = vmax.f32 %v2783, %v2785
  %v2791 = vmax.f32 %v2787, %v2789
  %v2792 = vmax.f32 %v2790, %v2791
  %v2793 = vrot.slane %v2792, 4
  %v2794 = vmax.f32 %v2792, %v2793
  %v2795 = vrot.slane %v2794, 2
  %v2796 = vmax.f32 %v2794, %v2795
  %v2797 = vrot.slane %v2796, 1
  %v2798 = vmax.f32 %v2796, %v2797
  %v2799 = vsub.f32 %v2740, %v2798
  %v2800 = vsub.f32 %v2745, %v2798
  %v2801 = vsub.f32 %v2750, %v2798
  %v2802 = vsub.f32 %v2755, %v2798
  %v2803 = vsub.f32 %v2760, %v2798
  %v2804 = vsub.f32 %v2765, %v2798
  %v2805 = vsub.f32 %v2770, %v2798
  %v2806 = vsub.f32 %v2775, %v2798
  %v2807 = vmul.f32 %v2799, 1.442695
  %v2808 = vpow.pop %v2807
  %v2809 = vmul.f32 %v2800, 1.442695
  %v2810 = vpow.pop %v2809
  %v2811 = vmul.f32 %v2801, 1.442695
  %v2812 = vpow.pop %v2811
  %v2813 = vmul.f32 %v2802, 1.442695
  %v2814 = vpow.pop %v2813
  %v2815 = vmul.f32 %v2803, 1.442695
  %v2816 = vpow.pop %v2815
  %v2817 = vmul.f32 %v2804, 1.442695
  %v2818 = vpow.pop %v2817
  %v2819 = vmul.f32 %v2805, 1.442695
  %v2820 = vpow.pop %v2819
  %v2821 = vmul.f32 %v2806, 1.442695
  %v2822 = vpow.pop %v2821
  %v2823 = vsel %vm146, %v2808, 0.0
  %v2824 = vsel %vm146, %v2810, 0.0
  %v2825 = vadd.f32 %v2823, %v2824
  %v2826 = vsel %vm146, %v2812, 0.0
  %v2827 = vadd.f32 %v2825, %v2826
  %v2828 = vsel %vm146, %v2814, 0.0
  %v2829 = vadd.f32 %v2827, %v2828
  %v2830 = vsel %vm146, %v2816, 0.0
  %v2831 = vadd.f32 %v2829, %v2830
  %v2832 = vsel %vm146, %v2818, 0.0
  %v2833 = vadd.f32 %v2831, %v2832
  %v2834 = vsel %vm146, %v2820, 0.0
  %v2835 = vadd.f32 %v2833, %v2834
  %v2836 = vsel %vm146, %v2822, 0.0
  %v2837 = vadd.f32 %v2835, %v2836
  %v2838 = vrot.slane %v2837, 4
  %v2839 = vadd.f32 %v2837, %v2838
  %v2840 = vrot.slane %v2839, 2
  %v2841 = vadd.f32 %v2839, %v2840
  %v2842 = vrot.slane %v2841, 1
  %v2843 = vadd.f32 %v2841, %v2842
  %v2844 = vrcp.pop %v2843
  %v2845 = vmul.f32 %v2808, %v2844
  %v2846 = vmul.f32 %v2810, %v2844
  %v2847 = vmul.f32 %v2812, %v2844
  %v2848 = vmul.f32 %v2814, %v2844
  %v2849 = vmul.f32 %v2816, %v2844
  %v2850 = vmul.f32 %v2818, %v2844
  %v2851 = vmul.f32 %v2820, %v2844
  %v2852 = vmul.f32 %v2822, %v2844
  %v2854 = vsel %vm146, %v2604, 0
  %v2857 = vsel %vm146, %v2609, 0
  %v2860 = vsel %vm146, %v2614, 0
  %v2863 = vsel %vm146, %v2845, 0
  %v2866 = vsel %vm146, %v2846, 0
  %v2869 = vsel %vm146, %v2847, 0
  %v2872 = vsel %vm146, %v2848, 0
  %v2875 = vsel %vm146, %v2849, 0
  %v2878 = vsel %vm146, %v2850, 0
  %v2881 = vsel %vm146, %v2851, 0
  %v2884 = vsel %vm146, %v2852, 0
  %2886 = vmatprep.subr.mxu0 0.0
  %2887 = vmatpush1.xpose.msra.mxu0 0.0
  %2888 = vmatprep.subr.mxu0 0.0
  %2889 = vmatpush1.xpose.msra.mxu0 0.0
  %2890 = vmatprep.subr.mxu0 0.0
  %2891 = vmatpush1.xpose.msra.mxu0 0.0
  %2892 = vmatprep.subr.mxu0 0.0
  %2893 = vmatpush1.xpose.msra.mxu0 0.0
  %2894 = vmatprep.subr.mxu0 0.0
  %2895 = vmatpush1.xpose.msra.mxu0 0.0
  %2896 = vmatprep.subr.mxu0 0.0
  %2897 = vmatpush1.xpose.msra.mxu0 0.0
  %2898 = vmatprep.subr.mxu0 0.0
  %2899 = vmatpush1.xpose.msra.mxu0 0.0
  %2900 = vmatprep.subr.mxu0 0.0
  %2901 = vmatpush1.xpose.msra.mxu0 0.0
  %2902 = vmatprep.subr.mxu0 0.0
  %2903 = vmatpush1.xpose.msra.mxu0 %v2884
  %2904 = vmatprep.subr.mxu0 0.0
  %2905 = vmatpush1.xpose.msra.mxu0 %v2881
  %2906 = vmatprep.subr.mxu0 0.0
  %2907 = vmatpush1.xpose.msra.mxu0 %v2878
  %2908 = vmatprep.subr.mxu0 0.0
  %2909 = vmatpush1.xpose.msra.mxu0 %v2875
  %2910 = vmatprep.subr.mxu0 0.0
  %2911 = vmatpush1.xpose.msra.mxu0 %v2872
  %2912 = vmatprep.subr.mxu0 0.0
  %2913 = vmatpush1.xpose.msra.mxu0 %v2869
  %2914 = vmatprep.subr.mxu0 0.0
  %2915 = vmatpush1.xpose.msra.mxu0 %v2866
  %2916 = vmatprep.subr.mxu0 0.0
  %2917 = vmatpush1.xpose.msra.mxu0 %v2863
  %2918 = vmatprep.subr.mxu0 0.0
  %2919 = vmatpush2.xpose.msra.mxu0 0.0
  %2920 = vmatprep.subr.mxu0 0.0
  %2921 = vmatpush2.xpose.msra.mxu0 0.0
  %2922 = vmatprep.subr.mxu0 0.0
  %2923 = vmatpush2.xpose.msra.mxu0 0.0
  %2924 = vmatprep.subr.mxu0 0.0
  %2925 = vmatpush2.xpose.msra.mxu0 0.0
  %2926 = vmatprep.subr.mxu0 0.0
  %2927 = vmatpush2.xpose.msra.mxu0 0.0
  %2928 = vmatprep.subr.mxu0 0.0
  %2929 = vmatpush2.xpose.msra.mxu0 0.0
  %2930 = vmatprep.subr.mxu0 0.0
  %2931 = vmatpush2.xpose.msra.mxu0 0.0
  %2932 = vmatprep.subr.mxu0 0.0
  %2933 = vmatpush2.xpose.msra.mxu0 0.0
  %2934 = vmatprep.subr.mxu0 0.0
  %2935 = vmatpush2.xpose.msra.mxu0 0.0
  %2936 = vmatprep.subr.mxu0 0.0
  %2937 = vmatpush2.xpose.msra.mxu0 0.0
  %2938 = vmatprep.subr.mxu0 0.0
  %2939 = vmatpush2.xpose.msra.mxu0 0.0
  %2940 = vmatprep.subr.mxu0 0.0
  %2941 = vmatpush2.xpose.msra.mxu0 0.0
  %2942 = vmatprep.subr.mxu0 0.0
  %2943 = vmatpush2.xpose.msra.mxu0 0.0
  %2944 = vmatprep.subr.mxu0 0.0
  %2945 = vmatpush2.xpose.msra.mxu0 0.0
  %2946 = vmatprep.subr.mxu0 0.0
  %2947 = vmatpush2.xpose.msra.mxu0 0.0
  %2948 = vmatprep.subr.mxu0 0.0
  %2949 = vmatpush2.xpose.msra.mxu0 0.0
  %2950 = vmatprep.mubr.f32.mxu0 0.0
  %2951 = vmatmul.mubr.f32.gmra.mxu0 %v2854
  %v2952 = vpop.f32.mrf.mxu0
  %v2953 = vadd.f32 0.0, %v2952
  %v2954 = vpop.f32.mrf.mxu0
  %2955 = vmatprep.mubr.f32.mxu0 0.0
  %2956 = vmatmul.mubr.f32.gmra.mxu0 %v2857
  %v2957 = vpop.f32.mrf.mxu0
  %v2958 = vadd.f32 0.0, %v2957
  %v2959 = vpop.f32.mrf.mxu0
  %2960 = vmatprep.mubr.f32.mxu0 0.0
  %2961 = vmatmul.mubr.f32.gmra.mxu0 %v2860
  %v2962 = vpop.f32.mrf.mxu0
  %v2963 = vadd.f32 0.0, %v2962
  %v2964 = vpop.f32.mrf.mxu0
  %2965 = vdwg.mxu0
  %2966 = vmatprep.subr.mxu0 0.0
  %2967 = vmatpush1.msra.mxu0 0.0
  %2968 = vmatprep.subr.mxu0 0.0
  %2969 = vmatpush1.msra.mxu0 0.0
  %2970 = vmatprep.subr.mxu0 0.0
  %2971 = vmatpush1.msra.mxu0 0.0
  %2972 = vmatprep.subr.mxu0 0.0
  %2973 = vmatpush1.msra.mxu0 0.0
  %2974 = vmatprep.subr.mxu0 0.0
  %2975 = vmatpush1.msra.mxu0 0.0
  %2976 = vmatprep.subr.mxu0 0.0
  %2977 = vmatpush1.msra.mxu0 0.0
  %2978 = vmatprep.subr.mxu0 0.0
  %2979 = vmatpush1.msra.mxu0 0.0
  %2980 = vmatprep.subr.mxu0 0.0
  %2981 = vmatpush1.msra.mxu0 0.0
  %2982 = vmatprep.subr.mxu0 0.0
  %2983 = vmatpush1.msra.mxu0 0.0
  %2984 = vmatprep.subr.mxu0 0.0
  %2985 = vmatpush1.msra.mxu0 0.0
  %2986 = vmatprep.subr.mxu0 0.0
  %2987 = vmatpush1.msra.mxu0 0.0
  %2988 = vmatprep.subr.mxu0 0.0
  %2989 = vmatpush1.msra.mxu0 0.0
  %2990 = vmatprep.subr.mxu0 0.0
  %2991 = vmatpush1.msra.mxu0 0.0
  %2992 = vmatprep.subr.mxu0 0.0
  %2993 = vmatpush1.msra.mxu0 %v2963
  %2994 = vmatprep.subr.mxu0 0.0
  %2995 = vmatpush1.msra.mxu0 %v2958
  %2996 = vmatprep.subr.mxu0 0.0
  %2997 = vmatpush1.msra.mxu0 %v2953
  %2998 = vmatprep.subr.mxu0 0.0
  %2999 = vmatpush2.msra.mxu0 0.0
  %3000 = vmatprep.subr.mxu0 0.0
  %3001 = vmatpush2.msra.mxu0 0.0
  %3002 = vmatprep.subr.mxu0 0.0
  %3003 = vmatpush2.msra.mxu0 0.0
  %3004 = vmatprep.subr.mxu0 0.0
  %3005 = vmatpush2.msra.mxu0 0.0
  %3006 = vmatprep.subr.mxu0 0.0
  %3007 = vmatpush2.msra.mxu0 0.0
  %3008 = vmatprep.subr.mxu0 0.0
  %3009 = vmatpush2.msra.mxu0 0.0
  %3010 = vmatprep.subr.mxu0 0.0
  %3011 = vmatpush2.msra.mxu0 0.0
  %3012 = vmatprep.subr.mxu0 0.0
  %3013 = vmatpush2.msra.mxu0 0.0
  %3014 = vmatprep.subr.mxu0 0.0
  %3015 = vmatpush2.msra.mxu0 0.0
  %3016 = vmatprep.subr.mxu0 0.0
  %3017 = vmatpush2.msra.mxu0 0.0
  %3018 = vmatprep.subr.mxu0 0.0
  %3019 = vmatpush2.msra.mxu0 0.0
  %3020 = vmatprep.subr.mxu0 0.0
  %3021 = vmatpush2.msra.mxu0 0.0
  %3022 = vmatprep.subr.mxu0 0.0
  %3023 = vmatpush2.msra.mxu0 0.0
  %3024 = vmatprep.subr.mxu0 0.0
  %3025 = vmatpush2.msra.mxu0 0.0
  %3026 = vmatprep.subr.mxu0 0.0
  %3027 = vmatpush2.msra.mxu0 0.0
  %3028 = vmatprep.subr.mxu0 0.0
  %3029 = vmatpush2.msra.mxu0 0.0
  %3030 = vmatprep.mubr.f32.mxu0 0.0
  %3031 = vmatmul.mubr.f32.gmra.mxu0 %v1216
  %v3032 = vpop.f32.mrf.mxu0
  %v3033 = vadd.f32 %v1205, %v3032
  %v3034 = vpop.f32.mrf.mxu0
  %3035 = vmatprep.mubr.f32.mxu0 0.0
  %3036 = vmatmul.mubr.f32.gmra.mxu0 %v1219
  %v3037 = vpop.f32.mrf.mxu0
  %v3038 = vadd.f32 %v1209, %v3037
  %v3039 = vpop.f32.mrf.mxu0
  %3040 = vmatprep.mubr.f32.mxu0 0.0
  %3041 = vmatmul.mubr.f32.gmra.mxu0 %v1222
  %v3042 = vpop.f32.mrf.mxu0
  %v3043 = vadd.f32 %v1213, %v3042
  %v3044 = vpop.f32.mrf.mxu0
  %3045 = vdwg.mxu0
  %v3046 = vsel %vm146, %v3033, 0.0
  %3047 = vadd.xlane.f32.xlu0 %v3046
  %v3048 = vpop.xlane.xlu0 %3047
  %v3049 = vsel %vm146, %v3038, 0.0
  %3050 = vadd.xlane.f32.xlu0 %v3049
  %v3051 = vpop.xlane.xlu0 %3050
  %v3052 = vsel %vm146, %v3043, 0.0
  %3053 = vadd.xlane.f32.xlu0 %v3052
  %v3054 = vpop.xlane.xlu0 %3053
  %v3055 = vmul.f32 %v3033, %v3033
  %v3056 = vmul.f32 %v3038, %v3038
  %v3057 = vmul.f32 %v3043, %v3043
  %v3058 = vsel %vm146, %v3055, 0.0
  %3059 = vadd.xlane.f32.xlu0 %v3058
  %v3060 = vpop.xlane.xlu0 %3059
  %v3061 = vsel %vm146, %v3056, 0.0
  %3062 = vadd.xlane.f32.xlu0 %v3061
  %v3063 = vpop.xlane.xlu0 %3062
  %v3064 = vsel %vm146, %v3057, 0.0
  %3065 = vadd.xlane.f32.xlu0 %v3064
  %v3066 = vpop.xlane.xlu0 %3065
  %v3067 = vsel %vm168, %v3048, %v3060
  %v3068 = vsel %vm168, %v3051, %v3063
  %v3069 = vsel %vm168, %v3054, %v3066
  %3070 = vmatprep.subr.mxu0 0.0
  %3071 = vmatpush1.msra.mxu0 0.0
  %3072 = vmatprep.subr.mxu0 0.0
  %3073 = vmatpush1.msra.mxu0 0.0
  %3074 = vmatprep.subr.mxu0 0.0
  %3075 = vmatpush1.msra.mxu0 0.0
  %3076 = vmatprep.subr.mxu0 0.0
  %3077 = vmatpush1.msra.mxu0 0.0
  %3078 = vmatprep.subr.mxu0 0.0
  %3079 = vmatpush1.msra.mxu0 0.0
  %3080 = vmatprep.subr.mxu0 0.0
  %3081 = vmatpush1.msra.mxu0 0.0
  %3082 = vmatprep.subr.mxu0 0.0
  %3083 = vmatpush1.msra.mxu0 0.0
  %3084 = vmatprep.subr.mxu0 0.0
  %3085 = vmatpush1.msra.mxu0 0.0
  %3086 = vmatprep.subr.mxu0 0.0
  %3087 = vmatpush1.msra.mxu0 0.0
  %3088 = vmatprep.subr.mxu0 0.0
  %3089 = vmatpush1.msra.mxu0 0.0
  %3090 = vmatprep.subr.mxu0 0.0
  %3091 = vmatpush1.msra.mxu0 0.0
  %3092 = vmatprep.subr.mxu0 0.0
  %3093 = vmatpush1.msra.mxu0 0.0
  %3094 = vmatprep.subr.mxu0 0.0
  %3095 = vmatpush1.msra.mxu0 0.0
  %3096 = vmatprep.subr.mxu0 0.0
  %3097 = vmatpush1.msra.mxu0 %v3069
  %3098 = vmatprep.subr.mxu0 0.0
  %3099 = vmatpush1.msra.mxu0 %v3068
  %3100 = vmatprep.subr.mxu0 0.0
  %3101 = vmatpush1.msra.mxu0 %v3067
  %3102 = vmatprep.subr.mxu0 0.0
  %3103 = vmatpush2.msra.mxu0 0.0
  %3104 = vmatprep.subr.mxu0 0.0
  %3105 = vmatpush2.msra.mxu0 0.0
  %3106 = vmatprep.subr.mxu0 0.0
  %3107 = vmatpush2.msra.mxu0 0.0
  %3108 = vmatprep.subr.mxu0 0.0
  %3109 = vmatpush2.msra.mxu0 0.0
  %3110 = vmatprep.subr.mxu0 0.0
  %3111 = vmatpush2.msra.mxu0 0.0
  %3112 = vmatprep.subr.mxu0 0.0
  %3113 = vmatpush2.msra.mxu0 0.0
  %3114 = vmatprep.subr.mxu0 0.0
  %3115 = vmatpush2.msra.mxu0 0.0
  %3116 = vmatprep.subr.mxu0 0.0
  %3117 = vmatpush2.msra.mxu0 0.0
  %3118 = vmatprep.subr.mxu0 0.0
  %3119 = vmatpush2.msra.mxu0 0.0
  %3120 = vmatprep.subr.mxu0 0.0
  %3121 = vmatpush2.msra.mxu0 0.0
  %3122 = vmatprep.subr.mxu0 0.0
  %3123 = vmatpush2.msra.mxu0 0.0
  %3124 = vmatprep.subr.mxu0 0.0
  %3125 = vmatpush2.msra.mxu0 0.0
  %3126 = vmatprep.subr.mxu0 0.0
  %3127 = vmatpush2.msra.mxu0 0.0
  %3128 = vmatprep.subr.mxu0 0.0
  %3129 = vmatpush2.msra.mxu0 0.0
  %3130 = vmatprep.subr.mxu0 0.0
  %3131 = vmatpush2.msra.mxu0 0.0
  %3132 = vmatprep.subr.mxu0 0.0
  %3133 = vmatpush2.msra.mxu0 0.0
  %3134 = vmatprep.mubr.f32.mxu0 0.0
  %3135 = vmatmul.mubr.f32.gmra.mxu0 %v173
  %v3136 = vpop.f32.mrf.mxu0
  %v3137 = vadd.f32 0.0, %v3136
  %v3138 = vpop.f32.mrf.mxu0
  %3139 = vmatprep.mubr.f32.mxu0 0.0
  %3140 = vmatmul.mubr.f32.gmra.mxu0 %v176
  %v3141 = vpop.f32.mrf.mxu0
  %v3142 = vadd.f32 0.0, %v3141
  %v3143 = vpop.f32.mrf.mxu0
  %3144 = vmatprep.mubr.f32.mxu0 0.0
  %3145 = vmatmul.mubr.f32.gmra.mxu0 %v179
  %v3146 = vpop.f32.mrf.mxu0
  %v3147 = vadd.f32 0.0, %v3146
  %v3148 = vpop.f32.mrf.mxu0
  %3149 = vdwg.mxu0
  %v3150 = vmul.f32 %v3137, 0.0078125
  %v3151 = vmul.f32 %v3142, 0.0078125
  %v3152 = vmul.f32 %v3147, 0.0078125
  %v3153 = vmul.f32 %v3150, %v3150
  %v3154 = vmul.f32 %v3151, %v3151
  %v3155 = vmul.f32 %v3152, %v3152
  %3159 = vrot.lane.b32.xlu0 %v3153, 1
  %v3160 = vpop.permute.xlu0 %3159
  %3161 = vrot.lane.b32.xlu0 %v3154, 1
  %v3162 = vpop.permute.xlu0 %3161
  %3163 = vrot.lane.b32.xlu0 %v3155, 1
  %v3164 = vpop.permute.xlu0 %3163
  %v3168 = vsub.f32 %v3150, %v3160
  %v3169 = vsub.f32 %v3151, %v3162
  %v3170 = vsub.f32 %v3152, %v3164
  %v3171 = vadd.f32 %v3168, 1e-06
  %v3172 = vadd.f32 %v3169, 1e-06
  %v3173 = vadd.f32 %v3170, 1e-06
  %v3174 = vrsqrt.pop %v3171
  %v3175 = vrsqrt.pop %v3172
  %v3176 = vrsqrt.pop %v3173
  %3178 = vset.pattern.permute.xlu0 0
  %3179 = vperm.xlu0 %3178, %v3150
  %v3180 = vpop.permute.xlu0 %3179
  %3183 = vset.pattern.permute.xlu0 0
  %3184 = vperm.xlu0 %3183, %v3151
  %v3185 = vpop.permute.xlu0 %3184
  %3188 = vset.pattern.permute.xlu0 0
  %3189 = vperm.xlu0 %3188, %v3152
  %v3190 = vpop.permute.xlu0 %3189
  %v3192 = vsub.f32 %v3033, %v3180
  %v3193 = vsub.f32 %v3038, %v3185
  %v3194 = vsub.f32 %v3043, %v3190
  %v3195 = vmul.f32 %v3174, %v1454
  %v3196 = vmul.f32 %v3175, %v1456
  %v3197 = vmul.f32 %v3176, %v1458
  %3199 = vset.pattern.permute.xlu0 1
  %3200 = vperm.xlu0 %3199, %v3195
  %v3201 = vpop.permute.xlu0 %3200
  %3204 = vset.pattern.permute.xlu0 1
  %3205 = vperm.xlu0 %3204, %v3196
  %v3206 = vpop.permute.xlu0 %3205
  %3209 = vset.pattern.permute.xlu0 1
  %3210 = vperm.xlu0 %3209, %v3197
  %v3211 = vpop.permute.xlu0 %3210
  %v3213 = vmul.f32 %v3192, %v3201
  %v3214 = vmul.f32 %v3193, %v3206
  %v3215 = vmul.f32 %v3194, %v3211
  %v3216 = vadd.f32 %v3213, %v1485
  %v3217 = vadd.f32 %v3214, %v1489
  %v3218 = vadd.f32 %v3215, %v1493
  %v3219 = vmax.f32 %v3216, 0.0
  %v3220 = vmax.f32 %v3217, 0.0
  %v3221 = vmax.f32 %v3218, 0.0
  %v3222 = vld [vmem:[%s2 + $0x90] sm:$0xff]
  %v3223 = vld [vmem:[%s2 + $0x98] sm:$0xff]
  %v3224 = vld [vmem:[%s2 + $0xa0] sm:$0xff]
  %v3226 = vsel %vm56, %v3222, 0
  %v3229 = vsel %vm56, %v3223, 0
  %v3232 = vsel %vm56, %v3224, 0
  %3234 = vmatprep.subr.mxu0 0.0
  %3235 = vmatpush1.msra.mxu0 0.0
  %3236 = vmatprep.subr.mxu0 0.0
  %3237 = vmatpush1.msra.mxu0 0.0
  %3238 = vmatprep.subr.mxu0 0.0
  %3239 = vmatpush1.msra.mxu0 0.0
  %3240 = vmatprep.subr.mxu0 0.0
  %3241 = vmatpush1.msra.mxu0 0.0
  %3242 = vmatprep.subr.mxu0 0.0
  %3243 = vmatpush1.msra.mxu0 0.0
  %3244 = vmatprep.subr.mxu0 0.0
  %3245 = vmatpush1.msra.mxu0 0.0
  %3246 = vmatprep.subr.mxu0 0.0
  %3247 = vmatpush1.msra.mxu0 0.0
  %3248 = vmatprep.subr.mxu0 0.0
  %3249 = vmatpush1.msra.mxu0 0.0
  %3250 = vmatprep.subr.mxu0 0.0
  %3251 = vmatpush1.msra.mxu0 0.0
  %3252 = vmatprep.subr.mxu0 0.0
  %3253 = vmatpush1.msra.mxu0 0.0
  %3254 = vmatprep.subr.mxu0 0.0
  %3255 = vmatpush1.msra.mxu0 0.0
  %3256 = vmatprep.subr.mxu0 0.0
  %3257 = vmatpush1.msra.mxu0 0.0
  %3258 = vmatprep.subr.mxu0 0.0
  %3259 = vmatpush1.msra.mxu0 0.0
  %3260 = vmatprep.subr.mxu0 0.0
  %3261 = vmatpush1.msra.mxu0 %v3221
  %3262 = vmatprep.subr.mxu0 0.0
  %3263 = vmatpush1.msra.mxu0 %v3220
  %3264 = vmatprep.subr.mxu0 0.0
  %3265 = vmatpush1.msra.mxu0 %v3219
  %3266 = vmatprep.subr.mxu0 0.0
  %3267 = vmatpush2.msra.mxu0 0.0
  %3268 = vmatprep.subr.mxu0 0.0
  %3269 = vmatpush2.msra.mxu0 0.0
  %3270 = vmatprep.subr.mxu0 0.0
  %3271 = vmatpush2.msra.mxu0 0.0
  %3272 = vmatprep.subr.mxu0 0.0
  %3273 = vmatpush2.msra.mxu0 0.0
  %3274 = vmatprep.subr.mxu0 0.0
  %3275 = vmatpush2.msra.mxu0 0.0
  %3276 = vmatprep.subr.mxu0 0.0
  %3277 = vmatpush2.msra.mxu0 0.0
  %3278 = vmatprep.subr.mxu0 0.0
  %3279 = vmatpush2.msra.mxu0 0.0
  %3280 = vmatprep.subr.mxu0 0.0
  %3281 = vmatpush2.msra.mxu0 0.0
  %3282 = vmatprep.subr.mxu0 0.0
  %3283 = vmatpush2.msra.mxu0 0.0
  %3284 = vmatprep.subr.mxu0 0.0
  %3285 = vmatpush2.msra.mxu0 0.0
  %3286 = vmatprep.subr.mxu0 0.0
  %3287 = vmatpush2.msra.mxu0 0.0
  %3288 = vmatprep.subr.mxu0 0.0
  %3289 = vmatpush2.msra.mxu0 0.0
  %3290 = vmatprep.subr.mxu0 0.0
  %3291 = vmatpush2.msra.mxu0 0.0
  %3292 = vmatprep.subr.mxu0 0.0
  %3293 = vmatpush2.msra.mxu0 0.0
  %3294 = vmatprep.subr.mxu0 0.0
  %3295 = vmatpush2.msra.mxu0 0.0
  %3296 = vmatprep.subr.mxu0 0.0
  %3297 = vmatpush2.msra.mxu0 0.0
  %3298 = vmatprep.mubr.f32.mxu0 0.0
  %3299 = vmatmul.mubr.f32.gmra.mxu0 %v3226
  %v3300 = vpop.f32.mrf.mxu0
  %v3301 = vadd.f32 0.0, %v3300
  %v3302 = vpop.f32.mrf.mxu0
  %3303 = vmatprep.mubr.f32.mxu0 0.0
  %3304 = vmatmul.mubr.f32.gmra.mxu0 %v3229
  %v3305 = vpop.f32.mrf.mxu0
  %v3306 = vadd.f32 0.0, %v3305
  %v3307 = vpop.f32.mrf.mxu0
  %3308 = vmatprep.mubr.f32.mxu0 0.0
  %3309 = vmatmul.mubr.f32.gmra.mxu0 %v3232
  %v3310 = vpop.f32.mrf.mxu0
  %v3311 = vadd.f32 0.0, %v3310
  %v3312 = vpop.f32.mrf.mxu0
  %3313 = vdwg.mxu0
  %v3314 = vld [vmem:[%s2 + $0xa8] sm:$0xff]
  %v3315 = vld [vmem:[%s2 + $0xb0] sm:$0xff]
  %v3316 = vld [vmem:[%s2 + $0xb8] sm:$0xff]
  %v3318 = vsel %vm56, %v3314, 0
  %v3321 = vsel %vm56, %v3315, 0
  %v3324 = vsel %vm56, %v3316, 0
  %3326 = vmatprep.subr.mxu0 0.0
  %3327 = vmatpush1.msra.mxu0 0.0
  %3328 = vmatprep.subr.mxu0 0.0
  %3329 = vmatpush1.msra.mxu0 0.0
  %3330 = vmatprep.subr.mxu0 0.0
  %3331 = vmatpush1.msra.mxu0 0.0
  %3332 = vmatprep.subr.mxu0 0.0
  %3333 = vmatpush1.msra.mxu0 0.0
  %3334 = vmatprep.subr.mxu0 0.0
  %3335 = vmatpush1.msra.mxu0 0.0
  %3336 = vmatprep.subr.mxu0 0.0
  %3337 = vmatpush1.msra.mxu0 0.0
  %3338 = vmatprep.subr.mxu0 0.0
  %3339 = vmatpush1.msra.mxu0 0.0
  %3340 = vmatprep.subr.mxu0 0.0
  %3341 = vmatpush1.msra.mxu0 0.0
  %3342 = vmatprep.subr.mxu0 0.0
  %3343 = vmatpush1.msra.mxu0 0.0
  %3344 = vmatprep.subr.mxu0 0.0
  %3345 = vmatpush1.msra.mxu0 0.0
  %3346 = vmatprep.subr.mxu0 0.0
  %3347 = vmatpush1.msra.mxu0 0.0
  %3348 = vmatprep.subr.mxu0 0.0
  %3349 = vmatpush1.msra.mxu0 0.0
  %3350 = vmatprep.subr.mxu0 0.0
  %3351 = vmatpush1.msra.mxu0 0.0
  %3352 = vmatprep.subr.mxu0 0.0
  %3353 = vmatpush1.msra.mxu0 %v3221
  %3354 = vmatprep.subr.mxu0 0.0
  %3355 = vmatpush1.msra.mxu0 %v3220
  %3356 = vmatprep.subr.mxu0 0.0
  %3357 = vmatpush1.msra.mxu0 %v3219
  %3358 = vmatprep.subr.mxu0 0.0
  %3359 = vmatpush2.msra.mxu0 0.0
  %3360 = vmatprep.subr.mxu0 0.0
  %3361 = vmatpush2.msra.mxu0 0.0
  %3362 = vmatprep.subr.mxu0 0.0
  %3363 = vmatpush2.msra.mxu0 0.0
  %3364 = vmatprep.subr.mxu0 0.0
  %3365 = vmatpush2.msra.mxu0 0.0
  %3366 = vmatprep.subr.mxu0 0.0
  %3367 = vmatpush2.msra.mxu0 0.0
  %3368 = vmatprep.subr.mxu0 0.0
  %3369 = vmatpush2.msra.mxu0 0.0
  %3370 = vmatprep.subr.mxu0 0.0
  %3371 = vmatpush2.msra.mxu0 0.0
  %3372 = vmatprep.subr.mxu0 0.0
  %3373 = vmatpush2.msra.mxu0 0.0
  %3374 = vmatprep.subr.mxu0 0.0
  %3375 = vmatpush2.msra.mxu0 0.0
  %3376 = vmatprep.subr.mxu0 0.0
  %3377 = vmatpush2.msra.mxu0 0.0
  %3378 = vmatprep.subr.mxu0 0.0
  %3379 = vmatpush2.msra.mxu0 0.0
  %3380 = vmatprep.subr.mxu0 0.0
  %3381 = vmatpush2.msra.mxu0 0.0
  %3382 = vmatprep.subr.mxu0 0.0
  %3383 = vmatpush2.msra.mxu0 0.0
  %3384 = vmatprep.subr.mxu0 0.0
  %3385 = vmatpush2.msra.mxu0 0.0
  %3386 = vmatprep.subr.mxu0 0.0
  %3387 = vmatpush2.msra.mxu0 0.0
  %3388 = vmatprep.subr.mxu0 0.0
  %3389 = vmatpush2.msra.mxu0 0.0
  %3390 = vmatprep.mubr.f32.mxu0 0.0
  %3391 = vmatmul.mubr.f32.gmra.mxu0 %v3318
  %v3392 = vpop.f32.mrf.mxu0
  %v3393 = vadd.f32 0.0, %v3392
  %v3394 = vpop.f32.mrf.mxu0
  %3395 = vmatprep.mubr.f32.mxu0 0.0
  %3396 = vmatmul.mubr.f32.gmra.mxu0 %v3321
  %v3397 = vpop.f32.mrf.mxu0
  %v3398 = vadd.f32 0.0, %v3397
  %v3399 = vpop.f32.mrf.mxu0
  %3400 = vmatprep.mubr.f32.mxu0 0.0
  %3401 = vmatmul.mubr.f32.gmra.mxu0 %v3324
  %v3402 = vpop.f32.mrf.mxu0
  %v3403 = vadd.f32 0.0, %v3402
  %v3404 = vpop.f32.mrf.mxu0
  %3405 = vdwg.mxu0
  %v3406 = vld [vmem:[%s2 + $0xc0] sm:$0xff]
  %v3407 = vld [vmem:[%s2 + $0xc8] sm:$0xff]
  %v3408 = vld [vmem:[%s2 + $0xd0] sm:$0xff]
  %v3410 = vsel %vm56, %v3406, 0
  %v3413 = vsel %vm56, %v3407, 0
  %v3416 = vsel %vm56, %v3408, 0
  %3418 = vmatprep.subr.mxu0 0.0
  %3419 = vmatpush1.msra.mxu0 0.0
  %3420 = vmatprep.subr.mxu0 0.0
  %3421 = vmatpush1.msra.mxu0 0.0
  %3422 = vmatprep.subr.mxu0 0.0
  %3423 = vmatpush1.msra.mxu0 0.0
  %3424 = vmatprep.subr.mxu0 0.0
  %3425 = vmatpush1.msra.mxu0 0.0
  %3426 = vmatprep.subr.mxu0 0.0
  %3427 = vmatpush1.msra.mxu0 0.0
  %3428 = vmatprep.subr.mxu0 0.0
  %3429 = vmatpush1.msra.mxu0 0.0
  %3430 = vmatprep.subr.mxu0 0.0
  %3431 = vmatpush1.msra.mxu0 0.0
  %3432 = vmatprep.subr.mxu0 0.0
  %3433 = vmatpush1.msra.mxu0 0.0
  %3434 = vmatprep.subr.mxu0 0.0
  %3435 = vmatpush1.msra.mxu0 0.0
  %3436 = vmatprep.subr.mxu0 0.0
  %3437 = vmatpush1.msra.mxu0 0.0
  %3438 = vmatprep.subr.mxu0 0.0
  %3439 = vmatpush1.msra.mxu0 0.0
  %3440 = vmatprep.subr.mxu0 0.0
  %3441 = vmatpush1.msra.mxu0 0.0
  %3442 = vmatprep.subr.mxu0 0.0
  %3443 = vmatpush1.msra.mxu0 0.0
  %3444 = vmatprep.subr.mxu0 0.0
  %3445 = vmatpush1.msra.mxu0 %v3221
  %3446 = vmatprep.subr.mxu0 0.0
  %3447 = vmatpush1.msra.mxu0 %v3220
  %3448 = vmatprep.subr.mxu0 0.0
  %3449 = vmatpush1.msra.mxu0 %v3219
  %3450 = vmatprep.subr.mxu0 0.0
  %3451 = vmatpush2.msra.mxu0 0.0
  %3452 = vmatprep.subr.mxu0 0.0
  %3453 = vmatpush2.msra.mxu0 0.0
  %3454 = vmatprep.subr.mxu0 0.0
  %3455 = vmatpush2.msra.mxu0 0.0
  %3456 = vmatprep.subr.mxu0 0.0
  %3457 = vmatpush2.msra.mxu0 0.0
  %3458 = vmatprep.subr.mxu0 0.0
  %3459 = vmatpush2.msra.mxu0 0.0
  %3460 = vmatprep.subr.mxu0 0.0
  %3461 = vmatpush2.msra.mxu0 0.0
  %3462 = vmatprep.subr.mxu0 0.0
  %3463 = vmatpush2.msra.mxu0 0.0
  %3464 = vmatprep.subr.mxu0 0.0
  %3465 = vmatpush2.msra.mxu0 0.0
  %3466 = vmatprep.subr.mxu0 0.0
  %3467 = vmatpush2.msra.mxu0 0.0
  %3468 = vmatprep.subr.mxu0 0.0
  %3469 = vmatpush2.msra.mxu0 0.0
  %3470 = vmatprep.subr.mxu0 0.0
  %3471 = vmatpush2.msra.mxu0 0.0
  %3472 = vmatprep.subr.mxu0 0.0
  %3473 = vmatpush2.msra.mxu0 0.0
  %3474 = vmatprep.subr.mxu0 0.0
  %3475 = vmatpush2.msra.mxu0 0.0
  %3476 = vmatprep.subr.mxu0 0.0
  %3477 = vmatpush2.msra.mxu0 0.0
  %3478 = vmatprep.subr.mxu0 0.0
  %3479 = vmatpush2.msra.mxu0 0.0
  %3480 = vmatprep.subr.mxu0 0.0
  %3481 = vmatpush2.msra.mxu0 0.0
  %3482 = vmatprep.mubr.f32.mxu0 0.0
  %3483 = vmatmul.mubr.f32.gmra.mxu0 %v3410
  %v3484 = vpop.f32.mrf.mxu0
  %v3485 = vadd.f32 0.0, %v3484
  %v3486 = vpop.f32.mrf.mxu0
  %3487 = vmatprep.mubr.f32.mxu0 0.0
  %3488 = vmatmul.mubr.f32.gmra.mxu0 %v3413
  %v3489 = vpop.f32.mrf.mxu0
  %v3490 = vadd.f32 0.0, %v3489
  %v3491 = vpop.f32.mrf.mxu0
  %3492 = vmatprep.mubr.f32.mxu0 0.0
  %3493 = vmatmul.mubr.f32.gmra.mxu0 %v3416
  %v3494 = vpop.f32.mrf.mxu0
  %v3495 = vadd.f32 0.0, %v3494
  %v3496 = vpop.f32.mrf.mxu0
  %3497 = vdwg.mxu0
  %v3498 = vld [vmem:[%s2 + $0xd8] sm:$0xff]
  %v3499 = vld [vmem:[%s2 + $0xe0] sm:$0xff]
  %v3500 = vld [vmem:[%s2 + $0xe8] sm:$0xff]
  %v3502 = vsel %vm56, %v3498, 0
  %v3505 = vsel %vm56, %v3499, 0
  %v3508 = vsel %vm56, %v3500, 0
  %3510 = vmatprep.subr.mxu0 0.0
  %3511 = vmatpush1.msra.mxu0 0.0
  %3512 = vmatprep.subr.mxu0 0.0
  %3513 = vmatpush1.msra.mxu0 0.0
  %3514 = vmatprep.subr.mxu0 0.0
  %3515 = vmatpush1.msra.mxu0 0.0
  %3516 = vmatprep.subr.mxu0 0.0
  %3517 = vmatpush1.msra.mxu0 0.0
  %3518 = vmatprep.subr.mxu0 0.0
  %3519 = vmatpush1.msra.mxu0 0.0
  %3520 = vmatprep.subr.mxu0 0.0
  %3521 = vmatpush1.msra.mxu0 0.0
  %3522 = vmatprep.subr.mxu0 0.0
  %3523 = vmatpush1.msra.mxu0 0.0
  %3524 = vmatprep.subr.mxu0 0.0
  %3525 = vmatpush1.msra.mxu0 0.0
  %3526 = vmatprep.subr.mxu0 0.0
  %3527 = vmatpush1.msra.mxu0 0.0
  %3528 = vmatprep.subr.mxu0 0.0
  %3529 = vmatpush1.msra.mxu0 0.0
  %3530 = vmatprep.subr.mxu0 0.0
  %3531 = vmatpush1.msra.mxu0 0.0
  %3532 = vmatprep.subr.mxu0 0.0
  %3533 = vmatpush1.msra.mxu0 0.0
  %3534 = vmatprep.subr.mxu0 0.0
  %3535 = vmatpush1.msra.mxu0 0.0
  %3536 = vmatprep.subr.mxu0 0.0
  %3537 = vmatpush1.msra.mxu0 %v3221
  %3538 = vmatprep.subr.mxu0 0.0
  %3539 = vmatpush1.msra.mxu0 %v3220
  %3540 = vmatprep.subr.mxu0 0.0
  %3541 = vmatpush1.msra.mxu0 %v3219
  %3542 = vmatprep.subr.mxu0 0.0
  %3543 = vmatpush2.msra.mxu0 0.0
  %3544 = vmatprep.subr.mxu0 0.0
  %3545 = vmatpush2.msra.mxu0 0.0
  %3546 = vmatprep.subr.mxu0 0.0
  %3547 = vmatpush2.msra.mxu0 0.0
  %3548 = vmatprep.subr.mxu0 0.0
  %3549 = vmatpush2.msra.mxu0 0.0
  %3550 = vmatprep.subr.mxu0 0.0
  %3551 = vmatpush2.msra.mxu0 0.0
  %3552 = vmatprep.subr.mxu0 0.0
  %3553 = vmatpush2.msra.mxu0 0.0
  %3554 = vmatprep.subr.mxu0 0.0
  %3555 = vmatpush2.msra.mxu0 0.0
  %3556 = vmatprep.subr.mxu0 0.0
  %3557 = vmatpush2.msra.mxu0 0.0
  %3558 = vmatprep.subr.mxu0 0.0
  %3559 = vmatpush2.msra.mxu0 0.0
  %3560 = vmatprep.subr.mxu0 0.0
  %3561 = vmatpush2.msra.mxu0 0.0
  %3562 = vmatprep.subr.mxu0 0.0
  %3563 = vmatpush2.msra.mxu0 0.0
  %3564 = vmatprep.subr.mxu0 0.0
  %3565 = vmatpush2.msra.mxu0 0.0
  %3566 = vmatprep.subr.mxu0 0.0
  %3567 = vmatpush2.msra.mxu0 0.0
  %3568 = vmatprep.subr.mxu0 0.0
  %3569 = vmatpush2.msra.mxu0 0.0
  %3570 = vmatprep.subr.mxu0 0.0
  %3571 = vmatpush2.msra.mxu0 0.0
  %3572 = vmatprep.subr.mxu0 0.0
  %3573 = vmatpush2.msra.mxu0 0.0
  %3574 = vmatprep.mubr.f32.mxu0 0.0
  %3575 = vmatmul.mubr.f32.gmra.mxu0 %v3502
  %v3576 = vpop.f32.mrf.mxu0
  %v3577 = vadd.f32 0.0, %v3576
  %v3578 = vpop.f32.mrf.mxu0
  %3579 = vmatprep.mubr.f32.mxu0 0.0
  %3580 = vmatmul.mubr.f32.gmra.mxu0 %v3505
  %v3581 = vpop.f32.mrf.mxu0
  %v3582 = vadd.f32 0.0, %v3581
  %v3583 = vpop.f32.mrf.mxu0
  %3584 = vmatprep.mubr.f32.mxu0 0.0
  %3585 = vmatmul.mubr.f32.gmra.mxu0 %v3508
  %v3586 = vpop.f32.mrf.mxu0
  %v3587 = vadd.f32 0.0, %v3586
  %v3588 = vpop.f32.mrf.mxu0
  %3589 = vdwg.mxu0
  %3593 = vrot.lane.b32.xlu0 %v3393, 64
  %v3594 = vpop.permute.xlu0 %3593
  %3595 = vrot.lane.b32.xlu0 %v3398, 64
  %v3596 = vpop.permute.xlu0 %3595
  %3597 = vrot.lane.b32.xlu0 %v3403, 64
  %v3598 = vpop.permute.xlu0 %3597
  %3605 = vrot.lane.b32.xlu0 %v3577, 64
  %v3606 = vpop.permute.xlu0 %3605
  %3607 = vrot.lane.b32.xlu0 %v3582, 64
  %v3608 = vpop.permute.xlu0 %3607
  %3609 = vrot.lane.b32.xlu0 %v3587, 64
  %v3610 = vpop.permute.xlu0 %3609
  %v3614 = vsel %vm146, %v3301, %v3594
  %v3615 = vsel %vm146, %v3306, %v3596
  %v3616 = vsel %vm146, %v3311, %v3598
  %v3617 = vsel %vm146, %v3485, %v3606
  %v3618 = vsel %vm146, %v3490, %v3608
  %v3619 = vsel %vm146, %v3495, %v3610
  %v3620 = vadd.f32 %v3614, %v1901
  %v3621 = vadd.f32 %v3617, %v1901
  %v3622 = vadd.f32 %v3615, %v1905
  %v3623 = vadd.f32 %v3618, %v1905
  %v3624 = vadd.f32 %v3616, %v1909
  %v3625 = vadd.f32 %v3619, %v1909
  %s3626 = scalar_lea.vmem %s4, 48
  %3627 = vst [vmem:[%s3626] sm:$0xff] %v3620
  %3628 = vst [vmem:[%s3626 + $0x8] sm:$0xff] %v3621
  %3629 = vst [vmem:[%s3626 + $0x10] sm:$0xff] %v3622
  %3630 = vst [vmem:[%s3626 + $0x18] sm:$0xff] %v3623
  %3631 = vst [vmem:[%s3626 + $0x20] sm:$0xff] %v3624
  %3632 = vst [vmem:[%s3626 + $0x28] sm:$0xff] %v3625
  // Predicated region
  $region18: #{multi_head_cross_attention_forward.1} parent=0 // pred_check
    _
  $region19: #{multi_head_cross_attention_forward.1} parent=0 // pred_check_branch
    %3634 = sbr.rel (0) target = $region21
  $region20: #{multi_head_cross_attention_forward.1} parent=0 // pred_region
    _
  $region21: #{multi_head_cross_attention_forward.1} parent=0 // pred_fallthru
    _
  // Predicated region
  $region22: #{multi_head_cross_attention_forward.1} parent=0 // pred_check
    _
  $region23: #{multi_head_cross_attention_forward.1} parent=0 // pred_check_branch
    %3636 = sbr.rel (0) target = $region25
  $region24: #{multi_head_cross_attention_forward.1} parent=0 // pred_region
    _
  $region25: #{multi_head_cross_attention_forward.1} parent=0 // pred_fallthru
    _

</llo_original>
